<compile_context>
chip_gen: v6e
topology: v6e:2x2x1
jax: 0.10.0
libtpu: 0.0.40
codegen_flags: <defaults>
</compile_context>

<pallas_src>
import math
import functools

import jax
import jax.numpy as jnp
from jax import lax  # noqa: F401  (kept for users extending the kernel)
from jax.experimental import pallas as pl
from jax.experimental.pallas import tpu as pltpu


def _attn_kernel(h_ref, wqkv_ref, bqkv_ref, mask_ref, o_ref, *scratch,
                 num_heads, head_dim, block_q, n_qt, hidden_size, seq_len,
                 compute_dtype):
    """Fused BERT self-attention for one (batch, query-tile) grid step.

    Kernel views (leading batch dim squeezed via `None` block dims):
      h_ref    : [S, H]        hidden states (full sequence; fetched once per batch)
      wqkv_ref : [H, 3H]       [Wq.T/sqrt(d) | Wk.T | Wv.T]   (grid-resident)
      bqkv_ref : [1, 3H]       [bq/sqrt(d)   | bk   | bv  ]   (grid-resident)
      mask_ref : [1, S]        additive per-key mask (0 / -10000)
      o_ref    : [block_q, H]  context, lane-dense in the hidden dim
      scratch  : ()                        when n_qt == 1
                 (kv_ref [S, 2H],)         K|V VMEM cache when the query axis is tiled
    """
    H, S, d, nh = hidden_size, seq_len, head_dim, num_heads
    cdt = compute_dtype
    cast = (lambda v: v) if cdt is None else (lambda v: v.astype(cdt))

    mask = mask_ref[...]                       # [1, S] f32; broadcasts over heads & queries

    if n_qt == 1:
        # Single query tile: one fused [S,H] x [H,3H] projection (M = S feeds the MXU),
        # bias added once, a single cast on the bf16 path.
        x = cast(h_ref[...])                                               # [S, H]
        qkv = jnp.dot(x, wqkv_ref[...],
                      preferred_element_type=jnp.float32) + bqkv_ref[...]  # [S, 3H] f32
        qkv = cast(qkv)                                                    # one cast (not per head)
        q_rows = qkv[:, :H]                                                # [S, H] (1/sqrt(d) pre-folded)
        k_rows = qkv[:, H:2 * H]                                           # [S, H]
        v_rows = qkv[:, 2 * H:]                                            # [S, H]
    else:
        # Query-tiled path (long sequences): K/V projected ONCE per batch element at
        # the first query tile and cached in VMEM; Q projected only for this tile.
        (kv_ref,) = scratch
        qi = pl.program_id(1)

        @pl.when(qi == 0)
        def _():
            x = cast(h_ref[...])                                           # [S, H]
            kv = jnp.dot(x, wqkv_ref[:, H:],
                         preferred_element_type=jnp.float32) + bqkv_ref[:, H:]
            kv_ref[...] = kv.astype(kv_ref.dtype)

        row0 = pl.multiple_of(qi * block_q, block_q)
        x_q = cast(h_ref[pl.ds(row0, block_q), :])                         # [bq, H]
        q = jnp.dot(x_q, wqkv_ref[:, :H],
                    preferred_element_type=jnp.float32) + bqkv_ref[:, :H]
        q_rows = cast(q)                                                   # [bq, H]
        kv = kv_ref[...]                                                   # [S, 2H]
        k_rows = kv[:, :H]
        v_rows = kv[:, H:]

    bq = q_rows.shape[0]

    # Split heads with ONE reshape+transpose per tensor (no per-head 64-lane slices,
    # no end-of-loop concatenate); all per-head matmuls are batched over heads.
    qh = jnp.transpose(q_rows.reshape(bq, nh, d), (1, 0, 2))    # [nh, bq, d]
    kh = jnp.transpose(k_rows.reshape(S, nh, d), (1, 0, 2))     # [nh, S,  d]
    vh = jnp.transpose(v_rows.reshape(S, nh, d), (1, 0, 2))     # [nh, S,  d]

    # scores = (Q/sqrt(d)) K^T : contract on d (no explicit K transpose), f32 accumulate.
    s = jnp.einsum('hqd,hkd->hqk', qh, kh,
                   preferred_element_type=jnp.float32)          # [nh, bq, S]
    s = s + mask                                                # additive per-key mask

    # softmax in f32
    m = jnp.max(s, axis=-1, keepdims=True)
    p = jnp.exp(s - m)
    p = p * pl.reciprocal(jnp.sum(p, axis=-1, keepdims=True), approx=True)  # EUP slot
    # TODO(synk): attention-probs dropout omitted (module run in eval mode -> identity).

    ctx = jnp.einsum('hqk,hkd->hqd', cast(p), vh,
                     preferred_element_type=jnp.float32)        # [nh, bq, d]

    # Merge heads -> [bq, H]; single lane-dense store in [B, S, H] layout.
    ctx = jnp.transpose(ctx, (1, 0, 2)).reshape(bq, H)
    o_ref[...] = ctx.astype(o_ref.dtype)


def _vmem_limit_bytes(fraction=0.75):
    """Generation-aware VMEM limit: ~75% of physical per-core VMEM
    (v5e/v6e: 128 MiB -> ~96 MiB; v7x: 64 MiB -> ~48 MiB).
    Returns None (compiler default) if the hardware query is unavailable."""
    try:
        return int(pltpu.get_tpu_info().vmem_capacity_bytes * fraction)
    except Exception:
        return None


def qil_bert_self_attention(hidden, wq, bq, wk, bk, wv, bv, attention_mask,
                            num_heads, *, block_q=None, compute_dtype=None,
                            single_buffer_resident=True, vmem_fraction=0.75):
    """hidden: [B, S, H]; w*: [H, H] (torch Linear layout [out, in]); b*: [H].
    attention_mask: additive per-key mask [B, 1, S] (0 keep / -10000 pad),
    broadcast over heads and query positions (standard BERT extended mask).
    compute_dtype: optional (e.g. jnp.bfloat16) matmul-operand dtype; accumulation
    and softmax stay in float32.  block_q=None -> single query tile (block_q=S).
    Returns ((context,), (None,), (None,)) mirroring the module's output tuple."""
    B, S, H = hidden.shape
    d = H // num_heads
    scale = 1.0 / math.sqrt(d)

    # Fuse the three projections (y = x @ W.T + b) into one [H, 3H] weight and fold
    # the 1/sqrt(d) score scaling into the Q columns / bias (exact rewrite:
    # (x Wq^T + bq) K^T / sqrt(d) == (x (Wq^T/sqrt(d)) + bq/sqrt(d)) K^T).
    w_qkv = jnp.concatenate([wq.T * scale, wk.T, wv.T], axis=-1)        # [H, 3H]
    b_qkv = jnp.concatenate([bq * scale, bk, bv], axis=-1).reshape(1, 3 * H)
    if compute_dtype is not None:
        w_qkv = w_qkv.astype(compute_dtype)                             # halve weight residency/DMA

    # Default: single query tile.  For BERT-scale S everything fits comfortably in
    # VMEM on all generations and the K/V projection is never recomputed.
    if block_q is None or block_q >= S or S % block_q != 0:
        block_q = S
    n_qt = S // block_q
    kv_dtype = jnp.float32 if compute_dtype is None else compute_dtype
    scratch_shapes = [] if n_qt == 1 else [pltpu.VMEM((S, 2 * H), kv_dtype)]

    kernel = functools.partial(
        _attn_kernel, num_heads=num_heads, head_dim=d, block_q=block_q,
        n_qt=n_qt, hidden_size=H, seq_len=S, compute_dtype=compute_dtype)

    def build(single_buffer):
        # Grid-invariant operands (constant index_map) don't need double buffering.
        resident_kw = dict(pipeline_mode=pl.Buffered(1)) if single_buffer else {}
        return pl.pallas_call(
            kernel,
            out_shape=jax.ShapeDtypeStruct((B, S, H), hidden.dtype),
            grid=(B, n_qt),
            in_specs=[
                pl.BlockSpec((None, S, H), lambda b, q: (b, 0, 0)),            # hidden (full seq; constant in q)
                pl.BlockSpec((H, 3 * H), lambda b, q: (0, 0), **resident_kw),  # fused QKV weight (resident)
                pl.BlockSpec((1, 3 * H), lambda b, q: (0, 0), **resident_kw),  # fused bias (resident)
                pl.BlockSpec((None, 1, S), lambda b, q: (b, 0, 0)),            # additive per-key mask
            ],
            out_specs=pl.BlockSpec((None, block_q, H), lambda b, q: (b, q, 0)),  # lane-dense [B,S,H]
            scratch_shapes=scratch_shapes,
            compiler_params=pltpu.CompilerParams(
                # batch axis -> megacore split (v7x); query axis sequential so the
                # K/V VMEM cache across query tiles is legal.
                dimension_semantics=("parallel", "arbitrary"),
                vmem_limit_bytes=_vmem_limit_bytes(vmem_fraction)),
        )

    if single_buffer_resident:
        try:
            context = jax.block_until_ready(
                build(True)(hidden, w_qkv, b_qkv, attention_mask))
        except Exception:
            # pipeline_mode=pl.Buffered(1) unsupported on this JAX version ->
            # fall back to default (double-buffered) pipelining.
            context = build(False)(hidden, w_qkv, b_qkv, attention_mask)
    else:
        context = build(False)(hidden, w_qkv, b_qkv, attention_mask)

    # QILQuantAct / QILLinear in non-quant mode are identity; scaling factor and
    # offset outputs are None (mirrors the module's output tuple).
    return (context,), (None,), (None,)


def _reference(hidden, wq, bq, wk, bk, wv, bv, mask, num_heads):
    B, S, H = hidden.shape
    d = H // num_heads

    def proj(w, b):
        y = hidden @ w.T + b
        return y.reshape(B, S, num_heads, d).transpose(0, 2, 1, 3)

    q, k, v = proj(wq, bq), proj(wk, bk), proj(wv, bv)
    s = jnp.einsum('bhqd,bhkd->bhqk', q, k) / math.sqrt(d) + mask[:, :, None, :]
    p = jax.nn.softmax(s, axis=-1)
    ctx = jnp.einsum('bhqk,bhkd->bhqd', p, v)
    return ctx.transpose(0, 2, 1, 3).reshape(B, S, H)


def _make_inputs(key, B, S, H):
    ks = jax.random.split(key, 8)
    hidden = jax.random.normal(ks[0], (B, S, H), dtype=jnp.float32)
    wq = 0.02 * jax.random.normal(ks[1], (H, H), dtype=jnp.float32)
    wk = 0.02 * jax.random.normal(ks[2], (H, H), dtype=jnp.float32)
    wv = 0.02 * jax.random.normal(ks[3], (H, H), dtype=jnp.float32)
    bq = 0.02 * jax.random.normal(ks[4], (H,), dtype=jnp.float32)
    bk = 0.02 * jax.random.normal(ks[5], (H,), dtype=jnp.float32)
    bv = 0.02 * jax.random.normal(ks[6], (H,), dtype=jnp.float32)
    # BERT-style additive per-key mask [B, 1, S]: last two tokens of batch 1 are padding.
    pad = jnp.ones((B, S), dtype=jnp.float32).at[1, -2:].set(0.0)
    attn_mask = ((1.0 - pad) * -10000.0)[:, None, :]                    # [B, 1, S]
    return hidden, wq, bq, wk, bk, wv, bv, attn_mask


if __name__ == "__main__":
    NUM_HEADS = 4
    key0, key1 = jax.random.split(jax.random.PRNGKey(0))

    # 1) default path: single query tile (block_q = S), f32 operands
    inputs = _make_inputs(key0, 2, 8, 32)
    ref = _reference(*inputs, NUM_HEADS)
    (ctx,), (sf,), (off,) = qil_bert_self_attention(*inputs, NUM_HEADS)
    ctx = jax.block_until_ready(ctx)
    assert ctx.shape == (2, 8, 32)
    assert sf is None and off is None
    assert jnp.max(jnp.abs(ctx - ref)) < 2e-3

    # 2) bf16 operands / f32 accumulation (MXU path), looser tolerance
    (ctx_bf,), _, _ = qil_bert_self_attention(*inputs, NUM_HEADS,
                                              compute_dtype=jnp.bfloat16)
    ctx_bf = jax.block_until_ready(ctx_bf)
    assert jnp.max(jnp.abs(ctx_bf - ref)) < 3e-2

    # 3) query-tiled long-sequence path: K/V cached in VMEM scratch under
    #    pl.when(q == 0), Q projected per tile only.
    inputs2 = _make_inputs(key1, 2, 16, 32)
    ref2 = _reference(*inputs2, NUM_HEADS)
    (ctx2,), _, _ = qil_bert_self_attention(*inputs2, NUM_HEADS, block_q=8)
    ctx2 = jax.block_until_ready(ctx2)
    assert ctx2.shape == (2, 16, 32)
    assert jnp.max(jnp.abs(ctx2 - ref2)) < 2e-3

    print("KERNEL_OK")
</pallas_src>

<mosaic_0001>
module attributes {stable_mosaic.version = 11 : i64} {
  func.func @_attn_kernel(%arg0: i32, %arg1: i32, %arg2: memref<1x8x32xf32, #tpu.memory_space<vmem>>, %arg3: memref<32x96xf32, #tpu.memory_space<vmem>>, %arg4: memref<1x96xf32, #tpu.memory_space<vmem>>, %arg5: memref<1x1x8xf32, #tpu.memory_space<vmem>>, %arg6: memref<1x8x32xf32, #tpu.memory_space<vmem>>) attributes {dimension_semantics = [#tpu.dimension_semantics<parallel>, #tpu.dimension_semantics<arbitrary>], iteration_bounds = array<i64: 2, 1>, scalar_prefetch = 0 : i64, scratch_operands = 0 : i64, tpu.core_type = #tpu.core_type<tc>, window_params = [{transform_indices = @transform_0, window_bounds = array<i64: 1, 8, 32>}, {pipeline_mode = #tpu.pipeline_mode<synchronous>, transform_indices = @transform_1, window_bounds = array<i64: 32, 96>}, {pipeline_mode = #tpu.pipeline_mode<synchronous>, transform_indices = @transform_2, window_bounds = array<i64: 1, 96>}, {transform_indices = @transform_3, window_bounds = array<i64: 1, 1, 8>}, {transform_indices = @transform_4, window_bounds = array<i64: 1, 8, 32>}]} {
    %c0 = arith.constant 0 : index
    %c0_0 = arith.constant 0 : index
    %c0_1 = arith.constant 0 : index
    %0 = vector.load %arg5[%c0, %c0_0, %c0_1] : memref<1x1x8xf32, #tpu.memory_space<vmem>>, vector<1x1x8xf32>
    %1 = vector.shape_cast %0 : vector<1x1x8xf32> to vector<1x8xf32>
    %c0_2 = arith.constant 0 : index
    %c0_3 = arith.constant 0 : index
    %c0_4 = arith.constant 0 : index
    %2 = vector.load %arg2[%c0_2, %c0_3, %c0_4] : memref<1x8x32xf32, #tpu.memory_space<vmem>>, vector<1x8x32xf32>
    %3 = vector.shape_cast %2 : vector<1x8x32xf32> to vector<8x32xf32>
    %c0_5 = arith.constant 0 : index
    %c0_6 = arith.constant 0 : index
    %4 = vector.load %arg3[%c0_5, %c0_6] : memref<32x96xf32, #tpu.memory_space<vmem>>, vector<32x96xf32>
    %cst = arith.constant dense<0.000000e+00> : vector<8x96xf32>
    %5 = tpu.matmul %3, %4, %cst {dimension_numbers = #tpu.dot_dimension_numbers<[1], [0], [0], [1], [0, 0, 1, 1], [], []>} : vector<8x32xf32>, vector<32x96xf32>, vector<8x96xf32> -> vector<8x96xf32>
    %c0_7 = arith.constant 0 : index
    %c0_8 = arith.constant 0 : index
    %6 = vector.load %arg4[%c0_7, %c0_8] : memref<1x96xf32, #tpu.memory_space<vmem>>, vector<1x96xf32>
    %7 = vector.broadcast %6 : vector<1x96xf32> to vector<8x96xf32>
    %8 = arith.addf %5, %7 : vector<8x96xf32>
    %9 = vector.extract_strided_slice %8 {offsets = [0, 0], sizes = [8, 32], strides = [1, 1]} : vector<8x96xf32> to vector<8x32xf32>
    %10 = vector.extract_strided_slice %8 {offsets = [0, 32], sizes = [8, 32], strides = [1, 1]} : vector<8x96xf32> to vector<8x32xf32>
    %11 = vector.extract_strided_slice %8 {offsets = [0, 64], sizes = [8, 32], strides = [1, 1]} : vector<8x96xf32> to vector<8x32xf32>
    %12 = vector.shape_cast %9 : vector<8x32xf32> to vector<8x4x8xf32>
    %13 = tpu.transpose %12, [1, 0, 2] : vector<8x4x8xf32> -> vector<4x8x8xf32>
    %14 = vector.shape_cast %10 : vector<8x32xf32> to vector<8x4x8xf32>
    %15 = tpu.transpose %14, [1, 0, 2] : vector<8x4x8xf32> -> vector<4x8x8xf32>
    %16 = vector.shape_cast %11 : vector<8x32xf32> to vector<8x4x8xf32>
    %17 = tpu.transpose %16, [1, 0, 2] : vector<8x4x8xf32> -> vector<4x8x8xf32>
    "tpu.trace_start"() <{level = 10 : i32, message = "hqd,hkd->hqk"}> : () -> ()
    %cst_9 = arith.constant dense<0.000000e+00> : vector<4x8x8xf32>
    %18 = tpu.matmul %13, %15, %cst_9 {dimension_numbers = #tpu.dot_dimension_numbers<[2], [2], [1], [1], [0, 0, 0, 1, 1, 1], [0], [0]>} : vector<4x8x8xf32>, vector<4x8x8xf32>, vector<4x8x8xf32> -> vector<4x8x8xf32>
    "tpu.trace_stop"() : () -> ()
    %19 = vector.shape_cast %1 : vector<1x8xf32> to vector<1x1x8xf32>
    %20 = vector.broadcast %19 : vector<1x1x8xf32> to vector<4x8x8xf32>
    %21 = arith.addf %18, %20 : vector<4x8x8xf32>
    %cst_10 = arith.constant dense<0xFF800000> : vector<4x8xf32>
    %22 = vector.multi_reduction <maximumf>, %21, %cst_10 [2] : vector<4x8x8xf32> to vector<4x8xf32>
    %23 = vector.shape_cast %22 : vector<4x8xf32> to vector<4x8x1xf32>
    %24 = vector.broadcast %23 : vector<4x8x1xf32> to vector<4x8x8xf32>
    %25 = arith.subf %21, %24 : vector<4x8x8xf32>
    %26 = math.exp %25 : vector<4x8x8xf32>
    %cst_11 = arith.constant dense<0.000000e+00> : vector<4x8xf32>
    %27 = vector.multi_reduction <add>, %26, %cst_11 [2] : vector<4x8x8xf32> to vector<4x8xf32>
    %28 = vector.shape_cast %27 : vector<4x8xf32> to vector<4x8x1xf32>
    %29 = tpu.reciprocal %28 {approx = true} : vector<4x8x1xf32> -> vector<4x8x1xf32>
    %30 = vector.broadcast %29 : vector<4x8x1xf32> to vector<4x8x8xf32>
    %31 = arith.mulf %26, %30 : vector<4x8x8xf32>
    "tpu.trace_start"() <{level = 10 : i32, message = "hqk,hkd->hqd"}> : () -> ()
    %cst_12 = arith.constant dense<0.000000e+00> : vector<4x8x8xf32>
    %32 = tpu.matmul %31, %17, %cst_12 {dimension_numbers = #tpu.dot_dimension_numbers<[2], [1], [1], [2], [0, 0, 0, 1, 1, 2], [0], [0]>} : vector<4x8x8xf32>, vector<4x8x8xf32>, vector<4x8x8xf32> -> vector<4x8x8xf32>
    "tpu.trace_stop"() : () -> ()
    %33 = tpu.transpose %32, [1, 0, 2] : vector<4x8x8xf32> -> vector<8x4x8xf32>
    %34 = vector.shape_cast %33 : vector<8x4x8xf32> to vector<8x32xf32>
    %c0_13 = arith.constant 0 : index
    %c0_14 = arith.constant 0 : index
    %c0_15 = arith.constant 0 : index
    %35 = vector.load %arg6[%c0_13, %c0_14, %c0_15] : memref<1x8x32xf32, #tpu.memory_space<vmem>>, vector<1x8x32xf32>
    %36 = vector.shape_cast %35 : vector<1x8x32xf32> to vector<8x32xf32>
    %37 = vector.shape_cast %34 : vector<8x32xf32> to vector<1x8x32xf32>
    tpu.vector_store %arg6[%c0_13, %c0_14, %c0_15], %37 {strides = array<i32>} : memref<1x8x32xf32, #tpu.memory_space<vmem>>, vector<1x8x32xf32>,
    return
  }
  func.func @transform_0(%arg0: i32, %arg1: i32) -> (i32, i32, i32) {
    %c0_i32 = arith.constant 0 : i32
    %c0_i32_0 = arith.constant 0 : i32
    %c0_i32_1 = arith.constant 0 : i32
    return %arg0, %c0_i32, %c0_i32_0 : i32, i32, i32
  }
  func.func @transform_1(%arg0: i32, %arg1: i32) -> (i32, i32) {
    %c0_i32 = arith.constant 0 : i32
    %c0_i32_0 = arith.constant 0 : i32
    %c0_i32_1 = arith.constant 0 : i32
    return %c0_i32, %c0_i32_0 : i32, i32
  }
  func.func @transform_2(%arg0: i32, %arg1: i32) -> (i32, i32) {
    %c0_i32 = arith.constant 0 : i32
    %c0_i32_0 = arith.constant 0 : i32
    %c0_i32_1 = arith.constant 0 : i32
    return %c0_i32, %c0_i32_0 : i32, i32
  }
  func.func @transform_3(%arg0: i32, %arg1: i32) -> (i32, i32, i32) {
    %c0_i32 = arith.constant 0 : i32
    %c0_i32_0 = arith.constant 0 : i32
    %c0_i32_1 = arith.constant 0 : i32
    return %arg0, %c0_i32, %c0_i32_0 : i32, i32, i32
  }
  func.func @transform_4(%arg0: i32, %arg1: i32) -> (i32, i32, i32) {
    %c0_i32 = arith.constant 0 : i32
    %c0_i32_0 = arith.constant 0 : i32
    return %arg0, %arg1, %c0_i32 : i32, i32, i32
  }
}

module attributes {stable_mosaic.version = 11 : i64} {
  func.func @_attn_kernel(%arg0: i32, %arg1: i32, %arg2: memref<1x8x32xf32, #tpu.memory_space<vmem>>, %arg3: memref<32x96xf32, #tpu.memory_space<vmem>>, %arg4: memref<1x96xf32, #tpu.memory_space<vmem>>, %arg5: memref<1x1x8xf32, #tpu.memory_space<vmem>>, %arg6: memref<1x8x32xf32, #tpu.memory_space<vmem>>) attributes {dimension_semantics = [#tpu.dimension_semantics<parallel>, #tpu.dimension_semantics<arbitrary>], iteration_bounds = array<i64: 2, 1>, scalar_prefetch = 0 : i64, scratch_operands = 0 : i64, tpu.core_type = #tpu.core_type<tc>, window_params = [{transform_indices = @transform_0, window_bounds = array<i64: 1, 8, 32>}, {pipeline_mode = #tpu.pipeline_mode<synchronous>, transform_indices = @transform_1, window_bounds = array<i64: 32, 96>}, {pipeline_mode = #tpu.pipeline_mode<synchronous>, transform_indices = @transform_2, window_bounds = array<i64: 1, 96>}, {transform_indices = @transform_3, window_bounds = array<i64: 1, 1, 8>}, {transform_indices = @transform_4, window_bounds = array<i64: 1, 8, 32>}]} {
    %c0 = arith.constant 0 : index
    %c0_0 = arith.constant 0 : index
    %c0_1 = arith.constant 0 : index
    %0 = vector.load %arg5[%c0, %c0_0, %c0_1] : memref<1x1x8xf32, #tpu.memory_space<vmem>>, vector<1x1x8xf32>
    %1 = vector.shape_cast %0 : vector<1x1x8xf32> to vector<1x8xf32>
    %c0_2 = arith.constant 0 : index
    %c0_3 = arith.constant 0 : index
    %c0_4 = arith.constant 0 : index
    %2 = vector.load %arg2[%c0_2, %c0_3, %c0_4] : memref<1x8x32xf32, #tpu.memory_space<vmem>>, vector<1x8x32xf32>
    %3 = vector.shape_cast %2 : vector<1x8x32xf32> to vector<8x32xf32>
    %c0_5 = arith.constant 0 : index
    %c0_6 = arith.constant 0 : index
    %4 = vector.load %arg3[%c0_5, %c0_6] : memref<32x96xf32, #tpu.memory_space<vmem>>, vector<32x96xf32>
    %cst = arith.constant dense<0.000000e+00> : vector<8x96xf32>
    %5 = tpu.matmul %3, %4, %cst {dimension_numbers = #tpu.dot_dimension_numbers<[1], [0], [0], [1], [0, 0, 1, 1], [], []>} : vector<8x32xf32>, vector<32x96xf32>, vector<8x96xf32> -> vector<8x96xf32>
    %c0_7 = arith.constant 0 : index
    %c0_8 = arith.constant 0 : index
    %6 = vector.load %arg4[%c0_7, %c0_8] : memref<1x96xf32, #tpu.memory_space<vmem>>, vector<1x96xf32>
    %7 = vector.broadcast %6 : vector<1x96xf32> to vector<8x96xf32>
    %8 = arith.addf %5, %7 : vector<8x96xf32>
    %9 = vector.extract_strided_slice %8 {offsets = [0, 0], sizes = [8, 32], strides = [1, 1]} : vector<8x96xf32> to vector<8x32xf32>
    %10 = vector.extract_strided_slice %8 {offsets = [0, 32], sizes = [8, 32], strides = [1, 1]} : vector<8x96xf32> to vector<8x32xf32>
    %11 = vector.extract_strided_slice %8 {offsets = [0, 64], sizes = [8, 32], strides = [1, 1]} : vector<8x96xf32> to vector<8x32xf32>
    %12 = vector.shape_cast %9 : vector<8x32xf32> to vector<8x4x8xf32>
    %13 = tpu.transpose %12, [1, 0, 2] : vector<8x4x8xf32> -> vector<4x8x8xf32>
    %14 = vector.shape_cast %10 : vector<8x32xf32> to vector<8x4x8xf32>
    %15 = tpu.transpose %14, [1, 0, 2] : vector<8x4x8xf32> -> vector<4x8x8xf32>
    %16 = vector.shape_cast %11 : vector<8x32xf32> to vector<8x4x8xf32>
    %17 = tpu.transpose %16, [1, 0, 2] : vector<8x4x8xf32> -> vector<4x8x8xf32>
    "tpu.trace_start"() <{level = 10 : i32, message = "hqd,hkd->hqk"}> : () -> ()
    %cst_9 = arith.constant dense<0.000000e+00> : vector<4x8x8xf32>
    %18 = tpu.matmul %13, %15, %cst_9 {dimension_numbers = #tpu.dot_dimension_numbers<[2], [2], [1], [1], [0, 0, 0, 1, 1, 1], [0], [0]>} : vector<4x8x8xf32>, vector<4x8x8xf32>, vector<4x8x8xf32> -> vector<4x8x8xf32>
    "tpu.trace_stop"() : () -> ()
    %19 = vector.shape_cast %1 : vector<1x8xf32> to vector<1x1x8xf32>
    %20 = vector.broadcast %19 : vector<1x1x8xf32> to vector<4x8x8xf32>
    %21 = arith.addf %18, %20 : vector<4x8x8xf32>
    %cst_10 = arith.constant dense<0xFF800000> : vector<4x8xf32>
    %22 = vector.multi_reduction <maximumf>, %21, %cst_10 [2] : vector<4x8x8xf32> to vector<4x8xf32>
    %23 = vector.shape_cast %22 : vector<4x8xf32> to vector<4x8x1xf32>
    %24 = vector.broadcast %23 : vector<4x8x1xf32> to vector<4x8x8xf32>
    %25 = arith.subf %21, %24 : vector<4x8x8xf32>
    %26 = math.exp %25 : vector<4x8x8xf32>
    %cst_11 = arith.constant dense<0.000000e+00> : vector<4x8xf32>
    %27 = vector.multi_reduction <add>, %26, %cst_11 [2] : vector<4x8x8xf32> to vector<4x8xf32>
    %28 = vector.shape_cast %27 : vector<4x8xf32> to vector<4x8x1xf32>
    %29 = tpu.reciprocal %28 {approx = true} : vector<4x8x1xf32> -> vector<4x8x1xf32>
    %30 = vector.broadcast %29 : vector<4x8x1xf32> to vector<4x8x8xf32>
    %31 = arith.mulf %26, %30 : vector<4x8x8xf32>
    "tpu.trace_start"() <{level = 10 : i32, message = "hqk,hkd->hqd"}> : () -> ()
    %cst_12 = arith.constant dense<0.000000e+00> : vector<4x8x8xf32>
    %32 = tpu.matmul %31, %17, %cst_12 {dimension_numbers = #tpu.dot_dimension_numbers<[2], [1], [1], [2], [0, 0, 0, 1, 1, 2], [0], [0]>} : vector<4x8x8xf32>, vector<4x8x8xf32>, vector<4x8x8xf32> -> vector<4x8x8xf32>
    "tpu.trace_stop"() : () -> ()
    %33 = tpu.transpose %32, [1, 0, 2] : vector<4x8x8xf32> -> vector<8x4x8xf32>
    %34 = vector.shape_cast %33 : vector<8x4x8xf32> to vector<8x32xf32>
    %c0_13 = arith.constant 0 : index
    %c0_14 = arith.constant 0 : index
    %c0_15 = arith.constant 0 : index
    %35 = vector.load %arg6[%c0_13, %c0_14, %c0_15] : memref<1x8x32xf32, #tpu.memory_space<vmem>>, vector<1x8x32xf32>
    %36 = vector.shape_cast %35 : vector<1x8x32xf32> to vector<8x32xf32>
    %37 = vector.shape_cast %34 : vector<8x32xf32> to vector<1x8x32xf32>
    tpu.vector_store %arg6[%c0_13, %c0_14, %c0_15], %37 {strides = array<i32>} : memref<1x8x32xf32, #tpu.memory_space<vmem>>, vector<1x8x32xf32>,
    return
  }
  func.func @transform_0(%arg0: i32, %arg1: i32) -> (i32, i32, i32) {
    %c0_i32 = arith.constant 0 : i32
    %c0_i32_0 = arith.constant 0 : i32
    %c0_i32_1 = arith.constant 0 : i32
    return %arg0, %c0_i32, %c0_i32_0 : i32, i32, i32
  }
  func.func @transform_1(%arg0: i32, %arg1: i32) -> (i32, i32) {
    %c0_i32 = arith.constant 0 : i32
    %c0_i32_0 = arith.constant 0 : i32
    %c0_i32_1 = arith.constant 0 : i32
    return %c0_i32, %c0_i32_0 : i32, i32
  }
  func.func @transform_2(%arg0: i32, %arg1: i32) -> (i32, i32) {
    %c0_i32 = arith.constant 0 : i32
    %c0_i32_0 = arith.constant 0 : i32
    %c0_i32_1 = arith.constant 0 : i32
    return %c0_i32, %c0_i32_0 : i32, i32
  }
  func.func @transform_3(%arg0: i32, %arg1: i32) -> (i32, i32, i32) {
    %c0_i32 = arith.constant 0 : i32
    %c0_i32_0 = arith.constant 0 : i32
    %c0_i32_1 = arith.constant 0 : i32
    return %arg0, %c0_i32, %c0_i32_0 : i32, i32, i32
  }
  func.func @transform_4(%arg0: i32, %arg1: i32) -> (i32, i32, i32) {
    %c0_i32 = arith.constant 0 : i32
    %c0_i32_0 = arith.constant 0 : i32
    return %arg0, %arg1, %c0_i32 : i32, i32, i32
  }
}

</mosaic_0001>

<llo_original>
// kernel: tpu_custom_call.1
$region0: #{tpu_custom_call.1}
  #allocation0 [shape = 'u32[]', space=smem, size = 0x4, offset = 0x4, fixed_abs, tag = 'smem constant byte address 0x4 - core index']
  #allocation1 [shape = 'u32[144,128]{1,0:T(1,128)}', space=vmem, size = 0x12000, scoped, tag = 'internal scratch']
  %s0 = inlined_call_operand.hbm [shape: f32[2,8,32], index: 0, kind: input, shape index: {}]
  %s1 = inlined_call_operand.hbm [shape: f32[32,96], index: 1, kind: input, shape index: {}]
  %s2 = inlined_call_operand.vmem [shape: f32[1,96], index: 2, kind: input, shape index: {}]
  %s3 = inlined_call_operand.vmem [shape: f32[2,1,8], index: 3, kind: input, shape index: {}]
  %s4 = inlined_call_operand.hbm [shape: f32[2,8,32], index: 4, kind: output, shape index: {}]
  %s5 = sld [smem:[#allocation0]]
  $region57: #{tpu_custom_call.1} parent=0
    _
  %s7 = ssub.s32 1, %s5
  %s8 = scalar_select 0, %s7, %s5
  $region1: #{tpu_custom_call.1} parent=0
    #allocation2 [shape = 'u8[8192]{0}', space=vmem, size = 0x2000, scoped, tag = 'input window, operand 0']
    #allocation3 [shape = 's32[2]{0}', space=sflag, size = 0x8, scoped, tag = 'scoped memory for tpu_custom_call.1']
    #allocation4 [shape = 's32[2]{0}', space=sflag, size = 0x8, scoped, tag = 'scoped memory for tpu_custom_call.1']
    #allocation5 [shape = 'u8[16384]{0}', space=vmem, size = 0x4000, scoped, tag = 'input window, operand 1, single buffered']
    #allocation6 [shape = 's32[1]{0}', space=sflag, size = 0x4, scoped, tag = 'scoped memory for tpu_custom_call.1']
    #allocation7 [shape = 'u8[8192]{0}', space=vmem, size = 0x2000, scoped, tag = 'output window, operand 0']
    %9 = vsyncpa [#allocation3], 0
    %s10 = scalar_lea.sflag [#allocation3], 1
    %11 = vsyncpa %s10, 0
    %12 = vsyncpa [#allocation6], 0
    %13 = vsyncpa [#allocation4], 0
    %s14 = scalar_lea.sflag [#allocation4], 1
    %15 = vsyncpa %s14, 0
    loop: start=0, step=1, limit=4
    $region2: #{tpu_custom_call.1} parent=1 // loop_pre_header
      _
    $region3: #{tpu_custom_call.1} parent=1 // loop_header
      %s17 = sphi 0, %s21
      %p18 = scmp.ge.s32.totalorder %s17, 4
      %s24 = sphi 0, %s36
      %s25 = sphi 0, %s32
      %s26 = sphi 0, %s24
      %s27 = sphi 0, %s25
      %s28 = sphi 0, %s26
      %s29 = sphi 0, %s27
      %s39 = sphi 0, %s41
      %s42 = sphi 0, %s39
      %s43 = sphi 0, %s42
      %s59 = sphi 0, %s43
      %s63 = sphi 0, %s63
      %s65 = sphi 0, %s63
      %s66 = sphi 0, %s65
      %s80 = sphi 0, %s66
      %s84 = sphi 0, %s84
      %s86 = sphi 0, %s84
      %s87 = sphi 0, %s86
      %s101 = sphi 0, %s87
      %s107 = sphi 0, %s109
      %s110 = sphi 0, %s107
      %s111 = sphi 0, %s110
      %s127 = sphi 0, %s111
      %s135 = sphi 0, %s137
      %s138 = sphi 0, %s135
      %s139 = sphi 0, %s138
      %s155 = sphi 0, %s139
    $region4: #{tpu_custom_call.1} parent=1 // loop_header_branch
      %20 = sbr.rel (%p18) target = $region8
    $region5: #{tpu_custom_call.1} parent=1 // loop_body
      %s22 = ssub.s32 %s17, 1
      %s23 = ssub.s32 %s17, 2
      %s30 = sadd.s32 1, %s25
      %p31 = scmp.ge.s32.totalorder %s30, 1
      %s32 = scalar_select %p31, 0, %s30
      %s33 = sadd.s32 1, %s24
      %s34 = scalar_select %p31, %s33, %s24
      %p35 = scmp.ge.s32.totalorder %s34, 2
      %s36 = scalar_select %p35, 0, %s34
      %s37 = ssub.s32 %s24, %s36
      %p38 = scmp.eq.s32.totalorder %s37, 0
      %s40 = sadd.s32 %s39, 1
      %s41 = scalar_select %p38, %s39, %s40
      %p44 = pneg %p38
      %p45 = scmp.eq.s32.totalorder %s17, 1
      %p46 = por %p44, %p45
      %p47 = scmp.ne.s32.totalorder %s39, %s42
      %p48 = scmp.eq.s32.totalorder %s17, 0
      %p49 = por %p47, %p48
      %p50 = scmp.ne.s32.totalorder %s39, %s42
      %p51 = scmp.eq.s32.totalorder %s22, 1
      %p52 = por %p50, %p51
      %p53 = scmp.ne.s32.totalorder %s42, %s43
      %p54 = scmp.eq.s32.totalorder %s22, 0
      %p55 = por %p53, %p54
      %p56 = scmp.ne.s32.totalorder %s42, %s43
      %p57 = scmp.eq.s32.totalorder %s23, 1
      %p58 = por %p56, %p57
      %p60 = scmp.ne.s32.totalorder %s43, %s59
      %p61 = scmp.eq.s32.totalorder %s23, 0
      %p62 = por %p60, %p61
      %s64 = sadd.s32 %s63, 1
      %p67 = scmp.eq.s32.totalorder %s17, 1
      %p68 = scmp.ne.s32.totalorder %s63, %s65
      %p69 = scmp.eq.s32.totalorder %s17, 0
      %p70 = por %p68, %p69
      %p71 = scmp.ne.s32.totalorder %s63, %s65
      %p72 = scmp.eq.s32.totalorder %s22, 1
      %p73 = por %p71, %p72
      %p74 = scmp.ne.s32.totalorder %s65, %s66
      %p75 = scmp.eq.s32.totalorder %s22, 0
      %p76 = por %p74, %p75
      %p77 = scmp.ne.s32.totalorder %s65, %s66
      %p78 = scmp.eq.s32.totalorder %s23, 1
      %p79 = por %p77, %p78
      %p81 = scmp.ne.s32.totalorder %s66, %s80
      %p82 = scmp.eq.s32.totalorder %s23, 0
      %p83 = por %p81, %p82
      %s85 = sadd.s32 %s84, 1
      %p88 = scmp.eq.s32.totalorder %s17, 1
      %p89 = scmp.ne.s32.totalorder %s84, %s86
      %p90 = scmp.eq.s32.totalorder %s17, 0
      %p91 = por %p89, %p90
      %p92 = scmp.ne.s32.totalorder %s84, %s86
      %p93 = scmp.eq.s32.totalorder %s22, 1
      %p94 = por %p92, %p93
      %p95 = scmp.ne.s32.totalorder %s86, %s87
      %p96 = scmp.eq.s32.totalorder %s22, 0
      %p97 = por %p95, %p96
      %p98 = scmp.ne.s32.totalorder %s86, %s87
      %p99 = scmp.eq.s32.totalorder %s23, 1
      %p100 = por %p98, %p99
      %p102 = scmp.ne.s32.totalorder %s87, %s101
      %p103 = scmp.eq.s32.totalorder %s23, 0
      %p104 = por %p102, %p103
      %s105 = ssub.s32 %s24, %s36
      %p106 = scmp.eq.s32.totalorder %s105, 0
      %s108 = sadd.s32 %s107, 1
      %s109 = scalar_select %p106, %s107, %s108
      %p112 = pneg %p106
      %p113 = scmp.eq.s32.totalorder %s17, 1
      %p114 = por %p112, %p113
      %p115 = scmp.ne.s32.totalorder %s107, %s110
      %p116 = scmp.eq.s32.totalorder %s17, 0
      %p117 = por %p115, %p116
      %p118 = scmp.ne.s32.totalorder %s107, %s110
      %p119 = scmp.eq.s32.totalorder %s22, 1
      %p120 = por %p118, %p119
      %p121 = scmp.ne.s32.totalorder %s110, %s111
      %p122 = scmp.eq.s32.totalorder %s22, 0
      %p123 = por %p121, %p122
      %p124 = scmp.ne.s32.totalorder %s110, %s111
      %p125 = scmp.eq.s32.totalorder %s23, 1
      %p126 = por %p124, %p125
      %p128 = scmp.ne.s32.totalorder %s111, %s127
      %p129 = scmp.eq.s32.totalorder %s23, 0
      %p130 = por %p128, %p129
      %s131 = ssub.s32 %s24, %s36
      %s132 = ssub.s32 %s25, %s32
      %s133 = sor.u32 %s131, %s132
      %p134 = scmp.eq.s32.totalorder %s133, 0
      %s136 = sadd.s32 %s135, 1
      %s137 = scalar_select %p134, %s135, %s136
      %p140 = pneg %p134
      %p141 = scmp.eq.s32.totalorder %s17, 1
      %p142 = por %p140, %p141
      %p143 = scmp.ne.s32.totalorder %s135, %s138
      %p144 = scmp.eq.s32.totalorder %s17, 0
      %p145 = por %p143, %p144
      %p146 = scmp.ne.s32.totalorder %s135, %s138
      %p147 = scmp.eq.s32.totalorder %s22, 1
      %p148 = por %p146, %p147
      %p149 = scmp.ne.s32.totalorder %s138, %s139
      %p150 = scmp.eq.s32.totalorder %s22, 0
      %p151 = por %p149, %p150
      %p152 = scmp.ne.s32.totalorder %s138, %s139
      %p153 = scmp.eq.s32.totalorder %s23, 1
      %p154 = por %p152, %p153
      %p156 = scmp.ne.s32.totalorder %s139, %s155
      %p157 = scmp.eq.s32.totalorder %s23, 0
      %p158 = por %p156, %p157
      %p159 = scmp.le.s32.totalorder 1, %s17
      %p160 = scmp.lt.s32.totalorder %s17, 3
      %p161 = pnand %p159, %p160
      %p162 = pneg %p161
      // Predicated region
      $region9: #{tpu_custom_call.1} parent=5 // pred_check
        _
      $region10: #{tpu_custom_call.1} parent=5 // pred_check_branch
        %164 = sbr.rel (%p161) target = $region12
      $region11: #{tpu_custom_call.1} parent=5 // pred_region
        %s165 = ssub.s32 %s17, 1
        // Predicated region
        $region13: #{tpu_custom_call.1} parent=11 // pred_check
          %p166 = pneg %p76
        $region14: #{tpu_custom_call.1} parent=11 // pred_check_branch
          %168 = sbr.rel (%p166) target = $region16
        $region15: #{tpu_custom_call.1} parent=11 // pred_region
          %s170 = ssub.s32 512, 512
          %171 = vsyncadd [#allocation6], %s170
          %s172 = sshll.u32 [#allocation5], 4
          %s173 = int_to_ptr.vmem [resolvable:$true] %s172
          %178 = dma.hbm_to_vmem [thread:$0]  %s1, 512, %s173, [#allocation6], 128, 128, 8
        $region16: #{tpu_custom_call.1} parent=11 // pred_fallthru
          _
        // Predicated region
        $region17: #{tpu_custom_call.1} parent=11 // pred_check
          %p179 = pneg %p97
        $region18: #{tpu_custom_call.1} parent=11 // pred_check_branch
          %181 = sbr.rel (%p179) target = $region20
        $region19: #{tpu_custom_call.1} parent=11 // pred_region
          _
        $region20: #{tpu_custom_call.1} parent=11 // pred_fallthru
          _
      $region12: #{tpu_custom_call.1} parent=5 // pred_fallthru
        _
      %p182 = scmp.lt.s32.totalorder %s17, 2
      // Predicated region
      $region21: #{tpu_custom_call.1} parent=5 // pred_check
        %p183 = pneg %p182
      $region22: #{tpu_custom_call.1} parent=5 // pred_check_branch
        %185 = sbr.rel (%p183) target = $region24
      $region23: #{tpu_custom_call.1} parent=5 // pred_region
        // Predicated region
        $region25: #{tpu_custom_call.1} parent=23 // pred_check
          %p186 = pneg %p49
        $region26: #{tpu_custom_call.1} parent=23 // pred_check_branch
          %188 = sbr.rel (%p186) target = $region28
        $region27: #{tpu_custom_call.1} parent=23 // pred_region
          %s189 = sand.u32 %s39, 1
          %s190 = scalar_lea.sflag [#allocation3], %s189
          %s191 = sand.u32 %s39, 1
          %s192 = smul.addr %s191, 8
          %s193 = scalar_lea.vmem [#allocation2], %s192
          %s195 = ssub.s32 128, 128
          %196 = vsyncadd %s190, %s195
          %s197 = smul.addr %s24, 128
          %s198 = scalar_lea.hbm %s0, %s197
          %s200 = sshll.u32 %s193, 4
          %s201 = int_to_ptr.vmem [resolvable:$true] %s200
          %203 = dma.hbm_to_vmem [thread:$0]  %s198, 128, %s201, %s190
        $region28: #{tpu_custom_call.1} parent=23 // pred_fallthru
          _
        // Predicated region
        $region29: #{tpu_custom_call.1} parent=23 // pred_check
          %p204 = pneg %p117
        $region30: #{tpu_custom_call.1} parent=23 // pred_check_branch
          %206 = sbr.rel (%p204) target = $region32
        $region31: #{tpu_custom_call.1} parent=23 // pred_region
          %p207 = scmp.lt.s32.totalorder %s24, 1
          %s208 = scalar_select %p207, %s24, 1
          %s209 = scalar_lea.vmem %s3, %s208
        $region32: #{tpu_custom_call.1} parent=23 // pred_fallthru
          _
      $region24: #{tpu_custom_call.1} parent=5 // pred_fallthru
        _
      %p210 = scmp.le.s32.totalorder 1, %s17
      %p211 = scmp.lt.s32.totalorder %s17, 3
      %p212 = pnand %p210, %p211
      %p213 = pneg %p212
      // Predicated region
      $region33: #{tpu_custom_call.1} parent=5 // pred_check
        _
      $region34: #{tpu_custom_call.1} parent=5 // pred_check_branch
        %215 = sbr.rel (%p212) target = $region36
      $region35: #{tpu_custom_call.1} parent=5 // pred_region
        %s216 = ssub.s32 %s17, 1
        %s217 = sand.u32 %s42, 1
        %s218 = scalar_lea.sflag [#allocation3], %s217
        %s219 = sand.u32 %s42, 1
        %s220 = smul.addr %s219, 8
        %s221 = scalar_lea.vmem [#allocation2], %s220
        // Predicated region
        $region37: #{tpu_custom_call.1} parent=35 // pred_check
          %p222 = pneg %p55
        $region38: #{tpu_custom_call.1} parent=35 // pred_check_branch
          %224 = sbr.rel (%p222) target = $region40
        $region39: #{tpu_custom_call.1} parent=35 // pred_region
          %225 = dma.done %s218, 128
        $region40: #{tpu_custom_call.1} parent=35 // pred_fallthru
          _
        // Predicated region
        $region41: #{tpu_custom_call.1} parent=35 // pred_check
          %p226 = pneg %p76
        $region42: #{tpu_custom_call.1} parent=35 // pred_check_branch
          %228 = sbr.rel (%p226) target = $region44
        $region43: #{tpu_custom_call.1} parent=35 // pred_region
          %229 = dma.done [#allocation6], 512
        $region44: #{tpu_custom_call.1} parent=35 // pred_fallthru
          _
        %s230 = sand.u32 %s42, 1
        %s231 = scalar_lea.sflag [#allocation3], %s230
        %s232 = sand.u32 %s42, 1
        %s233 = smul.addr %s232, 8
        %s234 = scalar_lea.vmem [#allocation2], %s233
        %p235 = pneg %p55
        %p236 = pneg %p52
        %p237 = pneg %p76
        %p238 = pneg %p73
        %p239 = pneg %p97
        %p240 = pneg %p94
        %p241 = scmp.lt.s32.totalorder %s26, 1
        %s242 = scalar_select %p241, %s26, 1
        %s243 = scalar_lea.vmem %s3, %s242
        %p244 = pneg %p123
        %p245 = pneg %p120
        %p246 = pneg %p151
        %p247 = pneg %p148
        %s248 = sand.u32 %s138, 1
        %s249 = scalar_lea.sflag [#allocation4], %s248
        %s250 = sand.u32 %s138, 1
        %s251 = smul.addr %s250, 8
        %s252 = scalar_lea.vmem [#allocation7], %s251
        %p253 = scmp.lt.s32.totalorder %s26, 1
        %s254 = scalar_select %p253, %s26, 1
        %s255 = scalar_lea.vmem %s3, %s254
        %v256 = vld [vmem:[%s255] sm:$0x1]
        %v257 = vld [vmem:[%s221] sm:$0xff]
        %v258 = vld [vmem:[#allocation5] sm:$0xff]
        %v259 = vld [vmem:[#allocation5 + $0x8] sm:$0xff]
        %v260 = vld [vmem:[#allocation5 + $0x10] sm:$0xff]
        %v261 = vld [vmem:[#allocation5 + $0x18] sm:$0xff]
        %v262 = vld [vmem:[%s2] sm:$0x1]
        %v264 = vlaneseq
        %v265 = vshrl.u32 %v264, 7
        %v266 = vsub.s32 0, %v265
        %v267 = vrot.slane %v262, %v266
        %vm269 = vcmask 261120
        %v271 = vsel %vm269, %v257, 0
        %273 = vmatprep.subr.mxu0 0.0
        %274 = vmatpush1.msra.mxu0 0.0
        %275 = vmatprep.subr.mxu0 0.0
        %276 = vmatpush1.msra.mxu0 0.0
        %277 = vmatprep.subr.mxu0 0.0
        %278 = vmatpush1.msra.mxu0 0.0
        %279 = vmatprep.subr.mxu0 0.0
        %280 = vmatpush1.msra.mxu0 0.0
        %281 = vmatprep.subr.mxu0 0.0
        %282 = vmatpush1.msra.mxu0 0.0
        %283 = vmatprep.subr.mxu0 0.0
        %284 = vmatpush1.msra.mxu0 0.0
        %285 = vmatprep.subr.mxu0 0.0
        %286 = vmatpush1.msra.mxu0 0.0
        %287 = vmatprep.subr.mxu0 0.0
        %288 = vmatpush1.msra.mxu0 0.0
        %289 = vmatprep.subr.mxu0 0.0
        %290 = vmatpush1.msra.mxu0 0.0
        %291 = vmatprep.subr.mxu0 0.0
        %292 = vmatpush1.msra.mxu0 0.0
        %293 = vmatprep.subr.mxu0 0.0
        %294 = vmatpush1.msra.mxu0 0.0
        %295 = vmatprep.subr.mxu0 0.0
        %296 = vmatpush1.msra.mxu0 0.0
        %297 = vmatprep.subr.mxu0 0.0
        %298 = vmatpush1.msra.mxu0 %v261
        %299 = vmatprep.subr.mxu0 0.0
        %300 = vmatpush1.msra.mxu0 %v260
        %301 = vmatprep.subr.mxu0 0.0
        %302 = vmatpush1.msra.mxu0 %v259
        %303 = vmatprep.subr.mxu0 0.0
        %304 = vmatpush1.msra.mxu0 %v258
        %305 = vmatprep.subr.mxu0 0.0
        %306 = vmatpush2.msra.mxu0 0.0
        %307 = vmatprep.subr.mxu0 0.0
        %308 = vmatpush2.msra.mxu0 0.0
        %309 = vmatprep.subr.mxu0 0.0
        %310 = vmatpush2.msra.mxu0 0.0
        %311 = vmatprep.subr.mxu0 0.0
        %312 = vmatpush2.msra.mxu0 0.0
        %313 = vmatprep.subr.mxu0 0.0
        %314 = vmatpush2.msra.mxu0 0.0
        %315 = vmatprep.subr.mxu0 0.0
        %316 = vmatpush2.msra.mxu0 0.0
        %317 = vmatprep.subr.mxu0 0.0
        %318 = vmatpush2.msra.mxu0 0.0
        %319 = vmatprep.subr.mxu0 0.0
        %320 = vmatpush2.msra.mxu0 0.0
        %321 = vmatprep.subr.mxu0 0.0
        %322 = vmatpush2.msra.mxu0 0.0
        %323 = vmatprep.subr.mxu0 0.0
        %324 = vmatpush2.msra.mxu0 0.0
        %325 = vmatprep.subr.mxu0 0.0
        %326 = vmatpush2.msra.mxu0 0.0
        %327 = vmatprep.subr.mxu0 0.0
        %328 = vmatpush2.msra.mxu0 0.0
        %329 = vmatprep.subr.mxu0 0.0
        %330 = vmatpush2.msra.mxu0 0.0
        %331 = vmatprep.subr.mxu0 0.0
        %332 = vmatpush2.msra.mxu0 0.0
        %333 = vmatprep.subr.mxu0 0.0
        %334 = vmatpush2.msra.mxu0 0.0
        %335 = vmatprep.subr.mxu0 0.0
        %336 = vmatpush2.msra.mxu0 0.0
        %337 = vmatprep.mubr.f32.mxu0 0.0
        %338 = vmatmul.mubr.f32.gmra.mxu0 %v271
        %v339 = vpop.f32.mrf.mxu0
        %v340 = vadd.f32 %v267, %v339
        %v341 = vpop.f32.mrf.mxu0
        %342 = vdwg.mxu0
        %344 = vrot.lane.b32.xlu0 %v340, 120
        %v345 = vpop.permute.xlu0 %344
        %347 = vrot.lane.b32.xlu0 %v340, 112
        %v348 = vpop.permute.xlu0 %347
        %350 = vrot.lane.b32.xlu0 %v340, 104
        %v351 = vpop.permute.xlu0 %350
        %v353 = vcombine.low %v340, %v348
        %v354 = vcombine.high %v340, %v348
        %v356 = vunpack.c.l.s4 1983009808
        %v357 = vunpack.c.0.s8 %v356
        %v358 = vlaneseq
        %v359 = vshrl.u32 %v358, 7
        %v360 = vsub.s32 %v357, %v359
        %v361 = vrot.slane %v353, %v360
        %v363 = vunpack.c.l.s4 1983009808
        %v364 = vunpack.c.0.s8 %v363
        %v365 = vlaneseq
        %v366 = vshrl.u32 %v365, 7
        %v367 = vsub.s32 %v364, %v366
        %v368 = vrot.slane %v354, %v367
        %v369 = vcombine.low %v345, %v351
        %v370 = vcombine.high %v345, %v351
        %v372 = vunpack.c.l.s4 1983009808
        %v373 = vunpack.c.0.s8 %v372
        %v374 = vlaneseq
        %v375 = vshrl.u32 %v374, 7
        %v376 = vsub.s32 %v373, %v375
        %v377 = vrot.slane %v369, %v376
        %v379 = vunpack.c.l.s4 1983009808
        %v380 = vunpack.c.0.s8 %v379
        %v381 = vlaneseq
        %v382 = vshrl.u32 %v381, 7
        %v383 = vsub.s32 %v380, %v382
        %v384 = vrot.slane %v370, %v383
        %v385 = vcombine.low %v361, %v377
        %v386 = vcombine.high %v361, %v377
        %v388 = vunpack.c.l.s4 1934713408
        %v389 = vunpack.c.0.s8 %v388
        %v390 = vlaneseq
        %v391 = vshrl.u32 %v390, 7
        %v392 = vsub.s32 %v389, %v391
        %v393 = vrot.slane %v385, %v392
        %v395 = vunpack.c.l.s4 1934713408
        %v396 = vunpack.c.0.s8 %v395
        %v397 = vlaneseq
        %v398 = vshrl.u32 %v397, 7
        %v399 = vsub.s32 %v396, %v398
        %v400 = vrot.slane %v386, %v399
        %v401 = vcombine.low %v368, %v384
        %v402 = vcombine.high %v368, %v384
        %v404 = vunpack.c.l.s4 1934713408
        %v405 = vunpack.c.0.s8 %v404
        %v406 = vlaneseq
        %v407 = vshrl.u32 %v406, 7
        %v408 = vsub.s32 %v405, %v407
        %v409 = vrot.slane %v401, %v408
        %v411 = vunpack.c.l.s4 1934713408
        %v412 = vunpack.c.0.s8 %v411
        %v413 = vlaneseq
        %v414 = vshrl.u32 %v413, 7
        %v415 = vsub.s32 %v412, %v414
        %v416 = vrot.slane %v402, %v415
        %v417 = vcombine.high %v393, 0.0
        %v418 = vcombine.high %v400, 0.0
        %v419 = vcombine.high %v409, 0.0
        %v420 = vcombine.high %v416, 0.0
        %v421 = vcombine.low %v393, %v400
        %v423 = vunpack.c.l.s4 1983009808
        %v424 = vunpack.c.0.s8 %v423
        %v425 = vlaneseq
        %v426 = vshrl.u32 %v425, 7
        %v427 = vsub.s32 %v424, %v426
        %v428 = vrot.slane %v421, %v427
        %v429 = vcombine.low %v417, %v418
        %v431 = vunpack.c.l.s4 1983009808
        %v432 = vunpack.c.0.s8 %v431
        %v433 = vlaneseq
        %v434 = vshrl.u32 %v433, 7
        %v435 = vsub.s32 %v432, %v434
        %v436 = vrot.slane %v429, %v435
        %v437 = vcombine.low %v409, %v416
        %v439 = vunpack.c.l.s4 1983009808
        %v440 = vunpack.c.0.s8 %v439
        %v441 = vlaneseq
        %v442 = vshrl.u32 %v441, 7
        %v443 = vsub.s32 %v440, %v442
        %v444 = vrot.slane %v437, %v443
        %v445 = vcombine.low %v419, %v420
        %v447 = vunpack.c.l.s4 1983009808
        %v448 = vunpack.c.0.s8 %v447
        %v449 = vlaneseq
        %v450 = vshrl.u32 %v449, 7
        %v451 = vsub.s32 %v448, %v450
        %v452 = vrot.slane %v445, %v451
        %v453 = vcombine.low %v428, %v436
        %v454 = vcombine.high %v428, %v436
        %v456 = vunpack.c.l.s4 1934713408
        %v457 = vunpack.c.0.s8 %v456
        %v458 = vlaneseq
        %v459 = vshrl.u32 %v458, 7
        %v460 = vsub.s32 %v457, %v459
        %v461 = vrot.slane %v453, %v460
        %v463 = vunpack.c.l.s4 1934713408
        %v464 = vunpack.c.0.s8 %v463
        %v465 = vlaneseq
        %v466 = vshrl.u32 %v465, 7
        %v467 = vsub.s32 %v464, %v466
        %v468 = vrot.slane %v454, %v467
        %v469 = vcombine.low %v444, %v452
        %v470 = vcombine.high %v444, %v452
        %v472 = vunpack.c.l.s4 1934713408
        %v473 = vunpack.c.0.s8 %v472
        %v474 = vlaneseq
        %v475 = vshrl.u32 %v474, 7
        %v476 = vsub.s32 %v473, %v475
        %v477 = vrot.slane %v469, %v476
        %v479 = vunpack.c.l.s4 1934713408
        %v480 = vunpack.c.0.s8 %v479
        %v481 = vlaneseq
        %v482 = vshrl.u32 %v481, 7
        %v483 = vsub.s32 %v480, %v482
        %v484 = vrot.slane %v470, %v483
        %v485 = vcombine.low %v461, %v477
        %v486 = vcombine.high %v461, %v477
        %v487 = vcombine.low %v468, %v484
        %v488 = vcombine.high %v468, %v484
        %489 = vrot.lane.b32.xlu0 %v340, 96
        %v490 = vpop.permute.xlu0 %489
        %491 = vrot.lane.b32.xlu0 %v345, 96
        %v492 = vpop.permute.xlu0 %491
        %493 = vrot.lane.b32.xlu0 %v348, 96
        %v494 = vpop.permute.xlu0 %493
        %495 = vrot.lane.b32.xlu0 %v351, 96
        %v496 = vpop.permute.xlu0 %495
        %v501 = vcombine.low %v490, %v494
        %v502 = vcombine.high %v490, %v494
        %v504 = vunpack.c.l.s4 1983009808
        %v505 = vunpack.c.0.s8 %v504
        %v506 = vlaneseq
        %v507 = vshrl.u32 %v506, 7
        %v508 = vsub.s32 %v505, %v507
        %v509 = vrot.slane %v501, %v508
        %v511 = vunpack.c.l.s4 1983009808
        %v512 = vunpack.c.0.s8 %v511
        %v513 = vlaneseq
        %v514 = vshrl.u32 %v513, 7
        %v515 = vsub.s32 %v512, %v514
        %v516 = vrot.slane %v502, %v515
        %v517 = vcombine.low %v492, %v496
        %v518 = vcombine.high %v492, %v496
        %v520 = vunpack.c.l.s4 1983009808
        %v521 = vunpack.c.0.s8 %v520
        %v522 = vlaneseq
        %v523 = vshrl.u32 %v522, 7
        %v524 = vsub.s32 %v521, %v523
        %v525 = vrot.slane %v517, %v524
        %v527 = vunpack.c.l.s4 1983009808
        %v528 = vunpack.c.0.s8 %v527
        %v529 = vlaneseq
        %v530 = vshrl.u32 %v529, 7
        %v531 = vsub.s32 %v528, %v530
        %v532 = vrot.slane %v518, %v531
        %v533 = vcombine.low %v509, %v525
        %v534 = vcombine.high %v509, %v525
        %v536 = vunpack.c.l.s4 1934713408
        %v537 = vunpack.c.0.s8 %v536
        %v538 = vlaneseq
        %v539 = vshrl.u32 %v538, 7
        %v540 = vsub.s32 %v537, %v539
        %v541 = vrot.slane %v533, %v540
        %v543 = vunpack.c.l.s4 1934713408
        %v544 = vunpack.c.0.s8 %v543
        %v545 = vlaneseq
        %v546 = vshrl.u32 %v545, 7
        %v547 = vsub.s32 %v544, %v546
        %v548 = vrot.slane %v534, %v547
        %v549 = vcombine.low %v516, %v532
        %v550 = vcombine.high %v516, %v532
        %v552 = vunpack.c.l.s4 1934713408
        %v553 = vunpack.c.0.s8 %v552
        %v554 = vlaneseq
        %v555 = vshrl.u32 %v554, 7
        %v556 = vsub.s32 %v553, %v555
        %v557 = vrot.slane %v549, %v556
        %v559 = vunpack.c.l.s4 1934713408
        %v560 = vunpack.c.0.s8 %v559
        %v561 = vlaneseq
        %v562 = vshrl.u32 %v561, 7
        %v563 = vsub.s32 %v560, %v562
        %v564 = vrot.slane %v550, %v563
        %v565 = vcombine.high %v541, 0.0
        %v566 = vcombine.high %v548, 0.0
        %v567 = vcombine.high %v557, 0.0
        %v568 = vcombine.high %v564, 0.0
        %v569 = vcombine.low %v541, %v548
        %v571 = vunpack.c.l.s4 1983009808
        %v572 = vunpack.c.0.s8 %v571
        %v573 = vlaneseq
        %v574 = vshrl.u32 %v573, 7
        %v575 = vsub.s32 %v572, %v574
        %v576 = vrot.slane %v569, %v575
        %v577 = vcombine.low %v565, %v566
        %v579 = vunpack.c.l.s4 1983009808
        %v580 = vunpack.c.0.s8 %v579
        %v581 = vlaneseq
        %v582 = vshrl.u32 %v581, 7
        %v583 = vsub.s32 %v580, %v582
        %v584 = vrot.slane %v577, %v583
        %v585 = vcombine.low %v557, %v564
        %v587 = vunpack.c.l.s4 1983009808
        %v588 = vunpack.c.0.s8 %v587
        %v589 = vlaneseq
        %v590 = vshrl.u32 %v589, 7
        %v591 = vsub.s32 %v588, %v590
        %v592 = vrot.slane %v585, %v591
        %v593 = vcombine.low %v567, %v568
        %v595 = vunpack.c.l.s4 1983009808
        %v596 = vunpack.c.0.s8 %v595
        %v597 = vlaneseq
        %v598 = vshrl.u32 %v597, 7
        %v599 = vsub.s32 %v596, %v598
        %v600 = vrot.slane %v593, %v599
        %v601 = vcombine.low %v576, %v584
        %v602 = vcombine.high %v576, %v584
        %v604 = vunpack.c.l.s4 1934713408
        %v605 = vunpack.c.0.s8 %v604
        %v606 = vlaneseq
        %v607 = vshrl.u32 %v606, 7
        %v608 = vsub.s32 %v605, %v607
        %v609 = vrot.slane %v601, %v608
        %v611 = vunpack.c.l.s4 1934713408
        %v612 = vunpack.c.0.s8 %v611
        %v613 = vlaneseq
        %v614 = vshrl.u32 %v613, 7
        %v615 = vsub.s32 %v612, %v614
        %v616 = vrot.slane %v602, %v615
        %v617 = vcombine.low %v592, %v600
        %v618 = vcombine.high %v592, %v600
        %v620 = vunpack.c.l.s4 1934713408
        %v621 = vunpack.c.0.s8 %v620
        %v622 = vlaneseq
        %v623 = vshrl.u32 %v622, 7
        %v624 = vsub.s32 %v621, %v623
        %v625 = vrot.slane %v617, %v624
        %v627 = vunpack.c.l.s4 1934713408
        %v628 = vunpack.c.0.s8 %v627
        %v629 = vlaneseq
        %v630 = vshrl.u32 %v629, 7
        %v631 = vsub.s32 %v628, %v630
        %v632 = vrot.slane %v618, %v631
        %v633 = vcombine.low %v609, %v625
        %v634 = vcombine.high %v609, %v625
        %v635 = vcombine.low %v616, %v632
        %v636 = vcombine.high %v616, %v632
        %637 = vrot.lane.b32.xlu0 %v340, 64
        %v638 = vpop.permute.xlu0 %637
        %639 = vrot.lane.b32.xlu0 %v345, 64
        %v640 = vpop.permute.xlu0 %639
        %641 = vrot.lane.b32.xlu0 %v348, 64
        %v642 = vpop.permute.xlu0 %641
        %643 = vrot.lane.b32.xlu0 %v351, 64
        %v644 = vpop.permute.xlu0 %643
        %v649 = vcombine.low %v638, %v642
        %v650 = vcombine.high %v638, %v642
        %v652 = vunpack.c.l.s4 1983009808
        %v653 = vunpack.c.0.s8 %v652
        %v654 = vlaneseq
        %v655 = vshrl.u32 %v654, 7
        %v656 = vsub.s32 %v653, %v655
        %v657 = vrot.slane %v649, %v656
        %v659 = vunpack.c.l.s4 1983009808
        %v660 = vunpack.c.0.s8 %v659
        %v661 = vlaneseq
        %v662 = vshrl.u32 %v661, 7
        %v663 = vsub.s32 %v660, %v662
        %v664 = vrot.slane %v650, %v663
        %v665 = vcombine.low %v640, %v644
        %v666 = vcombine.high %v640, %v644
        %v668 = vunpack.c.l.s4 1983009808
        %v669 = vunpack.c.0.s8 %v668
        %v670 = vlaneseq
        %v671 = vshrl.u32 %v670, 7
        %v672 = vsub.s32 %v669, %v671
        %v673 = vrot.slane %v665, %v672
        %v675 = vunpack.c.l.s4 1983009808
        %v676 = vunpack.c.0.s8 %v675
        %v677 = vlaneseq
        %v678 = vshrl.u32 %v677, 7
        %v679 = vsub.s32 %v676, %v678
        %v680 = vrot.slane %v666, %v679
        %v681 = vcombine.low %v657, %v673
        %v682 = vcombine.high %v657, %v673
        %v684 = vunpack.c.l.s4 1934713408
        %v685 = vunpack.c.0.s8 %v684
        %v686 = vlaneseq
        %v687 = vshrl.u32 %v686, 7
        %v688 = vsub.s32 %v685, %v687
        %v689 = vrot.slane %v681, %v688
        %v691 = vunpack.c.l.s4 1934713408
        %v692 = vunpack.c.0.s8 %v691
        %v693 = vlaneseq
        %v694 = vshrl.u32 %v693, 7
        %v695 = vsub.s32 %v692, %v694
        %v696 = vrot.slane %v682, %v695
        %v697 = vcombine.low %v664, %v680
        %v698 = vcombine.high %v664, %v680
        %v700 = vunpack.c.l.s4 1934713408
        %v701 = vunpack.c.0.s8 %v700
        %v702 = vlaneseq
        %v703 = vshrl.u32 %v702, 7
        %v704 = vsub.s32 %v701, %v703
        %v705 = vrot.slane %v697, %v704
        %v707 = vunpack.c.l.s4 1934713408
        %v708 = vunpack.c.0.s8 %v707
        %v709 = vlaneseq
        %v710 = vshrl.u32 %v709, 7
        %v711 = vsub.s32 %v708, %v710
        %v712 = vrot.slane %v698, %v711
        %v713 = vcombine.high %v689, 0.0
        %v714 = vcombine.high %v696, 0.0
        %v715 = vcombine.high %v705, 0.0
        %v716 = vcombine.high %v712, 0.0
        %v717 = vcombine.low %v689, %v696
        %v719 = vunpack.c.l.s4 1983009808
        %v720 = vunpack.c.0.s8 %v719
        %v721 = vlaneseq
        %v722 = vshrl.u32 %v721, 7
        %v723 = vsub.s32 %v720, %v722
        %v724 = vrot.slane %v717, %v723
        %v725 = vcombine.low %v713, %v714
        %v727 = vunpack.c.l.s4 1983009808
        %v728 = vunpack.c.0.s8 %v727
        %v729 = vlaneseq
        %v730 = vshrl.u32 %v729, 7
        %v731 = vsub.s32 %v728, %v730
        %v732 = vrot.slane %v725, %v731
        %v733 = vcombine.low %v705, %v712
        %v735 = vunpack.c.l.s4 1983009808
        %v736 = vunpack.c.0.s8 %v735
        %v737 = vlaneseq
        %v738 = vshrl.u32 %v737, 7
        %v739 = vsub.s32 %v736, %v738
        %v740 = vrot.slane %v733, %v739
        %v741 = vcombine.low %v715, %v716
        %v743 = vunpack.c.l.s4 1983009808
        %v744 = vunpack.c.0.s8 %v743
        %v745 = vlaneseq
        %v746 = vshrl.u32 %v745, 7
        %v747 = vsub.s32 %v744, %v746
        %v748 = vrot.slane %v741, %v747
        %v749 = vcombine.low %v724, %v732
        %v750 = vcombine.high %v724, %v732
        %v752 = vunpack.c.l.s4 1934713408
        %v753 = vunpack.c.0.s8 %v752
        %v754 = vlaneseq
        %v755 = vshrl.u32 %v754, 7
        %v756 = vsub.s32 %v753, %v755
        %v757 = vrot.slane %v749, %v756
        %v759 = vunpack.c.l.s4 1934713408
        %v760 = vunpack.c.0.s8 %v759
        %v761 = vlaneseq
        %v762 = vshrl.u32 %v761, 7
        %v763 = vsub.s32 %v760, %v762
        %v764 = vrot.slane %v750, %v763
        %v765 = vcombine.low %v740, %v748
        %v766 = vcombine.high %v740, %v748
        %v768 = vunpack.c.l.s4 1934713408
        %v769 = vunpack.c.0.s8 %v768
        %v770 = vlaneseq
        %v771 = vshrl.u32 %v770, 7
        %v772 = vsub.s32 %v769, %v771
        %v773 = vrot.slane %v765, %v772
        %v775 = vunpack.c.l.s4 1934713408
        %v776 = vunpack.c.0.s8 %v775
        %v777 = vlaneseq
        %v778 = vshrl.u32 %v777, 7
        %v779 = vsub.s32 %v776, %v778
        %v780 = vrot.slane %v766, %v779
        %v781 = vcombine.low %v757, %v773
        %v782 = vcombine.high %v757, %v773
        %v783 = vcombine.low %v764, %v780
        %v784 = vcombine.high %v764, %v780
        %v786 = vlaneseq
        %v787 = vshrl.u32 %v786, 7
        %v788 = vsub.s32 0, %v787
        %v789 = vrot.slane %v256, %v788
        %vm791 = vcmask 64512
        %v793 = vsel %vm791, %v485, 0
        %v796 = vsel %vm791, %v633, 0
        %798 = vmatprep.subr.mxu0 0.0
        %799 = vmatpush1.xpose.msra.mxu0 0.0
        %800 = vmatprep.subr.mxu0 0.0
        %801 = vmatpush1.xpose.msra.mxu0 0.0
        %802 = vmatprep.subr.mxu0 0.0
        %803 = vmatpush1.xpose.msra.mxu0 0.0
        %804 = vmatprep.subr.mxu0 0.0
        %805 = vmatpush1.xpose.msra.mxu0 0.0
        %806 = vmatprep.subr.mxu0 0.0
        %807 = vmatpush1.xpose.msra.mxu0 0.0
        %808 = vmatprep.subr.mxu0 0.0
        %809 = vmatpush1.xpose.msra.mxu0 0.0
        %810 = vmatprep.subr.mxu0 0.0
        %811 = vmatpush1.xpose.msra.mxu0 0.0
        %812 = vmatprep.subr.mxu0 0.0
        %813 = vmatpush1.xpose.msra.mxu0 0.0
        %814 = vmatprep.subr.mxu0 0.0
        %815 = vmatpush1.xpose.msra.mxu0 0.0
        %816 = vmatprep.subr.mxu0 0.0
        %817 = vmatpush1.xpose.msra.mxu0 0.0
        %818 = vmatprep.subr.mxu0 0.0
        %819 = vmatpush1.xpose.msra.mxu0 0.0
        %820 = vmatprep.subr.mxu0 0.0
        %821 = vmatpush1.xpose.msra.mxu0 0.0
        %822 = vmatprep.subr.mxu0 0.0
        %823 = vmatpush1.xpose.msra.mxu0 0.0
        %824 = vmatprep.subr.mxu0 0.0
        %825 = vmatpush1.xpose.msra.mxu0 0.0
        %826 = vmatprep.subr.mxu0 0.0
        %827 = vmatpush1.xpose.msra.mxu0 0.0
        %828 = vmatprep.subr.mxu0 0.0
        %829 = vmatpush1.xpose.msra.mxu0 %v796
        %830 = vmatprep.subr.mxu0 0.0
        %831 = vmatpush2.xpose.msra.mxu0 0.0
        %832 = vmatprep.subr.mxu0 0.0
        %833 = vmatpush2.xpose.msra.mxu0 0.0
        %834 = vmatprep.subr.mxu0 0.0
        %835 = vmatpush2.xpose.msra.mxu0 0.0
        %836 = vmatprep.subr.mxu0 0.0
        %837 = vmatpush2.xpose.msra.mxu0 0.0
        %838 = vmatprep.subr.mxu0 0.0
        %839 = vmatpush2.xpose.msra.mxu0 0.0
        %840 = vmatprep.subr.mxu0 0.0
        %841 = vmatpush2.xpose.msra.mxu0 0.0
        %842 = vmatprep.subr.mxu0 0.0
        %843 = vmatpush2.xpose.msra.mxu0 0.0
        %844 = vmatprep.subr.mxu0 0.0
        %845 = vmatpush2.xpose.msra.mxu0 0.0
        %846 = vmatprep.subr.mxu0 0.0
        %847 = vmatpush2.xpose.msra.mxu0 0.0
        %848 = vmatprep.subr.mxu0 0.0
        %849 = vmatpush2.xpose.msra.mxu0 0.0
        %850 = vmatprep.subr.mxu0 0.0
        %851 = vmatpush2.xpose.msra.mxu0 0.0
        %852 = vmatprep.subr.mxu0 0.0
        %853 = vmatpush2.xpose.msra.mxu0 0.0
        %854 = vmatprep.subr.mxu0 0.0
        %855 = vmatpush2.xpose.msra.mxu0 0.0
        %856 = vmatprep.subr.mxu0 0.0
        %857 = vmatpush2.xpose.msra.mxu0 0.0
        %858 = vmatprep.subr.mxu0 0.0
        %859 = vmatpush2.xpose.msra.mxu0 0.0
        %860 = vmatprep.subr.mxu0 0.0
        %861 = vmatpush2.xpose.msra.mxu0 0.0
        %862 = vmatprep.mubr.f32.mxu0 0.0
        %863 = vmatmul.mubr.f32.gmra.mxu0 %v793
        %v864 = vpop.f32.mrf.mxu0
        %v865 = vadd.f32 %v789, %v864
        %v866 = vpop.f32.mrf.mxu0
        %867 = vdwg.mxu0
        %v869 = vsel %vm791, %v486, 0
        %v872 = vsel %vm791, %v634, 0
        %874 = vmatprep.subr.mxu0 0.0
        %875 = vmatpush1.xpose.msra.mxu0 0.0
        %876 = vmatprep.subr.mxu0 0.0
        %877 = vmatpush1.xpose.msra.mxu0 0.0
        %878 = vmatprep.subr.mxu0 0.0
        %879 = vmatpush1.xpose.msra.mxu0 0.0
        %880 = vmatprep.subr.mxu0 0.0
        %881 = vmatpush1.xpose.msra.mxu0 0.0
        %882 = vmatprep.subr.mxu0 0.0
        %883 = vmatpush1.xpose.msra.mxu0 0.0
        %884 = vmatprep.subr.mxu0 0.0
        %885 = vmatpush1.xpose.msra.mxu0 0.0
        %886 = vmatprep.subr.mxu0 0.0
        %887 = vmatpush1.xpose.msra.mxu0 0.0
        %888 = vmatprep.subr.mxu0 0.0
        %889 = vmatpush1.xpose.msra.mxu0 0.0
        %890 = vmatprep.subr.mxu0 0.0
        %891 = vmatpush1.xpose.msra.mxu0 0.0
        %892 = vmatprep.subr.mxu0 0.0
        %893 = vmatpush1.xpose.msra.mxu0 0.0
        %894 = vmatprep.subr.mxu0 0.0
        %895 = vmatpush1.xpose.msra.mxu0 0.0
        %896 = vmatprep.subr.mxu0 0.0
        %897 = vmatpush1.xpose.msra.mxu0 0.0
        %898 = vmatprep.subr.mxu0 0.0
        %899 = vmatpush1.xpose.msra.mxu0 0.0
        %900 = vmatprep.subr.mxu0 0.0
        %901 = vmatpush1.xpose.msra.mxu0 0.0
        %902 = vmatprep.subr.mxu0 0.0
        %903 = vmatpush1.xpose.msra.mxu0 0.0
        %904 = vmatprep.subr.mxu0 0.0
        %905 = vmatpush1.xpose.msra.mxu0 %v872
        %906 = vmatprep.subr.mxu0 0.0
        %907 = vmatpush2.xpose.msra.mxu0 0.0
        %908 = vmatprep.subr.mxu0 0.0
        %909 = vmatpush2.xpose.msra.mxu0 0.0
        %910 = vmatprep.subr.mxu0 0.0
        %911 = vmatpush2.xpose.msra.mxu0 0.0
        %912 = vmatprep.subr.mxu0 0.0
        %913 = vmatpush2.xpose.msra.mxu0 0.0
        %914 = vmatprep.subr.mxu0 0.0
        %915 = vmatpush2.xpose.msra.mxu0 0.0
        %916 = vmatprep.subr.mxu0 0.0
        %917 = vmatpush2.xpose.msra.mxu0 0.0
        %918 = vmatprep.subr.mxu0 0.0
        %919 = vmatpush2.xpose.msra.mxu0 0.0
        %920 = vmatprep.subr.mxu0 0.0
        %921 = vmatpush2.xpose.msra.mxu0 0.0
        %922 = vmatprep.subr.mxu0 0.0
        %923 = vmatpush2.xpose.msra.mxu0 0.0
        %924 = vmatprep.subr.mxu0 0.0
        %925 = vmatpush2.xpose.msra.mxu0 0.0
        %926 = vmatprep.subr.mxu0 0.0
        %927 = vmatpush2.xpose.msra.mxu0 0.0
        %928 = vmatprep.subr.mxu0 0.0
        %929 = vmatpush2.xpose.msra.mxu0 0.0
        %930 = vmatprep.subr.mxu0 0.0
        %931 = vmatpush2.xpose.msra.mxu0 0.0
        %932 = vmatprep.subr.mxu0 0.0
        %933 = vmatpush2.xpose.msra.mxu0 0.0
        %934 = vmatprep.subr.mxu0 0.0
        %935 = vmatpush2.xpose.msra.mxu0 0.0
        %936 = vmatprep.subr.mxu0 0.0
        %937 = vmatpush2.xpose.msra.mxu0 0.0
        %938 = vmatprep.mubr.f32.mxu0 0.0
        %939 = vmatmul.mubr.f32.gmra.mxu0 %v869
        %v940 = vpop.f32.mrf.mxu0
        %v941 = vadd.f32 %v789, %v940
        %v942 = vpop.f32.mrf.mxu0
        %943 = vdwg.mxu0
        %v945 = vsel %vm791, %v487, 0
        %v948 = vsel %vm791, %v635, 0
        %950 = vmatprep.subr.mxu0 0.0
        %951 = vmatpush1.xpose.msra.mxu0 0.0
        %952 = vmatprep.subr.mxu0 0.0
        %953 = vmatpush1.xpose.msra.mxu0 0.0
        %954 = vmatprep.subr.mxu0 0.0
        %955 = vmatpush1.xpose.msra.mxu0 0.0
        %956 = vmatprep.subr.mxu0 0.0
        %957 = vmatpush1.xpose.msra.mxu0 0.0
        %958 = vmatprep.subr.mxu0 0.0
        %959 = vmatpush1.xpose.msra.mxu0 0.0
        %960 = vmatprep.subr.mxu0 0.0
        %961 = vmatpush1.xpose.msra.mxu0 0.0
        %962 = vmatprep.subr.mxu0 0.0
        %963 = vmatpush1.xpose.msra.mxu0 0.0
        %964 = vmatprep.subr.mxu0 0.0
        %965 = vmatpush1.xpose.msra.mxu0 0.0
        %966 = vmatprep.subr.mxu0 0.0
        %967 = vmatpush1.xpose.msra.mxu0 0.0
        %968 = vmatprep.subr.mxu0 0.0
        %969 = vmatpush1.xpose.msra.mxu0 0.0
        %970 = vmatprep.subr.mxu0 0.0
        %971 = vmatpush1.xpose.msra.mxu0 0.0
        %972 = vmatprep.subr.mxu0 0.0
        %973 = vmatpush1.xpose.msra.mxu0 0.0
        %974 = vmatprep.subr.mxu0 0.0
        %975 = vmatpush1.xpose.msra.mxu0 0.0
        %976 = vmatprep.subr.mxu0 0.0
        %977 = vmatpush1.xpose.msra.mxu0 0.0
        %978 = vmatprep.subr.mxu0 0.0
        %979 = vmatpush1.xpose.msra.mxu0 0.0
        %980 = vmatprep.subr.mxu0 0.0
        %981 = vmatpush1.xpose.msra.mxu0 %v948
        %982 = vmatprep.subr.mxu0 0.0
        %983 = vmatpush2.xpose.msra.mxu0 0.0
        %984 = vmatprep.subr.mxu0 0.0
        %985 = vmatpush2.xpose.msra.mxu0 0.0
        %986 = vmatprep.subr.mxu0 0.0
        %987 = vmatpush2.xpose.msra.mxu0 0.0
        %988 = vmatprep.subr.mxu0 0.0
        %989 = vmatpush2.xpose.msra.mxu0 0.0
        %990 = vmatprep.subr.mxu0 0.0
        %991 = vmatpush2.xpose.msra.mxu0 0.0
        %992 = vmatprep.subr.mxu0 0.0
        %993 = vmatpush2.xpose.msra.mxu0 0.0
        %994 = vmatprep.subr.mxu0 0.0
        %995 = vmatpush2.xpose.msra.mxu0 0.0
        %996 = vmatprep.subr.mxu0 0.0
        %997 = vmatpush2.xpose.msra.mxu0 0.0
        %998 = vmatprep.subr.mxu0 0.0
        %999 = vmatpush2.xpose.msra.mxu0 0.0
        %1000 = vmatprep.subr.mxu0 0.0
        %1001 = vmatpush2.xpose.msra.mxu0 0.0
        %1002 = vmatprep.subr.mxu0 0.0
        %1003 = vmatpush2.xpose.msra.mxu0 0.0
        %1004 = vmatprep.subr.mxu0 0.0
        %1005 = vmatpush2.xpose.msra.mxu0 0.0
        %1006 = vmatprep.subr.mxu0 0.0
        %1007 = vmatpush2.xpose.msra.mxu0 0.0
        %1008 = vmatprep.subr.mxu0 0.0
        %1009 = vmatpush2.xpose.msra.mxu0 0.0
        %1010 = vmatprep.subr.mxu0 0.0
        %1011 = vmatpush2.xpose.msra.mxu0 0.0
        %1012 = vmatprep.subr.mxu0 0.0
        %1013 = vmatpush2.xpose.msra.mxu0 0.0
        %1014 = vmatprep.mubr.f32.mxu0 0.0
        %1015 = vmatmul.mubr.f32.gmra.mxu0 %v945
        %v1016 = vpop.f32.mrf.mxu0
        %v1017 = vadd.f32 %v789, %v1016
        %v1018 = vpop.f32.mrf.mxu0
        %1019 = vdwg.mxu0
        %v1021 = vsel %vm791, %v488, 0
        %v1024 = vsel %vm791, %v636, 0
        %1026 = vmatprep.subr.mxu0 0.0
        %1027 = vmatpush1.xpose.msra.mxu0 0.0
        %1028 = vmatprep.subr.mxu0 0.0
        %1029 = vmatpush1.xpose.msra.mxu0 0.0
        %1030 = vmatprep.subr.mxu0 0.0
        %1031 = vmatpush1.xpose.msra.mxu0 0.0
        %1032 = vmatprep.subr.mxu0 0.0
        %1033 = vmatpush1.xpose.msra.mxu0 0.0
        %1034 = vmatprep.subr.mxu0 0.0
        %1035 = vmatpush1.xpose.msra.mxu0 0.0
        %1036 = vmatprep.subr.mxu0 0.0
        %1037 = vmatpush1.xpose.msra.mxu0 0.0
        %1038 = vmatprep.subr.mxu0 0.0
        %1039 = vmatpush1.xpose.msra.mxu0 0.0
        %1040 = vmatprep.subr.mxu0 0.0
        %1041 = vmatpush1.xpose.msra.mxu0 0.0
        %1042 = vmatprep.subr.mxu0 0.0
        %1043 = vmatpush1.xpose.msra.mxu0 0.0
        %1044 = vmatprep.subr.mxu0 0.0
        %1045 = vmatpush1.xpose.msra.mxu0 0.0
        %1046 = vmatprep.subr.mxu0 0.0
        %1047 = vmatpush1.xpose.msra.mxu0 0.0
        %1048 = vmatprep.subr.mxu0 0.0
        %1049 = vmatpush1.xpose.msra.mxu0 0.0
        %1050 = vmatprep.subr.mxu0 0.0
        %1051 = vmatpush1.xpose.msra.mxu0 0.0
        %1052 = vmatprep.subr.mxu0 0.0
        %1053 = vmatpush1.xpose.msra.mxu0 0.0
        %1054 = vmatprep.subr.mxu0 0.0
        %1055 = vmatpush1.xpose.msra.mxu0 0.0
        %1056 = vmatprep.subr.mxu0 0.0
        %1057 = vmatpush1.xpose.msra.mxu0 %v1024
        %1058 = vmatprep.subr.mxu0 0.0
        %1059 = vmatpush2.xpose.msra.mxu0 0.0
        %1060 = vmatprep.subr.mxu0 0.0
        %1061 = vmatpush2.xpose.msra.mxu0 0.0
        %1062 = vmatprep.subr.mxu0 0.0
        %1063 = vmatpush2.xpose.msra.mxu0 0.0
        %1064 = vmatprep.subr.mxu0 0.0
        %1065 = vmatpush2.xpose.msra.mxu0 0.0
        %1066 = vmatprep.subr.mxu0 0.0
        %1067 = vmatpush2.xpose.msra.mxu0 0.0
        %1068 = vmatprep.subr.mxu0 0.0
        %1069 = vmatpush2.xpose.msra.mxu0 0.0
        %1070 = vmatprep.subr.mxu0 0.0
        %1071 = vmatpush2.xpose.msra.mxu0 0.0
        %1072 = vmatprep.subr.mxu0 0.0
        %1073 = vmatpush2.xpose.msra.mxu0 0.0
        %1074 = vmatprep.subr.mxu0 0.0
        %1075 = vmatpush2.xpose.msra.mxu0 0.0
        %1076 = vmatprep.subr.mxu0 0.0
        %1077 = vmatpush2.xpose.msra.mxu0 0.0
        %1078 = vmatprep.subr.mxu0 0.0
        %1079 = vmatpush2.xpose.msra.mxu0 0.0
        %1080 = vmatprep.subr.mxu0 0.0
        %1081 = vmatpush2.xpose.msra.mxu0 0.0
        %1082 = vmatprep.subr.mxu0 0.0
        %1083 = vmatpush2.xpose.msra.mxu0 0.0
        %1084 = vmatprep.subr.mxu0 0.0
        %1085 = vmatpush2.xpose.msra.mxu0 0.0
        %1086 = vmatprep.subr.mxu0 0.0
        %1087 = vmatpush2.xpose.msra.mxu0 0.0
        %1088 = vmatprep.subr.mxu0 0.0
        %1089 = vmatpush2.xpose.msra.mxu0 0.0
        %1090 = vmatprep.mubr.f32.mxu0 0.0
        %1091 = vmatmul.mubr.f32.gmra.mxu0 %v1021
        %v1092 = vpop.f32.mrf.mxu0
        %v1093 = vadd.f32 %v789, %v1092
        %v1094 = vpop.f32.mrf.mxu0
        %1095 = vdwg.mxu0
        %v1096 = vsel %vm791, %v865, -inf
        %1097 = vmax.xlane.f32.xlu0 %v1096
        %v1098 = vpop.xlane.xlu0 %1097
        %v1099 = vsel %vm791, %v941, -inf
        %1100 = vmax.xlane.f32.xlu0 %v1099
        %v1101 = vpop.xlane.xlu0 %1100
        %v1102 = vsel %vm791, %v1017, -inf
        %1103 = vmax.xlane.f32.xlu0 %v1102
        %v1104 = vpop.xlane.xlu0 %1103
        %v1105 = vsel %vm791, %v1093, -inf
        %1106 = vmax.xlane.f32.xlu0 %v1105
        %v1107 = vpop.xlane.xlu0 %1106
        %v1108 = vsub.f32 %v865, %v1098
        %v1109 = vsub.f32 %v941, %v1101
        %v1110 = vsub.f32 %v1017, %v1104
        %v1111 = vsub.f32 %v1093, %v1107
        %v1112 = vmul.f32 %v1108, 1.442695
        %v1113 = vpow.pop %v1112
        %v1114 = vmul.f32 %v1109, 1.442695
        %v1115 = vpow.pop %v1114
        %v1116 = vmul.f32 %v1110, 1.442695
        %v1117 = vpow.pop %v1116
        %v1118 = vmul.f32 %v1111, 1.442695
        %v1119 = vpow.pop %v1118
        %v1120 = vsel %vm791, %v1113, 0.0
        %1121 = vadd.xlane.f32.xlu0 %v1120
        %v1122 = vpop.xlane.xlu0 %1121
        %v1123 = vsel %vm791, %v1115, 0.0
        %1124 = vadd.xlane.f32.xlu0 %v1123
        %v1125 = vpop.xlane.xlu0 %1124
        %v1126 = vsel %vm791, %v1117, 0.0
        %1127 = vadd.xlane.f32.xlu0 %v1126
        %v1128 = vpop.xlane.xlu0 %1127
        %v1129 = vsel %vm791, %v1119, 0.0
        %1130 = vadd.xlane.f32.xlu0 %v1129
        %v1131 = vpop.xlane.xlu0 %1130
        %v1132 = vrcp.pop %v1122
        %v1133 = vrcp.pop %v1125
        %v1134 = vrcp.pop %v1128
        %v1135 = vrcp.pop %v1131
        %v1136 = vmul.f32 %v1113, %v1132
        %v1137 = vmul.f32 %v1115, %v1133
        %v1138 = vmul.f32 %v1117, %v1134
        %v1139 = vmul.f32 %v1119, %v1135
        %v1141 = vsel %vm791, %v1136, 0
        %1143 = vmatprep.subr.mxu0 0.0
        %1144 = vmatpush1.msra.mxu0 0.0
        %1145 = vmatprep.subr.mxu0 0.0
        %1146 = vmatpush1.msra.mxu0 0.0
        %1147 = vmatprep.subr.mxu0 0.0
        %1148 = vmatpush1.msra.mxu0 0.0
        %1149 = vmatprep.subr.mxu0 0.0
        %1150 = vmatpush1.msra.mxu0 0.0
        %1151 = vmatprep.subr.mxu0 0.0
        %1152 = vmatpush1.msra.mxu0 0.0
        %1153 = vmatprep.subr.mxu0 0.0
        %1154 = vmatpush1.msra.mxu0 0.0
        %1155 = vmatprep.subr.mxu0 0.0
        %1156 = vmatpush1.msra.mxu0 0.0
        %1157 = vmatprep.subr.mxu0 0.0
        %1158 = vmatpush1.msra.mxu0 0.0
        %1159 = vmatprep.subr.mxu0 0.0
        %1160 = vmatpush1.msra.mxu0 0.0
        %1161 = vmatprep.subr.mxu0 0.0
        %1162 = vmatpush1.msra.mxu0 0.0
        %1163 = vmatprep.subr.mxu0 0.0
        %1164 = vmatpush1.msra.mxu0 0.0
        %1165 = vmatprep.subr.mxu0 0.0
        %1166 = vmatpush1.msra.mxu0 0.0
        %1167 = vmatprep.subr.mxu0 0.0
        %1168 = vmatpush1.msra.mxu0 0.0
        %1169 = vmatprep.subr.mxu0 0.0
        %1170 = vmatpush1.msra.mxu0 0.0
        %1171 = vmatprep.subr.mxu0 0.0
        %1172 = vmatpush1.msra.mxu0 0.0
        %1173 = vmatprep.subr.mxu0 0.0
        %1174 = vmatpush1.msra.mxu0 %v781
        %1175 = vmatprep.subr.mxu0 0.0
        %1176 = vmatpush2.msra.mxu0 0.0
        %1177 = vmatprep.subr.mxu0 0.0
        %1178 = vmatpush2.msra.mxu0 0.0
        %1179 = vmatprep.subr.mxu0 0.0
        %1180 = vmatpush2.msra.mxu0 0.0
        %1181 = vmatprep.subr.mxu0 0.0
        %1182 = vmatpush2.msra.mxu0 0.0
        %1183 = vmatprep.subr.mxu0 0.0
        %1184 = vmatpush2.msra.mxu0 0.0
        %1185 = vmatprep.subr.mxu0 0.0
        %1186 = vmatpush2.msra.mxu0 0.0
        %1187 = vmatprep.subr.mxu0 0.0
        %1188 = vmatpush2.msra.mxu0 0.0
        %1189 = vmatprep.subr.mxu0 0.0
        %1190 = vmatpush2.msra.mxu0 0.0
        %1191 = vmatprep.subr.mxu0 0.0
        %1192 = vmatpush2.msra.mxu0 0.0
        %1193 = vmatprep.subr.mxu0 0.0
        %1194 = vmatpush2.msra.mxu0 0.0
        %1195 = vmatprep.subr.mxu0 0.0
        %1196 = vmatpush2.msra.mxu0 0.0
        %1197 = vmatprep.subr.mxu0 0.0
        %1198 = vmatpush2.msra.mxu0 0.0
        %1199 = vmatprep.subr.mxu0 0.0
        %1200 = vmatpush2.msra.mxu0 0.0
        %1201 = vmatprep.subr.mxu0 0.0
        %1202 = vmatpush2.msra.mxu0 0.0
        %1203 = vmatprep.subr.mxu0 0.0
        %1204 = vmatpush2.msra.mxu0 0.0
        %1205 = vmatprep.subr.mxu0 0.0
        %1206 = vmatpush2.msra.mxu0 0.0
        %1207 = vmatprep.mubr.f32.mxu0 0.0
        %1208 = vmatmul.mubr.f32.gmra.mxu0 %v1141
        %v1209 = vpop.f32.mrf.mxu0
        %v1210 = vadd.f32 0.0, %v1209
        %v1211 = vpop.f32.mrf.mxu0
        %1212 = vdwg.mxu0
        %v1214 = vsel %vm791, %v1137, 0
        %1216 = vmatprep.subr.mxu0 0.0
        %1217 = vmatpush1.msra.mxu0 0.0
        %1218 = vmatprep.subr.mxu0 0.0
        %1219 = vmatpush1.msra.mxu0 0.0
        %1220 = vmatprep.subr.mxu0 0.0
        %1221 = vmatpush1.msra.mxu0 0.0
        %1222 = vmatprep.subr.mxu0 0.0
        %1223 = vmatpush1.msra.mxu0 0.0
        %1224 = vmatprep.subr.mxu0 0.0
        %1225 = vmatpush1.msra.mxu0 0.0
        %1226 = vmatprep.subr.mxu0 0.0
        %1227 = vmatpush1.msra.mxu0 0.0
        %1228 = vmatprep.subr.mxu0 0.0
        %1229 = vmatpush1.msra.mxu0 0.0
        %1230 = vmatprep.subr.mxu0 0.0
        %1231 = vmatpush1.msra.mxu0 0.0
        %1232 = vmatprep.subr.mxu0 0.0
        %1233 = vmatpush1.msra.mxu0 0.0
        %1234 = vmatprep.subr.mxu0 0.0
        %1235 = vmatpush1.msra.mxu0 0.0
        %1236 = vmatprep.subr.mxu0 0.0
        %1237 = vmatpush1.msra.mxu0 0.0
        %1238 = vmatprep.subr.mxu0 0.0
        %1239 = vmatpush1.msra.mxu0 0.0
        %1240 = vmatprep.subr.mxu0 0.0
        %1241 = vmatpush1.msra.mxu0 0.0
        %1242 = vmatprep.subr.mxu0 0.0
        %1243 = vmatpush1.msra.mxu0 0.0
        %1244 = vmatprep.subr.mxu0 0.0
        %1245 = vmatpush1.msra.mxu0 0.0
        %1246 = vmatprep.subr.mxu0 0.0
        %1247 = vmatpush1.msra.mxu0 %v782
        %1248 = vmatprep.subr.mxu0 0.0
        %1249 = vmatpush2.msra.mxu0 0.0
        %1250 = vmatprep.subr.mxu0 0.0
        %1251 = vmatpush2.msra.mxu0 0.0
        %1252 = vmatprep.subr.mxu0 0.0
        %1253 = vmatpush2.msra.mxu0 0.0
        %1254 = vmatprep.subr.mxu0 0.0
        %1255 = vmatpush2.msra.mxu0 0.0
        %1256 = vmatprep.subr.mxu0 0.0
        %1257 = vmatpush2.msra.mxu0 0.0
        %1258 = vmatprep.subr.mxu0 0.0
        %1259 = vmatpush2.msra.mxu0 0.0
        %1260 = vmatprep.subr.mxu0 0.0
        %1261 = vmatpush2.msra.mxu0 0.0
        %1262 = vmatprep.subr.mxu0 0.0
        %1263 = vmatpush2.msra.mxu0 0.0
        %1264 = vmatprep.subr.mxu0 0.0
        %1265 = vmatpush2.msra.mxu0 0.0
        %1266 = vmatprep.subr.mxu0 0.0
        %1267 = vmatpush2.msra.mxu0 0.0
        %1268 = vmatprep.subr.mxu0 0.0
        %1269 = vmatpush2.msra.mxu0 0.0
        %1270 = vmatprep.subr.mxu0 0.0
        %1271 = vmatpush2.msra.mxu0 0.0
        %1272 = vmatprep.subr.mxu0 0.0
        %1273 = vmatpush2.msra.mxu0 0.0
        %1274 = vmatprep.subr.mxu0 0.0
        %1275 = vmatpush2.msra.mxu0 0.0
        %1276 = vmatprep.subr.mxu0 0.0
        %1277 = vmatpush2.msra.mxu0 0.0
        %1278 = vmatprep.subr.mxu0 0.0
        %1279 = vmatpush2.msra.mxu0 0.0
        %1280 = vmatprep.mubr.f32.mxu0 0.0
        %1281 = vmatmul.mubr.f32.gmra.mxu0 %v1214
        %v1282 = vpop.f32.mrf.mxu0
        %v1283 = vadd.f32 0.0, %v1282
        %v1284 = vpop.f32.mrf.mxu0
        %1285 = vdwg.mxu0
        %v1287 = vsel %vm791, %v1138, 0
        %1289 = vmatprep.subr.mxu0 0.0
        %1290 = vmatpush1.msra.mxu0 0.0
        %1291 = vmatprep.subr.mxu0 0.0
        %1292 = vmatpush1.msra.mxu0 0.0
        %1293 = vmatprep.subr.mxu0 0.0
        %1294 = vmatpush1.msra.mxu0 0.0
        %1295 = vmatprep.subr.mxu0 0.0
        %1296 = vmatpush1.msra.mxu0 0.0
        %1297 = vmatprep.subr.mxu0 0.0
        %1298 = vmatpush1.msra.mxu0 0.0
        %1299 = vmatprep.subr.mxu0 0.0
        %1300 = vmatpush1.msra.mxu0 0.0
        %1301 = vmatprep.subr.mxu0 0.0
        %1302 = vmatpush1.msra.mxu0 0.0
        %1303 = vmatprep.subr.mxu0 0.0
        %1304 = vmatpush1.msra.mxu0 0.0
        %1305 = vmatprep.subr.mxu0 0.0
        %1306 = vmatpush1.msra.mxu0 0.0
        %1307 = vmatprep.subr.mxu0 0.0
        %1308 = vmatpush1.msra.mxu0 0.0
        %1309 = vmatprep.subr.mxu0 0.0
        %1310 = vmatpush1.msra.mxu0 0.0
        %1311 = vmatprep.subr.mxu0 0.0
        %1312 = vmatpush1.msra.mxu0 0.0
        %1313 = vmatprep.subr.mxu0 0.0
        %1314 = vmatpush1.msra.mxu0 0.0
        %1315 = vmatprep.subr.mxu0 0.0
        %1316 = vmatpush1.msra.mxu0 0.0
        %1317 = vmatprep.subr.mxu0 0.0
        %1318 = vmatpush1.msra.mxu0 0.0
        %1319 = vmatprep.subr.mxu0 0.0
        %1320 = vmatpush1.msra.mxu0 %v783
        %1321 = vmatprep.subr.mxu0 0.0
        %1322 = vmatpush2.msra.mxu0 0.0
        %1323 = vmatprep.subr.mxu0 0.0
        %1324 = vmatpush2.msra.mxu0 0.0
        %1325 = vmatprep.subr.mxu0 0.0
        %1326 = vmatpush2.msra.mxu0 0.0
        %1327 = vmatprep.subr.mxu0 0.0
        %1328 = vmatpush2.msra.mxu0 0.0
        %1329 = vmatprep.subr.mxu0 0.0
        %1330 = vmatpush2.msra.mxu0 0.0
        %1331 = vmatprep.subr.mxu0 0.0
        %1332 = vmatpush2.msra.mxu0 0.0
        %1333 = vmatprep.subr.mxu0 0.0
        %1334 = vmatpush2.msra.mxu0 0.0
        %1335 = vmatprep.subr.mxu0 0.0
        %1336 = vmatpush2.msra.mxu0 0.0
        %1337 = vmatprep.subr.mxu0 0.0
        %1338 = vmatpush2.msra.mxu0 0.0
        %1339 = vmatprep.subr.mxu0 0.0
        %1340 = vmatpush2.msra.mxu0 0.0
        %1341 = vmatprep.subr.mxu0 0.0
        %1342 = vmatpush2.msra.mxu0 0.0
        %1343 = vmatprep.subr.mxu0 0.0
        %1344 = vmatpush2.msra.mxu0 0.0
        %1345 = vmatprep.subr.mxu0 0.0
        %1346 = vmatpush2.msra.mxu0 0.0
        %1347 = vmatprep.subr.mxu0 0.0
        %1348 = vmatpush2.msra.mxu0 0.0
        %1349 = vmatprep.subr.mxu0 0.0
        %1350 = vmatpush2.msra.mxu0 0.0
        %1351 = vmatprep.subr.mxu0 0.0
        %1352 = vmatpush2.msra.mxu0 0.0
        %1353 = vmatprep.mubr.f32.mxu0 0.0
        %1354 = vmatmul.mubr.f32.gmra.mxu0 %v1287
        %v1355 = vpop.f32.mrf.mxu0
        %v1356 = vadd.f32 0.0, %v1355
        %v1357 = vpop.f32.mrf.mxu0
        %1358 = vdwg.mxu0
        %v1360 = vsel %vm791, %v1139, 0
        %1362 = vmatprep.subr.mxu0 0.0
        %1363 = vmatpush1.msra.mxu0 0.0
        %1364 = vmatprep.subr.mxu0 0.0
        %1365 = vmatpush1.msra.mxu0 0.0
        %1366 = vmatprep.subr.mxu0 0.0
        %1367 = vmatpush1.msra.mxu0 0.0
        %1368 = vmatprep.subr.mxu0 0.0
        %1369 = vmatpush1.msra.mxu0 0.0
        %1370 = vmatprep.subr.mxu0 0.0
        %1371 = vmatpush1.msra.mxu0 0.0
        %1372 = vmatprep.subr.mxu0 0.0
        %1373 = vmatpush1.msra.mxu0 0.0
        %1374 = vmatprep.subr.mxu0 0.0
        %1375 = vmatpush1.msra.mxu0 0.0
        %1376 = vmatprep.subr.mxu0 0.0
        %1377 = vmatpush1.msra.mxu0 0.0
        %1378 = vmatprep.subr.mxu0 0.0
        %1379 = vmatpush1.msra.mxu0 0.0
        %1380 = vmatprep.subr.mxu0 0.0
        %1381 = vmatpush1.msra.mxu0 0.0
        %1382 = vmatprep.subr.mxu0 0.0
        %1383 = vmatpush1.msra.mxu0 0.0
        %1384 = vmatprep.subr.mxu0 0.0
        %1385 = vmatpush1.msra.mxu0 0.0
        %1386 = vmatprep.subr.mxu0 0.0
        %1387 = vmatpush1.msra.mxu0 0.0
        %1388 = vmatprep.subr.mxu0 0.0
        %1389 = vmatpush1.msra.mxu0 0.0
        %1390 = vmatprep.subr.mxu0 0.0
        %1391 = vmatpush1.msra.mxu0 0.0
        %1392 = vmatprep.subr.mxu0 0.0
        %1393 = vmatpush1.msra.mxu0 %v784
        %1394 = vmatprep.subr.mxu0 0.0
        %1395 = vmatpush2.msra.mxu0 0.0
        %1396 = vmatprep.subr.mxu0 0.0
        %1397 = vmatpush2.msra.mxu0 0.0
        %1398 = vmatprep.subr.mxu0 0.0
        %1399 = vmatpush2.msra.mxu0 0.0
        %1400 = vmatprep.subr.mxu0 0.0
        %1401 = vmatpush2.msra.mxu0 0.0
        %1402 = vmatprep.subr.mxu0 0.0
        %1403 = vmatpush2.msra.mxu0 0.0
        %1404 = vmatprep.subr.mxu0 0.0
        %1405 = vmatpush2.msra.mxu0 0.0
        %1406 = vmatprep.subr.mxu0 0.0
        %1407 = vmatpush2.msra.mxu0 0.0
        %1408 = vmatprep.subr.mxu0 0.0
        %1409 = vmatpush2.msra.mxu0 0.0
        %1410 = vmatprep.subr.mxu0 0.0
        %1411 = vmatpush2.msra.mxu0 0.0
        %1412 = vmatprep.subr.mxu0 0.0
        %1413 = vmatpush2.msra.mxu0 0.0
        %1414 = vmatprep.subr.mxu0 0.0
        %1415 = vmatpush2.msra.mxu0 0.0
        %1416 = vmatprep.subr.mxu0 0.0
        %1417 = vmatpush2.msra.mxu0 0.0
        %1418 = vmatprep.subr.mxu0 0.0
        %1419 = vmatpush2.msra.mxu0 0.0
        %1420 = vmatprep.subr.mxu0 0.0
        %1421 = vmatpush2.msra.mxu0 0.0
        %1422 = vmatprep.subr.mxu0 0.0
        %1423 = vmatpush2.msra.mxu0 0.0
        %1424 = vmatprep.subr.mxu0 0.0
        %1425 = vmatpush2.msra.mxu0 0.0
        %1426 = vmatprep.mubr.f32.mxu0 0.0
        %1427 = vmatmul.mubr.f32.gmra.mxu0 %v1360
        %v1428 = vpop.f32.mrf.mxu0
        %v1429 = vadd.f32 0.0, %v1428
        %v1430 = vpop.f32.mrf.mxu0
        %1431 = vdwg.mxu0
        %v1432 = vcombine.low %v1210, %v1356
        %v1433 = vcombine.high %v1210, %v1356
        %v1435 = vunpack.c.l.s4 1983009808
        %v1436 = vunpack.c.0.s8 %v1435
        %v1437 = vlaneseq
        %v1438 = vshrl.u32 %v1437, 7
        %v1439 = vsub.s32 %v1436, %v1438
        %v1440 = vrot.slane %v1432, %v1439
        %v1442 = vunpack.c.l.s4 1983009808
        %v1443 = vunpack.c.0.s8 %v1442
        %v1444 = vlaneseq
        %v1445 = vshrl.u32 %v1444, 7
        %v1446 = vsub.s32 %v1443, %v1445
        %v1447 = vrot.slane %v1433, %v1446
        %v1448 = vcombine.low %v1283, %v1429
        %v1449 = vcombine.high %v1283, %v1429
        %v1451 = vunpack.c.l.s4 1983009808
        %v1452 = vunpack.c.0.s8 %v1451
        %v1453 = vlaneseq
        %v1454 = vshrl.u32 %v1453, 7
        %v1455 = vsub.s32 %v1452, %v1454
        %v1456 = vrot.slane %v1448, %v1455
        %v1458 = vunpack.c.l.s4 1983009808
        %v1459 = vunpack.c.0.s8 %v1458
        %v1460 = vlaneseq
        %v1461 = vshrl.u32 %v1460, 7
        %v1462 = vsub.s32 %v1459, %v1461
        %v1463 = vrot.slane %v1449, %v1462
        %v1464 = vcombine.low %v1440, %v1456
        %v1465 = vcombine.high %v1440, %v1456
        %v1467 = vunpack.c.l.s4 1934713408
        %v1468 = vunpack.c.0.s8 %v1467
        %v1469 = vlaneseq
        %v1470 = vshrl.u32 %v1469, 7
        %v1471 = vsub.s32 %v1468, %v1470
        %v1472 = vrot.slane %v1464, %v1471
        %v1474 = vunpack.c.l.s4 1934713408
        %v1475 = vunpack.c.0.s8 %v1474
        %v1476 = vlaneseq
        %v1477 = vshrl.u32 %v1476, 7
        %v1478 = vsub.s32 %v1475, %v1477
        %v1479 = vrot.slane %v1465, %v1478
        %v1480 = vcombine.low %v1447, %v1463
        %v1481 = vcombine.high %v1447, %v1463
        %v1483 = vunpack.c.l.s4 1934713408
        %v1484 = vunpack.c.0.s8 %v1483
        %v1485 = vlaneseq
        %v1486 = vshrl.u32 %v1485, 7
        %v1487 = vsub.s32 %v1484, %v1486
        %v1488 = vrot.slane %v1480, %v1487
        %v1490 = vunpack.c.l.s4 1934713408
        %v1491 = vunpack.c.0.s8 %v1490
        %v1492 = vlaneseq
        %v1493 = vshrl.u32 %v1492, 7
        %v1494 = vsub.s32 %v1491, %v1493
        %v1495 = vrot.slane %v1481, %v1494
        %v1496 = vcombine.high %v1472, 0.0
        %v1497 = vcombine.high %v1479, 0.0
        %v1498 = vcombine.high %v1488, 0.0
        %v1499 = vcombine.high %v1495, 0.0
        %v1500 = vcombine.low %v1472, %v1479
        %v1502 = vunpack.c.l.s4 1983009808
        %v1503 = vunpack.c.0.s8 %v1502
        %v1504 = vlaneseq
        %v1505 = vshrl.u32 %v1504, 7
        %v1506 = vsub.s32 %v1503, %v1505
        %v1507 = vrot.slane %v1500, %v1506
        %v1508 = vcombine.low %v1496, %v1497
        %v1510 = vunpack.c.l.s4 1983009808
        %v1511 = vunpack.c.0.s8 %v1510
        %v1512 = vlaneseq
        %v1513 = vshrl.u32 %v1512, 7
        %v1514 = vsub.s32 %v1511, %v1513
        %v1515 = vrot.slane %v1508, %v1514
        %v1516 = vcombine.low %v1488, %v1495
        %v1518 = vunpack.c.l.s4 1983009808
        %v1519 = vunpack.c.0.s8 %v1518
        %v1520 = vlaneseq
        %v1521 = vshrl.u32 %v1520, 7
        %v1522 = vsub.s32 %v1519, %v1521
        %v1523 = vrot.slane %v1516, %v1522
        %v1524 = vcombine.low %v1498, %v1499
        %v1526 = vunpack.c.l.s4 1983009808
        %v1527 = vunpack.c.0.s8 %v1526
        %v1528 = vlaneseq
        %v1529 = vshrl.u32 %v1528, 7
        %v1530 = vsub.s32 %v1527, %v1529
        %v1531 = vrot.slane %v1524, %v1530
        %v1532 = vcombine.low %v1507, %v1515
        %v1533 = vcombine.high %v1507, %v1515
        %v1535 = vunpack.c.l.s4 1934713408
        %v1536 = vunpack.c.0.s8 %v1535
        %v1537 = vlaneseq
        %v1538 = vshrl.u32 %v1537, 7
        %v1539 = vsub.s32 %v1536, %v1538
        %v1540 = vrot.slane %v1532, %v1539
        %v1542 = vunpack.c.l.s4 1934713408
        %v1543 = vunpack.c.0.s8 %v1542
        %v1544 = vlaneseq
        %v1545 = vshrl.u32 %v1544, 7
        %v1546 = vsub.s32 %v1543, %v1545
        %v1547 = vrot.slane %v1533, %v1546
        %v1548 = vcombine.low %v1523, %v1531
        %v1549 = vcombine.high %v1523, %v1531
        %v1551 = vunpack.c.l.s4 1934713408
        %v1552 = vunpack.c.0.s8 %v1551
        %v1553 = vlaneseq
        %v1554 = vshrl.u32 %v1553, 7
        %v1555 = vsub.s32 %v1552, %v1554
        %v1556 = vrot.slane %v1548, %v1555
        %v1558 = vunpack.c.l.s4 1934713408
        %v1559 = vunpack.c.0.s8 %v1558
        %v1560 = vlaneseq
        %v1561 = vshrl.u32 %v1560, 7
        %v1562 = vsub.s32 %v1559, %v1561
        %v1563 = vrot.slane %v1549, %v1562
        %v1564 = vcombine.low %v1540, %v1556
        %v1565 = vcombine.high %v1540, %v1556
        %v1566 = vcombine.low %v1547, %v1563
        %v1567 = vcombine.high %v1547, %v1563
        %1569 = vrot.lane.b32.xlu0 %v1565, 8
        %v1570 = vpop.permute.xlu0 %1569
        %1573 = vrot.lane.b32.xlu0 %v1566, 16
        %v1574 = vpop.permute.xlu0 %1573
        %1577 = vrot.lane.b32.xlu0 %v1567, 24
        %v1578 = vpop.permute.xlu0 %1577
        %v1580 = vsel %vm791, %v1564, %v1570
        %vm1581 = vcmask 130048
        %v1582 = vsel %vm1581, %v1580, %v1574
        %vm1583 = vcmask 195584
        %v1584 = vsel %vm1583, %v1582, %v1578
        %1585 = vst.msk [vmem:[%s252] sm:$0xff] %vm269, %v1584
        %s1586 = sand.u32 %s138, 1
        %s1587 = scalar_lea.sflag [#allocation4], %s1586
        %s1588 = sand.u32 %s138, 1
        %s1589 = smul.addr %s1588, 8
        %s1590 = scalar_lea.vmem [#allocation7], %s1589
        // Predicated region
        $region45: #{tpu_custom_call.1} parent=35 // pred_check
          %p1591 = pneg %p148
        $region46: #{tpu_custom_call.1} parent=35 // pred_check_branch
          %1593 = sbr.rel (%p1591) target = $region48
        $region47: #{tpu_custom_call.1} parent=35 // pred_region
          %s1595 = ssub.s32 128, 128
          %1596 = vsyncadd %s1587, %s1595
          %s1597 = sadd.s32 %s27, %s26
          %s1598 = smul.addr %s1597, 128
          %s1599 = scalar_lea.hbm %s4, %s1598
          %s1601 = sshll.u32 %s1590, 4
          %s1602 = int_to_ptr.vmem [resolvable:$true] %s1601
          %1604 = dma.vmem_to_hbm [thread:$0]  %s1602, 128, %s1599, %s1587
        $region48: #{tpu_custom_call.1} parent=35 // pred_fallthru
          _
      $region36: #{tpu_custom_call.1} parent=5 // pred_fallthru
        _
      %p1605 = scmp.le.s32.totalorder 2, %s17
      // Predicated region
      $region49: #{tpu_custom_call.1} parent=5 // pred_check
        %p1606 = pneg %p1605
      $region50: #{tpu_custom_call.1} parent=5 // pred_check_branch
        %1608 = sbr.rel (%p1606) target = $region52
      $region51: #{tpu_custom_call.1} parent=5 // pred_region
        %s1609 = ssub.s32 %s17, 2
        // Predicated region
        $region53: #{tpu_custom_call.1} parent=51 // pred_check
          %p1610 = pneg %p154
        $region54: #{tpu_custom_call.1} parent=51 // pred_check_branch
          %1612 = sbr.rel (%p1610) target = $region56
        $region55: #{tpu_custom_call.1} parent=51 // pred_region
          %s1613 = sand.u32 %s139, 1
          %s1614 = scalar_lea.sflag [#allocation4], %s1613
          %s1615 = sand.u32 %s139, 1
          %s1616 = smul.addr %s1615, 8
          %s1617 = scalar_lea.vmem [#allocation7], %s1616
          %1618 = dma.done %s1614, 128
        $region56: #{tpu_custom_call.1} parent=51 // pred_fallthru
          _
      $region52: #{tpu_custom_call.1} parent=5 // pred_fallthru
        _
    $region6: #{tpu_custom_call.1} parent=1 // loop_footer
      %s21 = sadd.s32 1, %s17
    $region7: #{tpu_custom_call.1} parent=1 // loop_footer_branch
      %16 = sbr.rel target = $region3
    $region8: #{tpu_custom_call.1} parent=1 // loop_exit
      _
    %1619 = vsyncpa [#allocation3], 1
    %s1620 = scalar_lea.sflag [#allocation3], 1
    %1621 = vsyncpa %s1620, 1
    %1622 = vsyncpa [#allocation6], 1
    %1623 = vsyncpa [#allocation4], 1
    %s1624 = scalar_lea.sflag [#allocation4], 1
    %1625 = vsyncpa %s1624, 1

// kernel: tpu_custom_call.1
$region0: #{tpu_custom_call.1}
  #allocation0 [shape = 'u32[]', space=smem, size = 0x4, offset = 0x4, fixed_abs, tag = 'smem constant byte address 0x4 - core index']
  #allocation1 [shape = 'u32[144,128]{1,0:T(1,128)}', space=vmem, size = 0x12000, scoped, tag = 'internal scratch']
  %s0 = inlined_call_operand.hbm [shape: f32[2,8,32], index: 0, kind: input, shape index: {}]
  %s1 = inlined_call_operand.hbm [shape: f32[32,96], index: 1, kind: input, shape index: {}]
  %s2 = inlined_call_operand.vmem [shape: f32[1,96], index: 2, kind: input, shape index: {}]
  %s3 = inlined_call_operand.vmem [shape: f32[2,1,8], index: 3, kind: input, shape index: {}]
  %s4 = inlined_call_operand.hbm [shape: f32[2,8,32], index: 4, kind: output, shape index: {}]
  %s5 = sld [smem:[#allocation0]]
  $region57: #{tpu_custom_call.1} parent=0
    _
  %s7 = ssub.s32 1, %s5
  %s8 = scalar_select 0, %s7, %s5
  $region1: #{tpu_custom_call.1} parent=0
    #allocation2 [shape = 'u8[8192]{0}', space=vmem, size = 0x2000, scoped, tag = 'input window, operand 0']
    #allocation3 [shape = 's32[2]{0}', space=sflag, size = 0x8, scoped, tag = 'scoped memory for tpu_custom_call.1']
    #allocation4 [shape = 's32[2]{0}', space=sflag, size = 0x8, scoped, tag = 'scoped memory for tpu_custom_call.1']
    #allocation5 [shape = 'u8[16384]{0}', space=vmem, size = 0x4000, scoped, tag = 'input window, operand 1, single buffered']
    #allocation6 [shape = 's32[1]{0}', space=sflag, size = 0x4, scoped, tag = 'scoped memory for tpu_custom_call.1']
    #allocation7 [shape = 'u8[8192]{0}', space=vmem, size = 0x2000, scoped, tag = 'output window, operand 0']
    %9 = vsyncpa [#allocation3], 0
    %s10 = scalar_lea.sflag [#allocation3], 1
    %11 = vsyncpa %s10, 0
    %12 = vsyncpa [#allocation6], 0
    %13 = vsyncpa [#allocation4], 0
    %s14 = scalar_lea.sflag [#allocation4], 1
    %15 = vsyncpa %s14, 0
    loop: start=0, step=1, limit=4
    $region2: #{tpu_custom_call.1} parent=1 // loop_pre_header
      _
    $region3: #{tpu_custom_call.1} parent=1 // loop_header
      %s17 = sphi 0, %s21
      %p18 = scmp.ge.s32.totalorder %s17, 4
      %s24 = sphi 0, %s36
      %s25 = sphi 0, %s32
      %s26 = sphi 0, %s24
      %s27 = sphi 0, %s25
      %s28 = sphi 0, %s26
      %s29 = sphi 0, %s27
      %s39 = sphi 0, %s41
      %s42 = sphi 0, %s39
      %s43 = sphi 0, %s42
      %s59 = sphi 0, %s43
      %s63 = sphi 0, %s63
      %s65 = sphi 0, %s63
      %s66 = sphi 0, %s65
      %s80 = sphi 0, %s66
      %s84 = sphi 0, %s84
      %s86 = sphi 0, %s84
      %s87 = sphi 0, %s86
      %s101 = sphi 0, %s87
      %s107 = sphi 0, %s109
      %s110 = sphi 0, %s107
      %s111 = sphi 0, %s110
      %s127 = sphi 0, %s111
      %s135 = sphi 0, %s137
      %s138 = sphi 0, %s135
      %s139 = sphi 0, %s138
      %s155 = sphi 0, %s139
    $region4: #{tpu_custom_call.1} parent=1 // loop_header_branch
      %20 = sbr.rel (%p18) target = $region8
    $region5: #{tpu_custom_call.1} parent=1 // loop_body
      %s22 = ssub.s32 %s17, 1
      %s23 = ssub.s32 %s17, 2
      %s30 = sadd.s32 1, %s25
      %p31 = scmp.ge.s32.totalorder %s30, 1
      %s32 = scalar_select %p31, 0, %s30
      %s33 = sadd.s32 1, %s24
      %s34 = scalar_select %p31, %s33, %s24
      %p35 = scmp.ge.s32.totalorder %s34, 2
      %s36 = scalar_select %p35, 0, %s34
      %s37 = ssub.s32 %s24, %s36
      %p38 = scmp.eq.s32.totalorder %s37, 0
      %s40 = sadd.s32 %s39, 1
      %s41 = scalar_select %p38, %s39, %s40
      %p44 = pneg %p38
      %p45 = scmp.eq.s32.totalorder %s17, 1
      %p46 = por %p44, %p45
      %p47 = scmp.ne.s32.totalorder %s39, %s42
      %p48 = scmp.eq.s32.totalorder %s17, 0
      %p49 = por %p47, %p48
      %p50 = scmp.ne.s32.totalorder %s39, %s42
      %p51 = scmp.eq.s32.totalorder %s22, 1
      %p52 = por %p50, %p51
      %p53 = scmp.ne.s32.totalorder %s42, %s43
      %p54 = scmp.eq.s32.totalorder %s22, 0
      %p55 = por %p53, %p54
      %p56 = scmp.ne.s32.totalorder %s42, %s43
      %p57 = scmp.eq.s32.totalorder %s23, 1
      %p58 = por %p56, %p57
      %p60 = scmp.ne.s32.totalorder %s43, %s59
      %p61 = scmp.eq.s32.totalorder %s23, 0
      %p62 = por %p60, %p61
      %s64 = sadd.s32 %s63, 1
      %p67 = scmp.eq.s32.totalorder %s17, 1
      %p68 = scmp.ne.s32.totalorder %s63, %s65
      %p69 = scmp.eq.s32.totalorder %s17, 0
      %p70 = por %p68, %p69
      %p71 = scmp.ne.s32.totalorder %s63, %s65
      %p72 = scmp.eq.s32.totalorder %s22, 1
      %p73 = por %p71, %p72
      %p74 = scmp.ne.s32.totalorder %s65, %s66
      %p75 = scmp.eq.s32.totalorder %s22, 0
      %p76 = por %p74, %p75
      %p77 = scmp.ne.s32.totalorder %s65, %s66
      %p78 = scmp.eq.s32.totalorder %s23, 1
      %p79 = por %p77, %p78
      %p81 = scmp.ne.s32.totalorder %s66, %s80
      %p82 = scmp.eq.s32.totalorder %s23, 0
      %p83 = por %p81, %p82
      %s85 = sadd.s32 %s84, 1
      %p88 = scmp.eq.s32.totalorder %s17, 1
      %p89 = scmp.ne.s32.totalorder %s84, %s86
      %p90 = scmp.eq.s32.totalorder %s17, 0
      %p91 = por %p89, %p90
      %p92 = scmp.ne.s32.totalorder %s84, %s86
      %p93 = scmp.eq.s32.totalorder %s22, 1
      %p94 = por %p92, %p93
      %p95 = scmp.ne.s32.totalorder %s86, %s87
      %p96 = scmp.eq.s32.totalorder %s22, 0
      %p97 = por %p95, %p96
      %p98 = scmp.ne.s32.totalorder %s86, %s87
      %p99 = scmp.eq.s32.totalorder %s23, 1
      %p100 = por %p98, %p99
      %p102 = scmp.ne.s32.totalorder %s87, %s101
      %p103 = scmp.eq.s32.totalorder %s23, 0
      %p104 = por %p102, %p103
      %s105 = ssub.s32 %s24, %s36
      %p106 = scmp.eq.s32.totalorder %s105, 0
      %s108 = sadd.s32 %s107, 1
      %s109 = scalar_select %p106, %s107, %s108
      %p112 = pneg %p106
      %p113 = scmp.eq.s32.totalorder %s17, 1
      %p114 = por %p112, %p113
      %p115 = scmp.ne.s32.totalorder %s107, %s110
      %p116 = scmp.eq.s32.totalorder %s17, 0
      %p117 = por %p115, %p116
      %p118 = scmp.ne.s32.totalorder %s107, %s110
      %p119 = scmp.eq.s32.totalorder %s22, 1
      %p120 = por %p118, %p119
      %p121 = scmp.ne.s32.totalorder %s110, %s111
      %p122 = scmp.eq.s32.totalorder %s22, 0
      %p123 = por %p121, %p122
      %p124 = scmp.ne.s32.totalorder %s110, %s111
      %p125 = scmp.eq.s32.totalorder %s23, 1
      %p126 = por %p124, %p125
      %p128 = scmp.ne.s32.totalorder %s111, %s127
      %p129 = scmp.eq.s32.totalorder %s23, 0
      %p130 = por %p128, %p129
      %s131 = ssub.s32 %s24, %s36
      %s132 = ssub.s32 %s25, %s32
      %s133 = sor.u32 %s131, %s132
      %p134 = scmp.eq.s32.totalorder %s133, 0
      %s136 = sadd.s32 %s135, 1
      %s137 = scalar_select %p134, %s135, %s136
      %p140 = pneg %p134
      %p141 = scmp.eq.s32.totalorder %s17, 1
      %p142 = por %p140, %p141
      %p143 = scmp.ne.s32.totalorder %s135, %s138
      %p144 = scmp.eq.s32.totalorder %s17, 0
      %p145 = por %p143, %p144
      %p146 = scmp.ne.s32.totalorder %s135, %s138
      %p147 = scmp.eq.s32.totalorder %s22, 1
      %p148 = por %p146, %p147
      %p149 = scmp.ne.s32.totalorder %s138, %s139
      %p150 = scmp.eq.s32.totalorder %s22, 0
      %p151 = por %p149, %p150
      %p152 = scmp.ne.s32.totalorder %s138, %s139
      %p153 = scmp.eq.s32.totalorder %s23, 1
      %p154 = por %p152, %p153
      %p156 = scmp.ne.s32.totalorder %s139, %s155
      %p157 = scmp.eq.s32.totalorder %s23, 0
      %p158 = por %p156, %p157
      %p159 = scmp.le.s32.totalorder 1, %s17
      %p160 = scmp.lt.s32.totalorder %s17, 3
      %p161 = pnand %p159, %p160
      %p162 = pneg %p161
      // Predicated region
      $region9: #{tpu_custom_call.1} parent=5 // pred_check
        _
      $region10: #{tpu_custom_call.1} parent=5 // pred_check_branch
        %164 = sbr.rel (%p161) target = $region12
      $region11: #{tpu_custom_call.1} parent=5 // pred_region
        %s165 = ssub.s32 %s17, 1
        // Predicated region
        $region13: #{tpu_custom_call.1} parent=11 // pred_check
          %p166 = pneg %p76
        $region14: #{tpu_custom_call.1} parent=11 // pred_check_branch
          %168 = sbr.rel (%p166) target = $region16
        $region15: #{tpu_custom_call.1} parent=11 // pred_region
          %s170 = ssub.s32 512, 512
          %171 = vsyncadd [#allocation6], %s170
          %s172 = sshll.u32 [#allocation5], 4
          %s173 = int_to_ptr.vmem [resolvable:$true] %s172
          %178 = dma.hbm_to_vmem [thread:$0]  %s1, 512, %s173, [#allocation6], 128, 128, 8
        $region16: #{tpu_custom_call.1} parent=11 // pred_fallthru
          _
        // Predicated region
        $region17: #{tpu_custom_call.1} parent=11 // pred_check
          %p179 = pneg %p97
        $region18: #{tpu_custom_call.1} parent=11 // pred_check_branch
          %181 = sbr.rel (%p179) target = $region20
        $region19: #{tpu_custom_call.1} parent=11 // pred_region
          _
        $region20: #{tpu_custom_call.1} parent=11 // pred_fallthru
          _
      $region12: #{tpu_custom_call.1} parent=5 // pred_fallthru
        _
      %p182 = scmp.lt.s32.totalorder %s17, 2
      // Predicated region
      $region21: #{tpu_custom_call.1} parent=5 // pred_check
        %p183 = pneg %p182
      $region22: #{tpu_custom_call.1} parent=5 // pred_check_branch
        %185 = sbr.rel (%p183) target = $region24
      $region23: #{tpu_custom_call.1} parent=5 // pred_region
        // Predicated region
        $region25: #{tpu_custom_call.1} parent=23 // pred_check
          %p186 = pneg %p49
        $region26: #{tpu_custom_call.1} parent=23 // pred_check_branch
          %188 = sbr.rel (%p186) target = $region28
        $region27: #{tpu_custom_call.1} parent=23 // pred_region
          %s189 = sand.u32 %s39, 1
          %s190 = scalar_lea.sflag [#allocation3], %s189
          %s191 = sand.u32 %s39, 1
          %s192 = smul.addr %s191, 8
          %s193 = scalar_lea.vmem [#allocation2], %s192
          %s195 = ssub.s32 128, 128
          %196 = vsyncadd %s190, %s195
          %s197 = smul.addr %s24, 128
          %s198 = scalar_lea.hbm %s0, %s197
          %s200 = sshll.u32 %s193, 4
          %s201 = int_to_ptr.vmem [resolvable:$true] %s200
          %203 = dma.hbm_to_vmem [thread:$0]  %s198, 128, %s201, %s190
        $region28: #{tpu_custom_call.1} parent=23 // pred_fallthru
          _
        // Predicated region
        $region29: #{tpu_custom_call.1} parent=23 // pred_check
          %p204 = pneg %p117
        $region30: #{tpu_custom_call.1} parent=23 // pred_check_branch
          %206 = sbr.rel (%p204) target = $region32
        $region31: #{tpu_custom_call.1} parent=23 // pred_region
          %p207 = scmp.lt.s32.totalorder %s24, 1
          %s208 = scalar_select %p207, %s24, 1
          %s209 = scalar_lea.vmem %s3, %s208
        $region32: #{tpu_custom_call.1} parent=23 // pred_fallthru
          _
      $region24: #{tpu_custom_call.1} parent=5 // pred_fallthru
        _
      %p210 = scmp.le.s32.totalorder 1, %s17
      %p211 = scmp.lt.s32.totalorder %s17, 3
      %p212 = pnand %p210, %p211
      %p213 = pneg %p212
      // Predicated region
      $region33: #{tpu_custom_call.1} parent=5 // pred_check
        _
      $region34: #{tpu_custom_call.1} parent=5 // pred_check_branch
        %215 = sbr.rel (%p212) target = $region36
      $region35: #{tpu_custom_call.1} parent=5 // pred_region
        %s216 = ssub.s32 %s17, 1
        %s217 = sand.u32 %s42, 1
        %s218 = scalar_lea.sflag [#allocation3], %s217
        %s219 = sand.u32 %s42, 1
        %s220 = smul.addr %s219, 8
        %s221 = scalar_lea.vmem [#allocation2], %s220
        // Predicated region
        $region37: #{tpu_custom_call.1} parent=35 // pred_check
          %p222 = pneg %p55
        $region38: #{tpu_custom_call.1} parent=35 // pred_check_branch
          %224 = sbr.rel (%p222) target = $region40
        $region39: #{tpu_custom_call.1} parent=35 // pred_region
          %225 = dma.done %s218, 128
        $region40: #{tpu_custom_call.1} parent=35 // pred_fallthru
          _
        // Predicated region
        $region41: #{tpu_custom_call.1} parent=35 // pred_check
          %p226 = pneg %p76
        $region42: #{tpu_custom_call.1} parent=35 // pred_check_branch
          %228 = sbr.rel (%p226) target = $region44
        $region43: #{tpu_custom_call.1} parent=35 // pred_region
          %229 = dma.done [#allocation6], 512
        $region44: #{tpu_custom_call.1} parent=35 // pred_fallthru
          _
        %s230 = sand.u32 %s42, 1
        %s231 = scalar_lea.sflag [#allocation3], %s230
        %s232 = sand.u32 %s42, 1
        %s233 = smul.addr %s232, 8
        %s234 = scalar_lea.vmem [#allocation2], %s233
        %p235 = pneg %p55
        %p236 = pneg %p52
        %p237 = pneg %p76
        %p238 = pneg %p73
        %p239 = pneg %p97
        %p240 = pneg %p94
        %p241 = scmp.lt.s32.totalorder %s26, 1
        %s242 = scalar_select %p241, %s26, 1
        %s243 = scalar_lea.vmem %s3, %s242
        %p244 = pneg %p123
        %p245 = pneg %p120
        %p246 = pneg %p151
        %p247 = pneg %p148
        %s248 = sand.u32 %s138, 1
        %s249 = scalar_lea.sflag [#allocation4], %s248
        %s250 = sand.u32 %s138, 1
        %s251 = smul.addr %s250, 8
        %s252 = scalar_lea.vmem [#allocation7], %s251
        %p253 = scmp.lt.s32.totalorder %s26, 1
        %s254 = scalar_select %p253, %s26, 1
        %s255 = scalar_lea.vmem %s3, %s254
        %v256 = vld [vmem:[%s255] sm:$0x1]
        %v257 = vld [vmem:[%s221] sm:$0xff]
        %v258 = vld [vmem:[#allocation5] sm:$0xff]
        %v259 = vld [vmem:[#allocation5 + $0x8] sm:$0xff]
        %v260 = vld [vmem:[#allocation5 + $0x10] sm:$0xff]
        %v261 = vld [vmem:[#allocation5 + $0x18] sm:$0xff]
        %v262 = vld [vmem:[%s2] sm:$0x1]
        %v264 = vlaneseq
        %v265 = vshrl.u32 %v264, 7
        %v266 = vsub.s32 0, %v265
        %v267 = vrot.slane %v262, %v266
        %vm269 = vcmask 261120
        %v271 = vsel %vm269, %v257, 0
        %273 = vmatprep.subr.mxu0 0.0
        %274 = vmatpush1.msra.mxu0 0.0
        %275 = vmatprep.subr.mxu0 0.0
        %276 = vmatpush1.msra.mxu0 0.0
        %277 = vmatprep.subr.mxu0 0.0
        %278 = vmatpush1.msra.mxu0 0.0
        %279 = vmatprep.subr.mxu0 0.0
        %280 = vmatpush1.msra.mxu0 0.0
        %281 = vmatprep.subr.mxu0 0.0
        %282 = vmatpush1.msra.mxu0 0.0
        %283 = vmatprep.subr.mxu0 0.0
        %284 = vmatpush1.msra.mxu0 0.0
        %285 = vmatprep.subr.mxu0 0.0
        %286 = vmatpush1.msra.mxu0 0.0
        %287 = vmatprep.subr.mxu0 0.0
        %288 = vmatpush1.msra.mxu0 0.0
        %289 = vmatprep.subr.mxu0 0.0
        %290 = vmatpush1.msra.mxu0 0.0
        %291 = vmatprep.subr.mxu0 0.0
        %292 = vmatpush1.msra.mxu0 0.0
        %293 = vmatprep.subr.mxu0 0.0
        %294 = vmatpush1.msra.mxu0 0.0
        %295 = vmatprep.subr.mxu0 0.0
        %296 = vmatpush1.msra.mxu0 0.0
        %297 = vmatprep.subr.mxu0 0.0
        %298 = vmatpush1.msra.mxu0 %v261
        %299 = vmatprep.subr.mxu0 0.0
        %300 = vmatpush1.msra.mxu0 %v260
        %301 = vmatprep.subr.mxu0 0.0
        %302 = vmatpush1.msra.mxu0 %v259
        %303 = vmatprep.subr.mxu0 0.0
        %304 = vmatpush1.msra.mxu0 %v258
        %305 = vmatprep.subr.mxu0 0.0
        %306 = vmatpush2.msra.mxu0 0.0
        %307 = vmatprep.subr.mxu0 0.0
        %308 = vmatpush2.msra.mxu0 0.0
        %309 = vmatprep.subr.mxu0 0.0
        %310 = vmatpush2.msra.mxu0 0.0
        %311 = vmatprep.subr.mxu0 0.0
        %312 = vmatpush2.msra.mxu0 0.0
        %313 = vmatprep.subr.mxu0 0.0
        %314 = vmatpush2.msra.mxu0 0.0
        %315 = vmatprep.subr.mxu0 0.0
        %316 = vmatpush2.msra.mxu0 0.0
        %317 = vmatprep.subr.mxu0 0.0
        %318 = vmatpush2.msra.mxu0 0.0
        %319 = vmatprep.subr.mxu0 0.0
        %320 = vmatpush2.msra.mxu0 0.0
        %321 = vmatprep.subr.mxu0 0.0
        %322 = vmatpush2.msra.mxu0 0.0
        %323 = vmatprep.subr.mxu0 0.0
        %324 = vmatpush2.msra.mxu0 0.0
        %325 = vmatprep.subr.mxu0 0.0
        %326 = vmatpush2.msra.mxu0 0.0
        %327 = vmatprep.subr.mxu0 0.0
        %328 = vmatpush2.msra.mxu0 0.0
        %329 = vmatprep.subr.mxu0 0.0
        %330 = vmatpush2.msra.mxu0 0.0
        %331 = vmatprep.subr.mxu0 0.0
        %332 = vmatpush2.msra.mxu0 0.0
        %333 = vmatprep.subr.mxu0 0.0
        %334 = vmatpush2.msra.mxu0 0.0
        %335 = vmatprep.subr.mxu0 0.0
        %336 = vmatpush2.msra.mxu0 0.0
        %337 = vmatprep.mubr.f32.mxu0 0.0
        %338 = vmatmul.mubr.f32.gmra.mxu0 %v271
        %v339 = vpop.f32.mrf.mxu0
        %v340 = vadd.f32 %v267, %v339
        %v341 = vpop.f32.mrf.mxu0
        %342 = vdwg.mxu0
        %344 = vrot.lane.b32.xlu0 %v340, 120
        %v345 = vpop.permute.xlu0 %344
        %347 = vrot.lane.b32.xlu0 %v340, 112
        %v348 = vpop.permute.xlu0 %347
        %350 = vrot.lane.b32.xlu0 %v340, 104
        %v351 = vpop.permute.xlu0 %350
        %v353 = vcombine.low %v340, %v348
        %v354 = vcombine.high %v340, %v348
        %v356 = vunpack.c.l.s4 1983009808
        %v357 = vunpack.c.0.s8 %v356
        %v358 = vlaneseq
        %v359 = vshrl.u32 %v358, 7
        %v360 = vsub.s32 %v357, %v359
        %v361 = vrot.slane %v353, %v360
        %v363 = vunpack.c.l.s4 1983009808
        %v364 = vunpack.c.0.s8 %v363
        %v365 = vlaneseq
        %v366 = vshrl.u32 %v365, 7
        %v367 = vsub.s32 %v364, %v366
        %v368 = vrot.slane %v354, %v367
        %v369 = vcombine.low %v345, %v351
        %v370 = vcombine.high %v345, %v351
        %v372 = vunpack.c.l.s4 1983009808
        %v373 = vunpack.c.0.s8 %v372
        %v374 = vlaneseq
        %v375 = vshrl.u32 %v374, 7
        %v376 = vsub.s32 %v373, %v375
        %v377 = vrot.slane %v369, %v376
        %v379 = vunpack.c.l.s4 1983009808
        %v380 = vunpack.c.0.s8 %v379
        %v381 = vlaneseq
        %v382 = vshrl.u32 %v381, 7
        %v383 = vsub.s32 %v380, %v382
        %v384 = vrot.slane %v370, %v383
        %v385 = vcombine.low %v361, %v377
        %v386 = vcombine.high %v361, %v377
        %v388 = vunpack.c.l.s4 1934713408
        %v389 = vunpack.c.0.s8 %v388
        %v390 = vlaneseq
        %v391 = vshrl.u32 %v390, 7
        %v392 = vsub.s32 %v389, %v391
        %v393 = vrot.slane %v385, %v392
        %v395 = vunpack.c.l.s4 1934713408
        %v396 = vunpack.c.0.s8 %v395
        %v397 = vlaneseq
        %v398 = vshrl.u32 %v397, 7
        %v399 = vsub.s32 %v396, %v398
        %v400 = vrot.slane %v386, %v399
        %v401 = vcombine.low %v368, %v384
        %v402 = vcombine.high %v368, %v384
        %v404 = vunpack.c.l.s4 1934713408
        %v405 = vunpack.c.0.s8 %v404
        %v406 = vlaneseq
        %v407 = vshrl.u32 %v406, 7
        %v408 = vsub.s32 %v405, %v407
        %v409 = vrot.slane %v401, %v408
        %v411 = vunpack.c.l.s4 1934713408
        %v412 = vunpack.c.0.s8 %v411
        %v413 = vlaneseq
        %v414 = vshrl.u32 %v413, 7
        %v415 = vsub.s32 %v412, %v414
        %v416 = vrot.slane %v402, %v415
        %v417 = vcombine.high %v393, 0.0
        %v418 = vcombine.high %v400, 0.0
        %v419 = vcombine.high %v409, 0.0
        %v420 = vcombine.high %v416, 0.0
        %v421 = vcombine.low %v393, %v400
        %v423 = vunpack.c.l.s4 1983009808
        %v424 = vunpack.c.0.s8 %v423
        %v425 = vlaneseq
        %v426 = vshrl.u32 %v425, 7
        %v427 = vsub.s32 %v424, %v426
        %v428 = vrot.slane %v421, %v427
        %v429 = vcombine.low %v417, %v418
        %v431 = vunpack.c.l.s4 1983009808
        %v432 = vunpack.c.0.s8 %v431
        %v433 = vlaneseq
        %v434 = vshrl.u32 %v433, 7
        %v435 = vsub.s32 %v432, %v434
        %v436 = vrot.slane %v429, %v435
        %v437 = vcombine.low %v409, %v416
        %v439 = vunpack.c.l.s4 1983009808
        %v440 = vunpack.c.0.s8 %v439
        %v441 = vlaneseq
        %v442 = vshrl.u32 %v441, 7
        %v443 = vsub.s32 %v440, %v442
        %v444 = vrot.slane %v437, %v443
        %v445 = vcombine.low %v419, %v420
        %v447 = vunpack.c.l.s4 1983009808
        %v448 = vunpack.c.0.s8 %v447
        %v449 = vlaneseq
        %v450 = vshrl.u32 %v449, 7
        %v451 = vsub.s32 %v448, %v450
        %v452 = vrot.slane %v445, %v451
        %v453 = vcombine.low %v428, %v436
        %v454 = vcombine.high %v428, %v436
        %v456 = vunpack.c.l.s4 1934713408
        %v457 = vunpack.c.0.s8 %v456
        %v458 = vlaneseq
        %v459 = vshrl.u32 %v458, 7
        %v460 = vsub.s32 %v457, %v459
        %v461 = vrot.slane %v453, %v460
        %v463 = vunpack.c.l.s4 1934713408
        %v464 = vunpack.c.0.s8 %v463
        %v465 = vlaneseq
        %v466 = vshrl.u32 %v465, 7
        %v467 = vsub.s32 %v464, %v466
        %v468 = vrot.slane %v454, %v467
        %v469 = vcombine.low %v444, %v452
        %v470 = vcombine.high %v444, %v452
        %v472 = vunpack.c.l.s4 1934713408
        %v473 = vunpack.c.0.s8 %v472
        %v474 = vlaneseq
        %v475 = vshrl.u32 %v474, 7
        %v476 = vsub.s32 %v473, %v475
        %v477 = vrot.slane %v469, %v476
        %v479 = vunpack.c.l.s4 1934713408
        %v480 = vunpack.c.0.s8 %v479
        %v481 = vlaneseq
        %v482 = vshrl.u32 %v481, 7
        %v483 = vsub.s32 %v480, %v482
        %v484 = vrot.slane %v470, %v483
        %v485 = vcombine.low %v461, %v477
        %v486 = vcombine.high %v461, %v477
        %v487 = vcombine.low %v468, %v484
        %v488 = vcombine.high %v468, %v484
        %489 = vrot.lane.b32.xlu0 %v340, 96
        %v490 = vpop.permute.xlu0 %489
        %491 = vrot.lane.b32.xlu0 %v345, 96
        %v492 = vpop.permute.xlu0 %491
        %493 = vrot.lane.b32.xlu0 %v348, 96
        %v494 = vpop.permute.xlu0 %493
        %495 = vrot.lane.b32.xlu0 %v351, 96
        %v496 = vpop.permute.xlu0 %495
        %v501 = vcombine.low %v490, %v494
        %v502 = vcombine.high %v490, %v494
        %v504 = vunpack.c.l.s4 1983009808
        %v505 = vunpack.c.0.s8 %v504
        %v506 = vlaneseq
        %v507 = vshrl.u32 %v506, 7
        %v508 = vsub.s32 %v505, %v507
        %v509 = vrot.slane %v501, %v508
        %v511 = vunpack.c.l.s4 1983009808
        %v512 = vunpack.c.0.s8 %v511
        %v513 = vlaneseq
        %v514 = vshrl.u32 %v513, 7
        %v515 = vsub.s32 %v512, %v514
        %v516 = vrot.slane %v502, %v515
        %v517 = vcombine.low %v492, %v496
        %v518 = vcombine.high %v492, %v496
        %v520 = vunpack.c.l.s4 1983009808
        %v521 = vunpack.c.0.s8 %v520
        %v522 = vlaneseq
        %v523 = vshrl.u32 %v522, 7
        %v524 = vsub.s32 %v521, %v523
        %v525 = vrot.slane %v517, %v524
        %v527 = vunpack.c.l.s4 1983009808
        %v528 = vunpack.c.0.s8 %v527
        %v529 = vlaneseq
        %v530 = vshrl.u32 %v529, 7
        %v531 = vsub.s32 %v528, %v530
        %v532 = vrot.slane %v518, %v531
        %v533 = vcombine.low %v509, %v525
        %v534 = vcombine.high %v509, %v525
        %v536 = vunpack.c.l.s4 1934713408
        %v537 = vunpack.c.0.s8 %v536
        %v538 = vlaneseq
        %v539 = vshrl.u32 %v538, 7
        %v540 = vsub.s32 %v537, %v539
        %v541 = vrot.slane %v533, %v540
        %v543 = vunpack.c.l.s4 1934713408
        %v544 = vunpack.c.0.s8 %v543
        %v545 = vlaneseq
        %v546 = vshrl.u32 %v545, 7
        %v547 = vsub.s32 %v544, %v546
        %v548 = vrot.slane %v534, %v547
        %v549 = vcombine.low %v516, %v532
        %v550 = vcombine.high %v516, %v532
        %v552 = vunpack.c.l.s4 1934713408
        %v553 = vunpack.c.0.s8 %v552
        %v554 = vlaneseq
        %v555 = vshrl.u32 %v554, 7
        %v556 = vsub.s32 %v553, %v555
        %v557 = vrot.slane %v549, %v556
        %v559 = vunpack.c.l.s4 1934713408
        %v560 = vunpack.c.0.s8 %v559
        %v561 = vlaneseq
        %v562 = vshrl.u32 %v561, 7
        %v563 = vsub.s32 %v560, %v562
        %v564 = vrot.slane %v550, %v563
        %v565 = vcombine.high %v541, 0.0
        %v566 = vcombine.high %v548, 0.0
        %v567 = vcombine.high %v557, 0.0
        %v568 = vcombine.high %v564, 0.0
        %v569 = vcombine.low %v541, %v548
        %v571 = vunpack.c.l.s4 1983009808
        %v572 = vunpack.c.0.s8 %v571
        %v573 = vlaneseq
        %v574 = vshrl.u32 %v573, 7
        %v575 = vsub.s32 %v572, %v574
        %v576 = vrot.slane %v569, %v575
        %v577 = vcombine.low %v565, %v566
        %v579 = vunpack.c.l.s4 1983009808
        %v580 = vunpack.c.0.s8 %v579
        %v581 = vlaneseq
        %v582 = vshrl.u32 %v581, 7
        %v583 = vsub.s32 %v580, %v582
        %v584 = vrot.slane %v577, %v583
        %v585 = vcombine.low %v557, %v564
        %v587 = vunpack.c.l.s4 1983009808
        %v588 = vunpack.c.0.s8 %v587
        %v589 = vlaneseq
        %v590 = vshrl.u32 %v589, 7
        %v591 = vsub.s32 %v588, %v590
        %v592 = vrot.slane %v585, %v591
        %v593 = vcombine.low %v567, %v568
        %v595 = vunpack.c.l.s4 1983009808
        %v596 = vunpack.c.0.s8 %v595
        %v597 = vlaneseq
        %v598 = vshrl.u32 %v597, 7
        %v599 = vsub.s32 %v596, %v598
        %v600 = vrot.slane %v593, %v599
        %v601 = vcombine.low %v576, %v584
        %v602 = vcombine.high %v576, %v584
        %v604 = vunpack.c.l.s4 1934713408
        %v605 = vunpack.c.0.s8 %v604
        %v606 = vlaneseq
        %v607 = vshrl.u32 %v606, 7
        %v608 = vsub.s32 %v605, %v607
        %v609 = vrot.slane %v601, %v608
        %v611 = vunpack.c.l.s4 1934713408
        %v612 = vunpack.c.0.s8 %v611
        %v613 = vlaneseq
        %v614 = vshrl.u32 %v613, 7
        %v615 = vsub.s32 %v612, %v614
        %v616 = vrot.slane %v602, %v615
        %v617 = vcombine.low %v592, %v600
        %v618 = vcombine.high %v592, %v600
        %v620 = vunpack.c.l.s4 1934713408
        %v621 = vunpack.c.0.s8 %v620
        %v622 = vlaneseq
        %v623 = vshrl.u32 %v622, 7
        %v624 = vsub.s32 %v621, %v623
        %v625 = vrot.slane %v617, %v624
        %v627 = vunpack.c.l.s4 1934713408
        %v628 = vunpack.c.0.s8 %v627
        %v629 = vlaneseq
        %v630 = vshrl.u32 %v629, 7
        %v631 = vsub.s32 %v628, %v630
        %v632 = vrot.slane %v618, %v631
        %v633 = vcombine.low %v609, %v625
        %v634 = vcombine.high %v609, %v625
        %v635 = vcombine.low %v616, %v632
        %v636 = vcombine.high %v616, %v632
        %637 = vrot.lane.b32.xlu0 %v340, 64
        %v638 = vpop.permute.xlu0 %637
        %639 = vrot.lane.b32.xlu0 %v345, 64
        %v640 = vpop.permute.xlu0 %639
        %641 = vrot.lane.b32.xlu0 %v348, 64
        %v642 = vpop.permute.xlu0 %641
        %643 = vrot.lane.b32.xlu0 %v351, 64
        %v644 = vpop.permute.xlu0 %643
        %v649 = vcombine.low %v638, %v642
        %v650 = vcombine.high %v638, %v642
        %v652 = vunpack.c.l.s4 1983009808
        %v653 = vunpack.c.0.s8 %v652
        %v654 = vlaneseq
        %v655 = vshrl.u32 %v654, 7
        %v656 = vsub.s32 %v653, %v655
        %v657 = vrot.slane %v649, %v656
        %v659 = vunpack.c.l.s4 1983009808
        %v660 = vunpack.c.0.s8 %v659
        %v661 = vlaneseq
        %v662 = vshrl.u32 %v661, 7
        %v663 = vsub.s32 %v660, %v662
        %v664 = vrot.slane %v650, %v663
        %v665 = vcombine.low %v640, %v644
        %v666 = vcombine.high %v640, %v644
        %v668 = vunpack.c.l.s4 1983009808
        %v669 = vunpack.c.0.s8 %v668
        %v670 = vlaneseq
        %v671 = vshrl.u32 %v670, 7
        %v672 = vsub.s32 %v669, %v671
        %v673 = vrot.slane %v665, %v672
        %v675 = vunpack.c.l.s4 1983009808
        %v676 = vunpack.c.0.s8 %v675
        %v677 = vlaneseq
        %v678 = vshrl.u32 %v677, 7
        %v679 = vsub.s32 %v676, %v678
        %v680 = vrot.slane %v666, %v679
        %v681 = vcombine.low %v657, %v673
        %v682 = vcombine.high %v657, %v673
        %v684 = vunpack.c.l.s4 1934713408
        %v685 = vunpack.c.0.s8 %v684
        %v686 = vlaneseq
        %v687 = vshrl.u32 %v686, 7
        %v688 = vsub.s32 %v685, %v687
        %v689 = vrot.slane %v681, %v688
        %v691 = vunpack.c.l.s4 1934713408
        %v692 = vunpack.c.0.s8 %v691
        %v693 = vlaneseq
        %v694 = vshrl.u32 %v693, 7
        %v695 = vsub.s32 %v692, %v694
        %v696 = vrot.slane %v682, %v695
        %v697 = vcombine.low %v664, %v680
        %v698 = vcombine.high %v664, %v680
        %v700 = vunpack.c.l.s4 1934713408
        %v701 = vunpack.c.0.s8 %v700
        %v702 = vlaneseq
        %v703 = vshrl.u32 %v702, 7
        %v704 = vsub.s32 %v701, %v703
        %v705 = vrot.slane %v697, %v704
        %v707 = vunpack.c.l.s4 1934713408
        %v708 = vunpack.c.0.s8 %v707
        %v709 = vlaneseq
        %v710 = vshrl.u32 %v709, 7
        %v711 = vsub.s32 %v708, %v710
        %v712 = vrot.slane %v698, %v711
        %v713 = vcombine.high %v689, 0.0
        %v714 = vcombine.high %v696, 0.0
        %v715 = vcombine.high %v705, 0.0
        %v716 = vcombine.high %v712, 0.0
        %v717 = vcombine.low %v689, %v696
        %v719 = vunpack.c.l.s4 1983009808
        %v720 = vunpack.c.0.s8 %v719
        %v721 = vlaneseq
        %v722 = vshrl.u32 %v721, 7
        %v723 = vsub.s32 %v720, %v722
        %v724 = vrot.slane %v717, %v723
        %v725 = vcombine.low %v713, %v714
        %v727 = vunpack.c.l.s4 1983009808
        %v728 = vunpack.c.0.s8 %v727
        %v729 = vlaneseq
        %v730 = vshrl.u32 %v729, 7
        %v731 = vsub.s32 %v728, %v730
        %v732 = vrot.slane %v725, %v731
        %v733 = vcombine.low %v705, %v712
        %v735 = vunpack.c.l.s4 1983009808
        %v736 = vunpack.c.0.s8 %v735
        %v737 = vlaneseq
        %v738 = vshrl.u32 %v737, 7
        %v739 = vsub.s32 %v736, %v738
        %v740 = vrot.slane %v733, %v739
        %v741 = vcombine.low %v715, %v716
        %v743 = vunpack.c.l.s4 1983009808
        %v744 = vunpack.c.0.s8 %v743
        %v745 = vlaneseq
        %v746 = vshrl.u32 %v745, 7
        %v747 = vsub.s32 %v744, %v746
        %v748 = vrot.slane %v741, %v747
        %v749 = vcombine.low %v724, %v732
        %v750 = vcombine.high %v724, %v732
        %v752 = vunpack.c.l.s4 1934713408
        %v753 = vunpack.c.0.s8 %v752
        %v754 = vlaneseq
        %v755 = vshrl.u32 %v754, 7
        %v756 = vsub.s32 %v753, %v755
        %v757 = vrot.slane %v749, %v756
        %v759 = vunpack.c.l.s4 1934713408
        %v760 = vunpack.c.0.s8 %v759
        %v761 = vlaneseq
        %v762 = vshrl.u32 %v761, 7
        %v763 = vsub.s32 %v760, %v762
        %v764 = vrot.slane %v750, %v763
        %v765 = vcombine.low %v740, %v748
        %v766 = vcombine.high %v740, %v748
        %v768 = vunpack.c.l.s4 1934713408
        %v769 = vunpack.c.0.s8 %v768
        %v770 = vlaneseq
        %v771 = vshrl.u32 %v770, 7
        %v772 = vsub.s32 %v769, %v771
        %v773 = vrot.slane %v765, %v772
        %v775 = vunpack.c.l.s4 1934713408
        %v776 = vunpack.c.0.s8 %v775
        %v777 = vlaneseq
        %v778 = vshrl.u32 %v777, 7
        %v779 = vsub.s32 %v776, %v778
        %v780 = vrot.slane %v766, %v779
        %v781 = vcombine.low %v757, %v773
        %v782 = vcombine.high %v757, %v773
        %v783 = vcombine.low %v764, %v780
        %v784 = vcombine.high %v764, %v780
        %v786 = vlaneseq
        %v787 = vshrl.u32 %v786, 7
        %v788 = vsub.s32 0, %v787
        %v789 = vrot.slane %v256, %v788
        %vm791 = vcmask 64512
        %v793 = vsel %vm791, %v485, 0
        %v796 = vsel %vm791, %v633, 0
        %798 = vmatprep.subr.mxu0 0.0
        %799 = vmatpush1.xpose.msra.mxu0 0.0
        %800 = vmatprep.subr.mxu0 0.0
        %801 = vmatpush1.xpose.msra.mxu0 0.0
        %802 = vmatprep.subr.mxu0 0.0
        %803 = vmatpush1.xpose.msra.mxu0 0.0
        %804 = vmatprep.subr.mxu0 0.0
        %805 = vmatpush1.xpose.msra.mxu0 0.0
        %806 = vmatprep.subr.mxu0 0.0
        %807 = vmatpush1.xpose.msra.mxu0 0.0
        %808 = vmatprep.subr.mxu0 0.0
        %809 = vmatpush1.xpose.msra.mxu0 0.0
        %810 = vmatprep.subr.mxu0 0.0
        %811 = vmatpush1.xpose.msra.mxu0 0.0
        %812 = vmatprep.subr.mxu0 0.0
        %813 = vmatpush1.xpose.msra.mxu0 0.0
        %814 = vmatprep.subr.mxu0 0.0
        %815 = vmatpush1.xpose.msra.mxu0 0.0
        %816 = vmatprep.subr.mxu0 0.0
        %817 = vmatpush1.xpose.msra.mxu0 0.0
        %818 = vmatprep.subr.mxu0 0.0
        %819 = vmatpush1.xpose.msra.mxu0 0.0
        %820 = vmatprep.subr.mxu0 0.0
        %821 = vmatpush1.xpose.msra.mxu0 0.0
        %822 = vmatprep.subr.mxu0 0.0
        %823 = vmatpush1.xpose.msra.mxu0 0.0
        %824 = vmatprep.subr.mxu0 0.0
        %825 = vmatpush1.xpose.msra.mxu0 0.0
        %826 = vmatprep.subr.mxu0 0.0
        %827 = vmatpush1.xpose.msra.mxu0 0.0
        %828 = vmatprep.subr.mxu0 0.0
        %829 = vmatpush1.xpose.msra.mxu0 %v796
        %830 = vmatprep.subr.mxu0 0.0
        %831 = vmatpush2.xpose.msra.mxu0 0.0
        %832 = vmatprep.subr.mxu0 0.0
        %833 = vmatpush2.xpose.msra.mxu0 0.0
        %834 = vmatprep.subr.mxu0 0.0
        %835 = vmatpush2.xpose.msra.mxu0 0.0
        %836 = vmatprep.subr.mxu0 0.0
        %837 = vmatpush2.xpose.msra.mxu0 0.0
        %838 = vmatprep.subr.mxu0 0.0
        %839 = vmatpush2.xpose.msra.mxu0 0.0
        %840 = vmatprep.subr.mxu0 0.0
        %841 = vmatpush2.xpose.msra.mxu0 0.0
        %842 = vmatprep.subr.mxu0 0.0
        %843 = vmatpush2.xpose.msra.mxu0 0.0
        %844 = vmatprep.subr.mxu0 0.0
        %845 = vmatpush2.xpose.msra.mxu0 0.0
        %846 = vmatprep.subr.mxu0 0.0
        %847 = vmatpush2.xpose.msra.mxu0 0.0
        %848 = vmatprep.subr.mxu0 0.0
        %849 = vmatpush2.xpose.msra.mxu0 0.0
        %850 = vmatprep.subr.mxu0 0.0
        %851 = vmatpush2.xpose.msra.mxu0 0.0
        %852 = vmatprep.subr.mxu0 0.0
        %853 = vmatpush2.xpose.msra.mxu0 0.0
        %854 = vmatprep.subr.mxu0 0.0
        %855 = vmatpush2.xpose.msra.mxu0 0.0
        %856 = vmatprep.subr.mxu0 0.0
        %857 = vmatpush2.xpose.msra.mxu0 0.0
        %858 = vmatprep.subr.mxu0 0.0
        %859 = vmatpush2.xpose.msra.mxu0 0.0
        %860 = vmatprep.subr.mxu0 0.0
        %861 = vmatpush2.xpose.msra.mxu0 0.0
        %862 = vmatprep.mubr.f32.mxu0 0.0
        %863 = vmatmul.mubr.f32.gmra.mxu0 %v793
        %v864 = vpop.f32.mrf.mxu0
        %v865 = vadd.f32 %v789, %v864
        %v866 = vpop.f32.mrf.mxu0
        %867 = vdwg.mxu0
        %v869 = vsel %vm791, %v486, 0
        %v872 = vsel %vm791, %v634, 0
        %874 = vmatprep.subr.mxu0 0.0
        %875 = vmatpush1.xpose.msra.mxu0 0.0
        %876 = vmatprep.subr.mxu0 0.0
        %877 = vmatpush1.xpose.msra.mxu0 0.0
        %878 = vmatprep.subr.mxu0 0.0
        %879 = vmatpush1.xpose.msra.mxu0 0.0
        %880 = vmatprep.subr.mxu0 0.0
        %881 = vmatpush1.xpose.msra.mxu0 0.0
        %882 = vmatprep.subr.mxu0 0.0
        %883 = vmatpush1.xpose.msra.mxu0 0.0
        %884 = vmatprep.subr.mxu0 0.0
        %885 = vmatpush1.xpose.msra.mxu0 0.0
        %886 = vmatprep.subr.mxu0 0.0
        %887 = vmatpush1.xpose.msra.mxu0 0.0
        %888 = vmatprep.subr.mxu0 0.0
        %889 = vmatpush1.xpose.msra.mxu0 0.0
        %890 = vmatprep.subr.mxu0 0.0
        %891 = vmatpush1.xpose.msra.mxu0 0.0
        %892 = vmatprep.subr.mxu0 0.0
        %893 = vmatpush1.xpose.msra.mxu0 0.0
        %894 = vmatprep.subr.mxu0 0.0
        %895 = vmatpush1.xpose.msra.mxu0 0.0
        %896 = vmatprep.subr.mxu0 0.0
        %897 = vmatpush1.xpose.msra.mxu0 0.0
        %898 = vmatprep.subr.mxu0 0.0
        %899 = vmatpush1.xpose.msra.mxu0 0.0
        %900 = vmatprep.subr.mxu0 0.0
        %901 = vmatpush1.xpose.msra.mxu0 0.0
        %902 = vmatprep.subr.mxu0 0.0
        %903 = vmatpush1.xpose.msra.mxu0 0.0
        %904 = vmatprep.subr.mxu0 0.0
        %905 = vmatpush1.xpose.msra.mxu0 %v872
        %906 = vmatprep.subr.mxu0 0.0
        %907 = vmatpush2.xpose.msra.mxu0 0.0
        %908 = vmatprep.subr.mxu0 0.0
        %909 = vmatpush2.xpose.msra.mxu0 0.0
        %910 = vmatprep.subr.mxu0 0.0
        %911 = vmatpush2.xpose.msra.mxu0 0.0
        %912 = vmatprep.subr.mxu0 0.0
        %913 = vmatpush2.xpose.msra.mxu0 0.0
        %914 = vmatprep.subr.mxu0 0.0
        %915 = vmatpush2.xpose.msra.mxu0 0.0
        %916 = vmatprep.subr.mxu0 0.0
        %917 = vmatpush2.xpose.msra.mxu0 0.0
        %918 = vmatprep.subr.mxu0 0.0
        %919 = vmatpush2.xpose.msra.mxu0 0.0
        %920 = vmatprep.subr.mxu0 0.0
        %921 = vmatpush2.xpose.msra.mxu0 0.0
        %922 = vmatprep.subr.mxu0 0.0
        %923 = vmatpush2.xpose.msra.mxu0 0.0
        %924 = vmatprep.subr.mxu0 0.0
        %925 = vmatpush2.xpose.msra.mxu0 0.0
        %926 = vmatprep.subr.mxu0 0.0
        %927 = vmatpush2.xpose.msra.mxu0 0.0
        %928 = vmatprep.subr.mxu0 0.0
        %929 = vmatpush2.xpose.msra.mxu0 0.0
        %930 = vmatprep.subr.mxu0 0.0
        %931 = vmatpush2.xpose.msra.mxu0 0.0
        %932 = vmatprep.subr.mxu0 0.0
        %933 = vmatpush2.xpose.msra.mxu0 0.0
        %934 = vmatprep.subr.mxu0 0.0
        %935 = vmatpush2.xpose.msra.mxu0 0.0
        %936 = vmatprep.subr.mxu0 0.0
        %937 = vmatpush2.xpose.msra.mxu0 0.0
        %938 = vmatprep.mubr.f32.mxu0 0.0
        %939 = vmatmul.mubr.f32.gmra.mxu0 %v869
        %v940 = vpop.f32.mrf.mxu0
        %v941 = vadd.f32 %v789, %v940
        %v942 = vpop.f32.mrf.mxu0
        %943 = vdwg.mxu0
        %v945 = vsel %vm791, %v487, 0
        %v948 = vsel %vm791, %v635, 0
        %950 = vmatprep.subr.mxu0 0.0
        %951 = vmatpush1.xpose.msra.mxu0 0.0
        %952 = vmatprep.subr.mxu0 0.0
        %953 = vmatpush1.xpose.msra.mxu0 0.0
        %954 = vmatprep.subr.mxu0 0.0
        %955 = vmatpush1.xpose.msra.mxu0 0.0
        %956 = vmatprep.subr.mxu0 0.0
        %957 = vmatpush1.xpose.msra.mxu0 0.0
        %958 = vmatprep.subr.mxu0 0.0
        %959 = vmatpush1.xpose.msra.mxu0 0.0
        %960 = vmatprep.subr.mxu0 0.0
        %961 = vmatpush1.xpose.msra.mxu0 0.0
        %962 = vmatprep.subr.mxu0 0.0
        %963 = vmatpush1.xpose.msra.mxu0 0.0
        %964 = vmatprep.subr.mxu0 0.0
        %965 = vmatpush1.xpose.msra.mxu0 0.0
        %966 = vmatprep.subr.mxu0 0.0
        %967 = vmatpush1.xpose.msra.mxu0 0.0
        %968 = vmatprep.subr.mxu0 0.0
        %969 = vmatpush1.xpose.msra.mxu0 0.0
        %970 = vmatprep.subr.mxu0 0.0
        %971 = vmatpush1.xpose.msra.mxu0 0.0
        %972 = vmatprep.subr.mxu0 0.0
        %973 = vmatpush1.xpose.msra.mxu0 0.0
        %974 = vmatprep.subr.mxu0 0.0
        %975 = vmatpush1.xpose.msra.mxu0 0.0
        %976 = vmatprep.subr.mxu0 0.0
        %977 = vmatpush1.xpose.msra.mxu0 0.0
        %978 = vmatprep.subr.mxu0 0.0
        %979 = vmatpush1.xpose.msra.mxu0 0.0
        %980 = vmatprep.subr.mxu0 0.0
        %981 = vmatpush1.xpose.msra.mxu0 %v948
        %982 = vmatprep.subr.mxu0 0.0
        %983 = vmatpush2.xpose.msra.mxu0 0.0
        %984 = vmatprep.subr.mxu0 0.0
        %985 = vmatpush2.xpose.msra.mxu0 0.0
        %986 = vmatprep.subr.mxu0 0.0
        %987 = vmatpush2.xpose.msra.mxu0 0.0
        %988 = vmatprep.subr.mxu0 0.0
        %989 = vmatpush2.xpose.msra.mxu0 0.0
        %990 = vmatprep.subr.mxu0 0.0
        %991 = vmatpush2.xpose.msra.mxu0 0.0
        %992 = vmatprep.subr.mxu0 0.0
        %993 = vmatpush2.xpose.msra.mxu0 0.0
        %994 = vmatprep.subr.mxu0 0.0
        %995 = vmatpush2.xpose.msra.mxu0 0.0
        %996 = vmatprep.subr.mxu0 0.0
        %997 = vmatpush2.xpose.msra.mxu0 0.0
        %998 = vmatprep.subr.mxu0 0.0
        %999 = vmatpush2.xpose.msra.mxu0 0.0
        %1000 = vmatprep.subr.mxu0 0.0
        %1001 = vmatpush2.xpose.msra.mxu0 0.0
        %1002 = vmatprep.subr.mxu0 0.0
        %1003 = vmatpush2.xpose.msra.mxu0 0.0
        %1004 = vmatprep.subr.mxu0 0.0
        %1005 = vmatpush2.xpose.msra.mxu0 0.0
        %1006 = vmatprep.subr.mxu0 0.0
        %1007 = vmatpush2.xpose.msra.mxu0 0.0
        %1008 = vmatprep.subr.mxu0 0.0
        %1009 = vmatpush2.xpose.msra.mxu0 0.0
        %1010 = vmatprep.subr.mxu0 0.0
        %1011 = vmatpush2.xpose.msra.mxu0 0.0
        %1012 = vmatprep.subr.mxu0 0.0
        %1013 = vmatpush2.xpose.msra.mxu0 0.0
        %1014 = vmatprep.mubr.f32.mxu0 0.0
        %1015 = vmatmul.mubr.f32.gmra.mxu0 %v945
        %v1016 = vpop.f32.mrf.mxu0
        %v1017 = vadd.f32 %v789, %v1016
        %v1018 = vpop.f32.mrf.mxu0
        %1019 = vdwg.mxu0
        %v1021 = vsel %vm791, %v488, 0
        %v1024 = vsel %vm791, %v636, 0
        %1026 = vmatprep.subr.mxu0 0.0
        %1027 = vmatpush1.xpose.msra.mxu0 0.0
        %1028 = vmatprep.subr.mxu0 0.0
        %1029 = vmatpush1.xpose.msra.mxu0 0.0
        %1030 = vmatprep.subr.mxu0 0.0
        %1031 = vmatpush1.xpose.msra.mxu0 0.0
        %1032 = vmatprep.subr.mxu0 0.0
        %1033 = vmatpush1.xpose.msra.mxu0 0.0
        %1034 = vmatprep.subr.mxu0 0.0
        %1035 = vmatpush1.xpose.msra.mxu0 0.0
        %1036 = vmatprep.subr.mxu0 0.0
        %1037 = vmatpush1.xpose.msra.mxu0 0.0
        %1038 = vmatprep.subr.mxu0 0.0
        %1039 = vmatpush1.xpose.msra.mxu0 0.0
        %1040 = vmatprep.subr.mxu0 0.0
        %1041 = vmatpush1.xpose.msra.mxu0 0.0
        %1042 = vmatprep.subr.mxu0 0.0
        %1043 = vmatpush1.xpose.msra.mxu0 0.0
        %1044 = vmatprep.subr.mxu0 0.0
        %1045 = vmatpush1.xpose.msra.mxu0 0.0
        %1046 = vmatprep.subr.mxu0 0.0
        %1047 = vmatpush1.xpose.msra.mxu0 0.0
        %1048 = vmatprep.subr.mxu0 0.0
        %1049 = vmatpush1.xpose.msra.mxu0 0.0
        %1050 = vmatprep.subr.mxu0 0.0
        %1051 = vmatpush1.xpose.msra.mxu0 0.0
        %1052 = vmatprep.subr.mxu0 0.0
        %1053 = vmatpush1.xpose.msra.mxu0 0.0
        %1054 = vmatprep.subr.mxu0 0.0
        %1055 = vmatpush1.xpose.msra.mxu0 0.0
        %1056 = vmatprep.subr.mxu0 0.0
        %1057 = vmatpush1.xpose.msra.mxu0 %v1024
        %1058 = vmatprep.subr.mxu0 0.0
        %1059 = vmatpush2.xpose.msra.mxu0 0.0
        %1060 = vmatprep.subr.mxu0 0.0
        %1061 = vmatpush2.xpose.msra.mxu0 0.0
        %1062 = vmatprep.subr.mxu0 0.0
        %1063 = vmatpush2.xpose.msra.mxu0 0.0
        %1064 = vmatprep.subr.mxu0 0.0
        %1065 = vmatpush2.xpose.msra.mxu0 0.0
        %1066 = vmatprep.subr.mxu0 0.0
        %1067 = vmatpush2.xpose.msra.mxu0 0.0
        %1068 = vmatprep.subr.mxu0 0.0
        %1069 = vmatpush2.xpose.msra.mxu0 0.0
        %1070 = vmatprep.subr.mxu0 0.0
        %1071 = vmatpush2.xpose.msra.mxu0 0.0
        %1072 = vmatprep.subr.mxu0 0.0
        %1073 = vmatpush2.xpose.msra.mxu0 0.0
        %1074 = vmatprep.subr.mxu0 0.0
        %1075 = vmatpush2.xpose.msra.mxu0 0.0
        %1076 = vmatprep.subr.mxu0 0.0
        %1077 = vmatpush2.xpose.msra.mxu0 0.0
        %1078 = vmatprep.subr.mxu0 0.0
        %1079 = vmatpush2.xpose.msra.mxu0 0.0
        %1080 = vmatprep.subr.mxu0 0.0
        %1081 = vmatpush2.xpose.msra.mxu0 0.0
        %1082 = vmatprep.subr.mxu0 0.0
        %1083 = vmatpush2.xpose.msra.mxu0 0.0
        %1084 = vmatprep.subr.mxu0 0.0
        %1085 = vmatpush2.xpose.msra.mxu0 0.0
        %1086 = vmatprep.subr.mxu0 0.0
        %1087 = vmatpush2.xpose.msra.mxu0 0.0
        %1088 = vmatprep.subr.mxu0 0.0
        %1089 = vmatpush2.xpose.msra.mxu0 0.0
        %1090 = vmatprep.mubr.f32.mxu0 0.0
        %1091 = vmatmul.mubr.f32.gmra.mxu0 %v1021
        %v1092 = vpop.f32.mrf.mxu0
        %v1093 = vadd.f32 %v789, %v1092
        %v1094 = vpop.f32.mrf.mxu0
        %1095 = vdwg.mxu0
        %v1096 = vsel %vm791, %v865, -inf
        %1097 = vmax.xlane.f32.xlu0 %v1096
        %v1098 = vpop.xlane.xlu0 %1097
        %v1099 = vsel %vm791, %v941, -inf
        %1100 = vmax.xlane.f32.xlu0 %v1099
        %v1101 = vpop.xlane.xlu0 %1100
        %v1102 = vsel %vm791, %v1017, -inf
        %1103 = vmax.xlane.f32.xlu0 %v1102
        %v1104 = vpop.xlane.xlu0 %1103
        %v1105 = vsel %vm791, %v1093, -inf
        %1106 = vmax.xlane.f32.xlu0 %v1105
        %v1107 = vpop.xlane.xlu0 %1106
        %v1108 = vsub.f32 %v865, %v1098
        %v1109 = vsub.f32 %v941, %v1101
        %v1110 = vsub.f32 %v1017, %v1104
        %v1111 = vsub.f32 %v1093, %v1107
        %v1112 = vmul.f32 %v1108, 1.442695
        %v1113 = vpow.pop %v1112
        %v1114 = vmul.f32 %v1109, 1.442695
        %v1115 = vpow.pop %v1114
        %v1116 = vmul.f32 %v1110, 1.442695
        %v1117 = vpow.pop %v1116
        %v1118 = vmul.f32 %v1111, 1.442695
        %v1119 = vpow.pop %v1118
        %v1120 = vsel %vm791, %v1113, 0.0
        %1121 = vadd.xlane.f32.xlu0 %v1120
        %v1122 = vpop.xlane.xlu0 %1121
        %v1123 = vsel %vm791, %v1115, 0.0
        %1124 = vadd.xlane.f32.xlu0 %v1123
        %v1125 = vpop.xlane.xlu0 %1124
        %v1126 = vsel %vm791, %v1117, 0.0
        %1127 = vadd.xlane.f32.xlu0 %v1126
        %v1128 = vpop.xlane.xlu0 %1127
        %v1129 = vsel %vm791, %v1119, 0.0
        %1130 = vadd.xlane.f32.xlu0 %v1129
        %v1131 = vpop.xlane.xlu0 %1130
        %v1132 = vrcp.pop %v1122
        %v1133 = vrcp.pop %v1125
        %v1134 = vrcp.pop %v1128
        %v1135 = vrcp.pop %v1131
        %v1136 = vmul.f32 %v1113, %v1132
        %v1137 = vmul.f32 %v1115, %v1133
        %v1138 = vmul.f32 %v1117, %v1134
        %v1139 = vmul.f32 %v1119, %v1135
        %v1141 = vsel %vm791, %v1136, 0
        %1143 = vmatprep.subr.mxu0 0.0
        %1144 = vmatpush1.msra.mxu0 0.0
        %1145 = vmatprep.subr.mxu0 0.0
        %1146 = vmatpush1.msra.mxu0 0.0
        %1147 = vmatprep.subr.mxu0 0.0
        %1148 = vmatpush1.msra.mxu0 0.0
        %1149 = vmatprep.subr.mxu0 0.0
        %1150 = vmatpush1.msra.mxu0 0.0
        %1151 = vmatprep.subr.mxu0 0.0
        %1152 = vmatpush1.msra.mxu0 0.0
        %1153 = vmatprep.subr.mxu0 0.0
        %1154 = vmatpush1.msra.mxu0 0.0
        %1155 = vmatprep.subr.mxu0 0.0
        %1156 = vmatpush1.msra.mxu0 0.0
        %1157 = vmatprep.subr.mxu0 0.0
        %1158 = vmatpush1.msra.mxu0 0.0
        %1159 = vmatprep.subr.mxu0 0.0
        %1160 = vmatpush1.msra.mxu0 0.0
        %1161 = vmatprep.subr.mxu0 0.0
        %1162 = vmatpush1.msra.mxu0 0.0
        %1163 = vmatprep.subr.mxu0 0.0
        %1164 = vmatpush1.msra.mxu0 0.0
        %1165 = vmatprep.subr.mxu0 0.0
        %1166 = vmatpush1.msra.mxu0 0.0
        %1167 = vmatprep.subr.mxu0 0.0
        %1168 = vmatpush1.msra.mxu0 0.0
        %1169 = vmatprep.subr.mxu0 0.0
        %1170 = vmatpush1.msra.mxu0 0.0
        %1171 = vmatprep.subr.mxu0 0.0
        %1172 = vmatpush1.msra.mxu0 0.0
        %1173 = vmatprep.subr.mxu0 0.0
        %1174 = vmatpush1.msra.mxu0 %v781
        %1175 = vmatprep.subr.mxu0 0.0
        %1176 = vmatpush2.msra.mxu0 0.0
        %1177 = vmatprep.subr.mxu0 0.0
        %1178 = vmatpush2.msra.mxu0 0.0
        %1179 = vmatprep.subr.mxu0 0.0
        %1180 = vmatpush2.msra.mxu0 0.0
        %1181 = vmatprep.subr.mxu0 0.0
        %1182 = vmatpush2.msra.mxu0 0.0
        %1183 = vmatprep.subr.mxu0 0.0
        %1184 = vmatpush2.msra.mxu0 0.0
        %1185 = vmatprep.subr.mxu0 0.0
        %1186 = vmatpush2.msra.mxu0 0.0
        %1187 = vmatprep.subr.mxu0 0.0
        %1188 = vmatpush2.msra.mxu0 0.0
        %1189 = vmatprep.subr.mxu0 0.0
        %1190 = vmatpush2.msra.mxu0 0.0
        %1191 = vmatprep.subr.mxu0 0.0
        %1192 = vmatpush2.msra.mxu0 0.0
        %1193 = vmatprep.subr.mxu0 0.0
        %1194 = vmatpush2.msra.mxu0 0.0
        %1195 = vmatprep.subr.mxu0 0.0
        %1196 = vmatpush2.msra.mxu0 0.0
        %1197 = vmatprep.subr.mxu0 0.0
        %1198 = vmatpush2.msra.mxu0 0.0
        %1199 = vmatprep.subr.mxu0 0.0
        %1200 = vmatpush2.msra.mxu0 0.0
        %1201 = vmatprep.subr.mxu0 0.0
        %1202 = vmatpush2.msra.mxu0 0.0
        %1203 = vmatprep.subr.mxu0 0.0
        %1204 = vmatpush2.msra.mxu0 0.0
        %1205 = vmatprep.subr.mxu0 0.0
        %1206 = vmatpush2.msra.mxu0 0.0
        %1207 = vmatprep.mubr.f32.mxu0 0.0
        %1208 = vmatmul.mubr.f32.gmra.mxu0 %v1141
        %v1209 = vpop.f32.mrf.mxu0
        %v1210 = vadd.f32 0.0, %v1209
        %v1211 = vpop.f32.mrf.mxu0
        %1212 = vdwg.mxu0
        %v1214 = vsel %vm791, %v1137, 0
        %1216 = vmatprep.subr.mxu0 0.0
        %1217 = vmatpush1.msra.mxu0 0.0
        %1218 = vmatprep.subr.mxu0 0.0
        %1219 = vmatpush1.msra.mxu0 0.0
        %1220 = vmatprep.subr.mxu0 0.0
        %1221 = vmatpush1.msra.mxu0 0.0
        %1222 = vmatprep.subr.mxu0 0.0
        %1223 = vmatpush1.msra.mxu0 0.0
        %1224 = vmatprep.subr.mxu0 0.0
        %1225 = vmatpush1.msra.mxu0 0.0
        %1226 = vmatprep.subr.mxu0 0.0
        %1227 = vmatpush1.msra.mxu0 0.0
        %1228 = vmatprep.subr.mxu0 0.0
        %1229 = vmatpush1.msra.mxu0 0.0
        %1230 = vmatprep.subr.mxu0 0.0
        %1231 = vmatpush1.msra.mxu0 0.0
        %1232 = vmatprep.subr.mxu0 0.0
        %1233 = vmatpush1.msra.mxu0 0.0
        %1234 = vmatprep.subr.mxu0 0.0
        %1235 = vmatpush1.msra.mxu0 0.0
        %1236 = vmatprep.subr.mxu0 0.0
        %1237 = vmatpush1.msra.mxu0 0.0
        %1238 = vmatprep.subr.mxu0 0.0
        %1239 = vmatpush1.msra.mxu0 0.0
        %1240 = vmatprep.subr.mxu0 0.0
        %1241 = vmatpush1.msra.mxu0 0.0
        %1242 = vmatprep.subr.mxu0 0.0
        %1243 = vmatpush1.msra.mxu0 0.0
        %1244 = vmatprep.subr.mxu0 0.0
        %1245 = vmatpush1.msra.mxu0 0.0
        %1246 = vmatprep.subr.mxu0 0.0
        %1247 = vmatpush1.msra.mxu0 %v782
        %1248 = vmatprep.subr.mxu0 0.0
        %1249 = vmatpush2.msra.mxu0 0.0
        %1250 = vmatprep.subr.mxu0 0.0
        %1251 = vmatpush2.msra.mxu0 0.0
        %1252 = vmatprep.subr.mxu0 0.0
        %1253 = vmatpush2.msra.mxu0 0.0
        %1254 = vmatprep.subr.mxu0 0.0
        %1255 = vmatpush2.msra.mxu0 0.0
        %1256 = vmatprep.subr.mxu0 0.0
        %1257 = vmatpush2.msra.mxu0 0.0
        %1258 = vmatprep.subr.mxu0 0.0
        %1259 = vmatpush2.msra.mxu0 0.0
        %1260 = vmatprep.subr.mxu0 0.0
        %1261 = vmatpush2.msra.mxu0 0.0
        %1262 = vmatprep.subr.mxu0 0.0
        %1263 = vmatpush2.msra.mxu0 0.0
        %1264 = vmatprep.subr.mxu0 0.0
        %1265 = vmatpush2.msra.mxu0 0.0
        %1266 = vmatprep.subr.mxu0 0.0
        %1267 = vmatpush2.msra.mxu0 0.0
        %1268 = vmatprep.subr.mxu0 0.0
        %1269 = vmatpush2.msra.mxu0 0.0
        %1270 = vmatprep.subr.mxu0 0.0
        %1271 = vmatpush2.msra.mxu0 0.0
        %1272 = vmatprep.subr.mxu0 0.0
        %1273 = vmatpush2.msra.mxu0 0.0
        %1274 = vmatprep.subr.mxu0 0.0
        %1275 = vmatpush2.msra.mxu0 0.0
        %1276 = vmatprep.subr.mxu0 0.0
        %1277 = vmatpush2.msra.mxu0 0.0
        %1278 = vmatprep.subr.mxu0 0.0
        %1279 = vmatpush2.msra.mxu0 0.0
        %1280 = vmatprep.mubr.f32.mxu0 0.0
        %1281 = vmatmul.mubr.f32.gmra.mxu0 %v1214
        %v1282 = vpop.f32.mrf.mxu0
        %v1283 = vadd.f32 0.0, %v1282
        %v1284 = vpop.f32.mrf.mxu0
        %1285 = vdwg.mxu0
        %v1287 = vsel %vm791, %v1138, 0
        %1289 = vmatprep.subr.mxu0 0.0
        %1290 = vmatpush1.msra.mxu0 0.0
        %1291 = vmatprep.subr.mxu0 0.0
        %1292 = vmatpush1.msra.mxu0 0.0
        %1293 = vmatprep.subr.mxu0 0.0
        %1294 = vmatpush1.msra.mxu0 0.0
        %1295 = vmatprep.subr.mxu0 0.0
        %1296 = vmatpush1.msra.mxu0 0.0
        %1297 = vmatprep.subr.mxu0 0.0
        %1298 = vmatpush1.msra.mxu0 0.0
        %1299 = vmatprep.subr.mxu0 0.0
        %1300 = vmatpush1.msra.mxu0 0.0
        %1301 = vmatprep.subr.mxu0 0.0
        %1302 = vmatpush1.msra.mxu0 0.0
        %1303 = vmatprep.subr.mxu0 0.0
        %1304 = vmatpush1.msra.mxu0 0.0
        %1305 = vmatprep.subr.mxu0 0.0
        %1306 = vmatpush1.msra.mxu0 0.0
        %1307 = vmatprep.subr.mxu0 0.0
        %1308 = vmatpush1.msra.mxu0 0.0
        %1309 = vmatprep.subr.mxu0 0.0
        %1310 = vmatpush1.msra.mxu0 0.0
        %1311 = vmatprep.subr.mxu0 0.0
        %1312 = vmatpush1.msra.mxu0 0.0
        %1313 = vmatprep.subr.mxu0 0.0
        %1314 = vmatpush1.msra.mxu0 0.0
        %1315 = vmatprep.subr.mxu0 0.0
        %1316 = vmatpush1.msra.mxu0 0.0
        %1317 = vmatprep.subr.mxu0 0.0
        %1318 = vmatpush1.msra.mxu0 0.0
        %1319 = vmatprep.subr.mxu0 0.0
        %1320 = vmatpush1.msra.mxu0 %v783
        %1321 = vmatprep.subr.mxu0 0.0
        %1322 = vmatpush2.msra.mxu0 0.0
        %1323 = vmatprep.subr.mxu0 0.0
        %1324 = vmatpush2.msra.mxu0 0.0
        %1325 = vmatprep.subr.mxu0 0.0
        %1326 = vmatpush2.msra.mxu0 0.0
        %1327 = vmatprep.subr.mxu0 0.0
        %1328 = vmatpush2.msra.mxu0 0.0
        %1329 = vmatprep.subr.mxu0 0.0
        %1330 = vmatpush2.msra.mxu0 0.0
        %1331 = vmatprep.subr.mxu0 0.0
        %1332 = vmatpush2.msra.mxu0 0.0
        %1333 = vmatprep.subr.mxu0 0.0
        %1334 = vmatpush2.msra.mxu0 0.0
        %1335 = vmatprep.subr.mxu0 0.0
        %1336 = vmatpush2.msra.mxu0 0.0
        %1337 = vmatprep.subr.mxu0 0.0
        %1338 = vmatpush2.msra.mxu0 0.0
        %1339 = vmatprep.subr.mxu0 0.0
        %1340 = vmatpush2.msra.mxu0 0.0
        %1341 = vmatprep.subr.mxu0 0.0
        %1342 = vmatpush2.msra.mxu0 0.0
        %1343 = vmatprep.subr.mxu0 0.0
        %1344 = vmatpush2.msra.mxu0 0.0
        %1345 = vmatprep.subr.mxu0 0.0
        %1346 = vmatpush2.msra.mxu0 0.0
        %1347 = vmatprep.subr.mxu0 0.0
        %1348 = vmatpush2.msra.mxu0 0.0
        %1349 = vmatprep.subr.mxu0 0.0
        %1350 = vmatpush2.msra.mxu0 0.0
        %1351 = vmatprep.subr.mxu0 0.0
        %1352 = vmatpush2.msra.mxu0 0.0
        %1353 = vmatprep.mubr.f32.mxu0 0.0
        %1354 = vmatmul.mubr.f32.gmra.mxu0 %v1287
        %v1355 = vpop.f32.mrf.mxu0
        %v1356 = vadd.f32 0.0, %v1355
        %v1357 = vpop.f32.mrf.mxu0
        %1358 = vdwg.mxu0
        %v1360 = vsel %vm791, %v1139, 0
        %1362 = vmatprep.subr.mxu0 0.0
        %1363 = vmatpush1.msra.mxu0 0.0
        %1364 = vmatprep.subr.mxu0 0.0
        %1365 = vmatpush1.msra.mxu0 0.0
        %1366 = vmatprep.subr.mxu0 0.0
        %1367 = vmatpush1.msra.mxu0 0.0
        %1368 = vmatprep.subr.mxu0 0.0
        %1369 = vmatpush1.msra.mxu0 0.0
        %1370 = vmatprep.subr.mxu0 0.0
        %1371 = vmatpush1.msra.mxu0 0.0
        %1372 = vmatprep.subr.mxu0 0.0
        %1373 = vmatpush1.msra.mxu0 0.0
        %1374 = vmatprep.subr.mxu0 0.0
        %1375 = vmatpush1.msra.mxu0 0.0
        %1376 = vmatprep.subr.mxu0 0.0
        %1377 = vmatpush1.msra.mxu0 0.0
        %1378 = vmatprep.subr.mxu0 0.0
        %1379 = vmatpush1.msra.mxu0 0.0
        %1380 = vmatprep.subr.mxu0 0.0
        %1381 = vmatpush1.msra.mxu0 0.0
        %1382 = vmatprep.subr.mxu0 0.0
        %1383 = vmatpush1.msra.mxu0 0.0
        %1384 = vmatprep.subr.mxu0 0.0
        %1385 = vmatpush1.msra.mxu0 0.0
        %1386 = vmatprep.subr.mxu0 0.0
        %1387 = vmatpush1.msra.mxu0 0.0
        %1388 = vmatprep.subr.mxu0 0.0
        %1389 = vmatpush1.msra.mxu0 0.0
        %1390 = vmatprep.subr.mxu0 0.0
        %1391 = vmatpush1.msra.mxu0 0.0
        %1392 = vmatprep.subr.mxu0 0.0
        %1393 = vmatpush1.msra.mxu0 %v784
        %1394 = vmatprep.subr.mxu0 0.0
        %1395 = vmatpush2.msra.mxu0 0.0
        %1396 = vmatprep.subr.mxu0 0.0
        %1397 = vmatpush2.msra.mxu0 0.0
        %1398 = vmatprep.subr.mxu0 0.0
        %1399 = vmatpush2.msra.mxu0 0.0
        %1400 = vmatprep.subr.mxu0 0.0
        %1401 = vmatpush2.msra.mxu0 0.0
        %1402 = vmatprep.subr.mxu0 0.0
        %1403 = vmatpush2.msra.mxu0 0.0
        %1404 = vmatprep.subr.mxu0 0.0
        %1405 = vmatpush2.msra.mxu0 0.0
        %1406 = vmatprep.subr.mxu0 0.0
        %1407 = vmatpush2.msra.mxu0 0.0
        %1408 = vmatprep.subr.mxu0 0.0
        %1409 = vmatpush2.msra.mxu0 0.0
        %1410 = vmatprep.subr.mxu0 0.0
        %1411 = vmatpush2.msra.mxu0 0.0
        %1412 = vmatprep.subr.mxu0 0.0
        %1413 = vmatpush2.msra.mxu0 0.0
        %1414 = vmatprep.subr.mxu0 0.0
        %1415 = vmatpush2.msra.mxu0 0.0
        %1416 = vmatprep.subr.mxu0 0.0
        %1417 = vmatpush2.msra.mxu0 0.0
        %1418 = vmatprep.subr.mxu0 0.0
        %1419 = vmatpush2.msra.mxu0 0.0
        %1420 = vmatprep.subr.mxu0 0.0
        %1421 = vmatpush2.msra.mxu0 0.0
        %1422 = vmatprep.subr.mxu0 0.0
        %1423 = vmatpush2.msra.mxu0 0.0
        %1424 = vmatprep.subr.mxu0 0.0
        %1425 = vmatpush2.msra.mxu0 0.0
        %1426 = vmatprep.mubr.f32.mxu0 0.0
        %1427 = vmatmul.mubr.f32.gmra.mxu0 %v1360
        %v1428 = vpop.f32.mrf.mxu0
        %v1429 = vadd.f32 0.0, %v1428
        %v1430 = vpop.f32.mrf.mxu0
        %1431 = vdwg.mxu0
        %v1432 = vcombine.low %v1210, %v1356
        %v1433 = vcombine.high %v1210, %v1356
        %v1435 = vunpack.c.l.s4 1983009808
        %v1436 = vunpack.c.0.s8 %v1435
        %v1437 = vlaneseq
        %v1438 = vshrl.u32 %v1437, 7
        %v1439 = vsub.s32 %v1436, %v1438
        %v1440 = vrot.slane %v1432, %v1439
        %v1442 = vunpack.c.l.s4 1983009808
        %v1443 = vunpack.c.0.s8 %v1442
        %v1444 = vlaneseq
        %v1445 = vshrl.u32 %v1444, 7
        %v1446 = vsub.s32 %v1443, %v1445
        %v1447 = vrot.slane %v1433, %v1446
        %v1448 = vcombine.low %v1283, %v1429
        %v1449 = vcombine.high %v1283, %v1429
        %v1451 = vunpack.c.l.s4 1983009808
        %v1452 = vunpack.c.0.s8 %v1451
        %v1453 = vlaneseq
        %v1454 = vshrl.u32 %v1453, 7
        %v1455 = vsub.s32 %v1452, %v1454
        %v1456 = vrot.slane %v1448, %v1455
        %v1458 = vunpack.c.l.s4 1983009808
        %v1459 = vunpack.c.0.s8 %v1458
        %v1460 = vlaneseq
        %v1461 = vshrl.u32 %v1460, 7
        %v1462 = vsub.s32 %v1459, %v1461
        %v1463 = vrot.slane %v1449, %v1462
        %v1464 = vcombine.low %v1440, %v1456
        %v1465 = vcombine.high %v1440, %v1456
        %v1467 = vunpack.c.l.s4 1934713408
        %v1468 = vunpack.c.0.s8 %v1467
        %v1469 = vlaneseq
        %v1470 = vshrl.u32 %v1469, 7
        %v1471 = vsub.s32 %v1468, %v1470
        %v1472 = vrot.slane %v1464, %v1471
        %v1474 = vunpack.c.l.s4 1934713408
        %v1475 = vunpack.c.0.s8 %v1474
        %v1476 = vlaneseq
        %v1477 = vshrl.u32 %v1476, 7
        %v1478 = vsub.s32 %v1475, %v1477
        %v1479 = vrot.slane %v1465, %v1478
        %v1480 = vcombine.low %v1447, %v1463
        %v1481 = vcombine.high %v1447, %v1463
        %v1483 = vunpack.c.l.s4 1934713408
        %v1484 = vunpack.c.0.s8 %v1483
        %v1485 = vlaneseq
        %v1486 = vshrl.u32 %v1485, 7
        %v1487 = vsub.s32 %v1484, %v1486
        %v1488 = vrot.slane %v1480, %v1487
        %v1490 = vunpack.c.l.s4 1934713408
        %v1491 = vunpack.c.0.s8 %v1490
        %v1492 = vlaneseq
        %v1493 = vshrl.u32 %v1492, 7
        %v1494 = vsub.s32 %v1491, %v1493
        %v1495 = vrot.slane %v1481, %v1494
        %v1496 = vcombine.high %v1472, 0.0
        %v1497 = vcombine.high %v1479, 0.0
        %v1498 = vcombine.high %v1488, 0.0
        %v1499 = vcombine.high %v1495, 0.0
        %v1500 = vcombine.low %v1472, %v1479
        %v1502 = vunpack.c.l.s4 1983009808
        %v1503 = vunpack.c.0.s8 %v1502
        %v1504 = vlaneseq
        %v1505 = vshrl.u32 %v1504, 7
        %v1506 = vsub.s32 %v1503, %v1505
        %v1507 = vrot.slane %v1500, %v1506
        %v1508 = vcombine.low %v1496, %v1497
        %v1510 = vunpack.c.l.s4 1983009808
        %v1511 = vunpack.c.0.s8 %v1510
        %v1512 = vlaneseq
        %v1513 = vshrl.u32 %v1512, 7
        %v1514 = vsub.s32 %v1511, %v1513
        %v1515 = vrot.slane %v1508, %v1514
        %v1516 = vcombine.low %v1488, %v1495
        %v1518 = vunpack.c.l.s4 1983009808
        %v1519 = vunpack.c.0.s8 %v1518
        %v1520 = vlaneseq
        %v1521 = vshrl.u32 %v1520, 7
        %v1522 = vsub.s32 %v1519, %v1521
        %v1523 = vrot.slane %v1516, %v1522
        %v1524 = vcombine.low %v1498, %v1499
        %v1526 = vunpack.c.l.s4 1983009808
        %v1527 = vunpack.c.0.s8 %v1526
        %v1528 = vlaneseq
        %v1529 = vshrl.u32 %v1528, 7
        %v1530 = vsub.s32 %v1527, %v1529
        %v1531 = vrot.slane %v1524, %v1530
        %v1532 = vcombine.low %v1507, %v1515
        %v1533 = vcombine.high %v1507, %v1515
        %v1535 = vunpack.c.l.s4 1934713408
        %v1536 = vunpack.c.0.s8 %v1535
        %v1537 = vlaneseq
        %v1538 = vshrl.u32 %v1537, 7
        %v1539 = vsub.s32 %v1536, %v1538
        %v1540 = vrot.slane %v1532, %v1539
        %v1542 = vunpack.c.l.s4 1934713408
        %v1543 = vunpack.c.0.s8 %v1542
        %v1544 = vlaneseq
        %v1545 = vshrl.u32 %v1544, 7
        %v1546 = vsub.s32 %v1543, %v1545
        %v1547 = vrot.slane %v1533, %v1546
        %v1548 = vcombine.low %v1523, %v1531
        %v1549 = vcombine.high %v1523, %v1531
        %v1551 = vunpack.c.l.s4 1934713408
        %v1552 = vunpack.c.0.s8 %v1551
        %v1553 = vlaneseq
        %v1554 = vshrl.u32 %v1553, 7
        %v1555 = vsub.s32 %v1552, %v1554
        %v1556 = vrot.slane %v1548, %v1555
        %v1558 = vunpack.c.l.s4 1934713408
        %v1559 = vunpack.c.0.s8 %v1558
        %v1560 = vlaneseq
        %v1561 = vshrl.u32 %v1560, 7
        %v1562 = vsub.s32 %v1559, %v1561
        %v1563 = vrot.slane %v1549, %v1562
        %v1564 = vcombine.low %v1540, %v1556
        %v1565 = vcombine.high %v1540, %v1556
        %v1566 = vcombine.low %v1547, %v1563
        %v1567 = vcombine.high %v1547, %v1563
        %1569 = vrot.lane.b32.xlu0 %v1565, 8
        %v1570 = vpop.permute.xlu0 %1569
        %1573 = vrot.lane.b32.xlu0 %v1566, 16
        %v1574 = vpop.permute.xlu0 %1573
        %1577 = vrot.lane.b32.xlu0 %v1567, 24
        %v1578 = vpop.permute.xlu0 %1577
        %v1580 = vsel %vm791, %v1564, %v1570
        %vm1581 = vcmask 130048
        %v1582 = vsel %vm1581, %v1580, %v1574
        %vm1583 = vcmask 195584
        %v1584 = vsel %vm1583, %v1582, %v1578
        %1585 = vst.msk [vmem:[%s252] sm:$0xff] %vm269, %v1584
        %s1586 = sand.u32 %s138, 1
        %s1587 = scalar_lea.sflag [#allocation4], %s1586
        %s1588 = sand.u32 %s138, 1
        %s1589 = smul.addr %s1588, 8
        %s1590 = scalar_lea.vmem [#allocation7], %s1589
        // Predicated region
        $region45: #{tpu_custom_call.1} parent=35 // pred_check
          %p1591 = pneg %p148
        $region46: #{tpu_custom_call.1} parent=35 // pred_check_branch
          %1593 = sbr.rel (%p1591) target = $region48
        $region47: #{tpu_custom_call.1} parent=35 // pred_region
          %s1595 = ssub.s32 128, 128
          %1596 = vsyncadd %s1587, %s1595
          %s1597 = sadd.s32 %s27, %s26
          %s1598 = smul.addr %s1597, 128
          %s1599 = scalar_lea.hbm %s4, %s1598
          %s1601 = sshll.u32 %s1590, 4
          %s1602 = int_to_ptr.vmem [resolvable:$true] %s1601
          %1604 = dma.vmem_to_hbm [thread:$0]  %s1602, 128, %s1599, %s1587
        $region48: #{tpu_custom_call.1} parent=35 // pred_fallthru
          _
      $region36: #{tpu_custom_call.1} parent=5 // pred_fallthru
        _
      %p1605 = scmp.le.s32.totalorder 2, %s17
      // Predicated region
      $region49: #{tpu_custom_call.1} parent=5 // pred_check
        %p1606 = pneg %p1605
      $region50: #{tpu_custom_call.1} parent=5 // pred_check_branch
        %1608 = sbr.rel (%p1606) target = $region52
      $region51: #{tpu_custom_call.1} parent=5 // pred_region
        %s1609 = ssub.s32 %s17, 2
        // Predicated region
        $region53: #{tpu_custom_call.1} parent=51 // pred_check
          %p1610 = pneg %p154
        $region54: #{tpu_custom_call.1} parent=51 // pred_check_branch
          %1612 = sbr.rel (%p1610) target = $region56
        $region55: #{tpu_custom_call.1} parent=51 // pred_region
          %s1613 = sand.u32 %s139, 1
          %s1614 = scalar_lea.sflag [#allocation4], %s1613
          %s1615 = sand.u32 %s139, 1
          %s1616 = smul.addr %s1615, 8
          %s1617 = scalar_lea.vmem [#allocation7], %s1616
          %1618 = dma.done %s1614, 128
        $region56: #{tpu_custom_call.1} parent=51 // pred_fallthru
          _
      $region52: #{tpu_custom_call.1} parent=5 // pred_fallthru
        _
    $region6: #{tpu_custom_call.1} parent=1 // loop_footer
      %s21 = sadd.s32 1, %s17
    $region7: #{tpu_custom_call.1} parent=1 // loop_footer_branch
      %16 = sbr.rel target = $region3
    $region8: #{tpu_custom_call.1} parent=1 // loop_exit
      _
    %1619 = vsyncpa [#allocation3], 1
    %s1620 = scalar_lea.sflag [#allocation3], 1
    %1621 = vsyncpa %s1620, 1
    %1622 = vsyncpa [#allocation6], 1
    %1623 = vsyncpa [#allocation4], 1
    %s1624 = scalar_lea.sflag [#allocation4], 1
    %1625 = vsyncpa %s1624, 1

</llo_original>
